<compile_context>
chip_gen: v7x
topology: tpu7x:2x2x1
jax: 0.10.0
libtpu: 0.0.40
codegen_flags: <defaults>
</compile_context>

<pallas_src>
import functools

import numpy as np
import jax
import jax.numpy as jnp
from jax.experimental import pallas as pl
from jax.experimental.pallas import tpu as pltpu

# ---------------- static LeNet geometry (32x32 input, as the conv stack requires) -----
H0 = W0 = 32          # input spatial
H1 = W1 = 28          # conv1 output spatial
H1P = W1P = 14        # pool1 output spatial
H2 = W2 = 10          # conv2 output spatial
H2P = W2P = 5         # pool2 output spatial

CIN_P = 4             # input channels padded 3 -> 4 (conv1 K = 32*4 = 128 lanes)
C1_P = 8              # conv1 channels padded 6 -> 8
C2_P = 16             # conv2 channels 16
C3_P = 128            # conv3 channels padded 120 -> 128 (lane-dense)
FC_P = 128            # fc widths padded (84, 10) -> 128 (lane-dense kernel output)

K1 = W0 * CIN_P       # 128  conv1 K lanes
N1_PAD = 256          # conv1 out lanes: 28*8 = 224 padded to 256
P1_LANES = 128        # pool1 out lanes: 14*8 = 112 padded to 128
N2_PAD = 256          # conv2 out lanes: 10*16 = 160 padded to 256
P2_LANES = 128        # pool2 out lanes:  5*16 =  80 padded to 128
ROW1 = 16             # per-image sublane stride of the pool1 slab (14 valid + 2 zero)
TAIL = 8              # zero sublane tail per tile so di-shifted reads stay in bounds


# ---------------- host-side weight packing (done once at init) ------------------------

def _toeplitz(w, w_in, ci_p, co_p, k_pad, n_pad):
    """(Co,Ci,5,5) conv weight -> 5 slabs T[di] of shape (k_pad, n_pad) so that conv row
    di is `act_rows[di : di+rows] @ T[di]` in the (H, W*C) activation layout."""
    w = np.asarray(w, np.float32)
    co, ci, kh, kw = w.shape
    w_out = w_in - kw + 1
    t = np.zeros((kh, k_pad, n_pad), np.float32)
    for di in range(kh):
        for dj in range(kw):
            for wo in range(w_out):
                t[di, (wo + dj) * ci_p:(wo + dj) * ci_p + ci,
                      wo * co_p:wo * co_p + co] = w[:, :, di, dj].T
    return t


def _bias_row(b, w_out, co_p, n_pad):
    b = np.asarray(b, np.float32)
    bp = np.zeros((co_p,), np.float32)
    bp[: b.shape[0]] = b
    row = np.zeros((1, n_pad), np.float32)
    row[0, : w_out * co_p] = np.tile(bp, w_out)
    return row


def _pool_w(w_in, c_p, in_pad, out_pad):
    """Column (width) half of the 2x2 avg pool: (w,c) lane -> (w//2,c) lane, weight 1."""
    p = np.zeros((in_pad, out_pad), np.float32)
    for w in range(w_in):
        for c in range(c_p):
            p[w * c_p + c, (w // 2) * c_p + c] = 1.0
    return p


def _pool1_rows(b_tile):
    """Block-diagonal row half of pool1 over the stacked (b_tile*32)-row conv1 slab.
    Output stride 16 rows/image (+8-row zero tail); garbage conv rows get weight 0."""
    p = np.zeros((b_tile * ROW1 + TAIL, b_tile * H0), np.float32)
    for b in range(b_tile):
        for j in range(H1P):
            p[b * ROW1 + j, b * H0 + 2 * j] = 0.25
            p[b * ROW1 + j, b * H0 + 2 * j + 1] = 0.25
    return p


def _pool2_rows(b_tile):
    """Row half of pool2, PERMUTED so output row di*b_tile + b is image b's pooled row
    di -> conv3/fc run batched over the tile with contiguous, sublane-aligned slices."""
    p = np.zeros((H2P * b_tile, b_tile * ROW1), np.float32)
    for di in range(H2P):
        for b in range(b_tile):
            p[di * b_tile + b, b * ROW1 + 2 * di] = 0.25
            p[di * b_tile + b, b * ROW1 + 2 * di + 1] = 0.25
    return p


def _fc_pack(w, b, k_p, n_p):
    w = np.asarray(w, np.float32)                 # (out, in), PyTorch Linear layout
    o, i = w.shape
    wp = np.zeros((k_p, n_p), np.float32)
    wp[:i, :o] = w.T
    bp = np.zeros((1, n_p), np.float32)
    bp[0, :o] = np.asarray(b, np.float32)
    return wp, bp


def pack_params(p, b_tile):
    assert b_tile % 8 == 0, "b_tile must be a multiple of 8 (sublane alignment)"
    t1 = _toeplitz(p["c1_w"], W0, CIN_P, C1_P, K1, N1_PAD)          # (5, 128, 256)
    b1 = _bias_row(p["c1_b"], W1, C1_P, N1_PAD)                     # (1, 256)
    ph1 = _pool1_rows(b_tile)                                       # (b*16+8, b*32)
    pw1 = _pool_w(W1, C1_P, N1_PAD, P1_LANES)                       # (256, 128)
    t2 = _toeplitz(p["c2_w"], W1P, C1_P, C2_P, P1_LANES, N2_PAD)    # (5, 128, 256)
    b2 = _bias_row(p["c2_b"], W2, C2_P, N2_PAD)                     # (1, 256)
    ph2 = _pool2_rows(b_tile)                                       # (5*b, b*16)
    pw2 = _pool_w(W2, C2_P, N2_PAD, P2_LANES)                       # (256, 128)
    t3 = _toeplitz(p["c3_w"], W2P, C2_P, C3_P, P2_LANES, C3_P)      # (5, 128, 128)
    b3 = _bias_row(p["c3_b"], 1, C3_P, C3_P)                        # (1, 128)
    w4, b4 = _fc_pack(p["fc1_w"], p["fc1_b"], C3_P, FC_P)           # (128,128), (1,128)
    w5, b5 = _fc_pack(p["fc2_w"], p["fc2_b"], FC_P, FC_P)           # (128,128), (1,128)
    bf = jnp.bfloat16
    # MXU operands in bf16; biases stay f32 (added to f32 accumulators on the VPU).
    t1, ph1, pw1, t2, ph2, pw2, t3, w4, w5 = (
        jnp.asarray(a, bf) for a in (t1, ph1, pw1, t2, ph2, pw2, t3, w4, w5))
    b1, b2, b3, b4, b5 = (jnp.asarray(a, jnp.float32) for a in (b1, b2, b3, b4, b5))
    return (t1, b1, ph1, pw1, t2, b2, ph2, pw2, t3, b3, w4, b4, w5, b5)


# ---------------- the single fused Pallas kernel (one grid step == B_TILE images) -----

def _make_kernel(bt):
    m0 = bt * H0        # conv1 output rows per tile (4 garbage rows / image, zeroed by ph1)
    m1 = bt * ROW1      # conv2 output rows per tile (6 garbage rows / image, ignored by ph2)

    def kernel(x_ref, t1, b1, ph1, pw1, t2, b2, ph2, pw2, t3, b3,
               w4, b4, w5, b5, o_ref, p1_s):
        f32, bf16 = jnp.float32, jnp.bfloat16

        def conv5(load, t_ref):
            # valid 5x5 conv over the whole stacked tile: 5 sublane-shifted slab matmuls.
            acc = jnp.dot(load(0), t_ref[0], preferred_element_type=f32)
            for di in range(1, 5):
                acc = acc + jnp.dot(load(di), t_ref[di], preferred_element_type=f32)
            return acc

        def pool(ph_ref, act, pw_ref):
            # 2x2 / stride-2 avg pool == block-diag row-pool matmul then col-pool matmul.
            r = jnp.dot(ph_ref[...], act, preferred_element_type=f32).astype(bf16)
            return jnp.dot(r, pw_ref[...], preferred_element_type=f32).astype(bf16)

        # conv1 + ReLU : 5 x (bt*32, 128) @ (128, 256)
        y1 = conv5(lambda di: x_ref[pl.ds(di, m0), :], t1)
        y1 = jnp.maximum(y1 + b1[...], 0.0).astype(bf16)
        # pool1 -> VMEM scratch (row matrix also writes the zero pad rows + zero tail)
        p1_s[...] = pool(ph1, y1, pw1)
        # conv2 + ReLU : 5 x (bt*16, 128) @ (128, 256), sublane-shifted reads of p1_s
        y2 = conv5(lambda di: p1_s[pl.ds(di, m1), :], t2)
        y2 = jnp.maximum(y2 + b2[...], 0.0).astype(bf16)
        # pool2, permuted so rows [di*bt, (di+1)*bt) hold pooled row di of every image
        p2 = pool(ph2, y2, pw2)
        # conv3 + ReLU batched over the tile : 5 x (bt, 128) @ (128, 128)
        acc = jnp.dot(p2[0:bt], t3[0], preferred_element_type=f32)
        for di in range(1, 5):
            acc = acc + jnp.dot(p2[di * bt:(di + 1) * bt], t3[di],
                                preferred_element_type=f32)
        h3 = jnp.maximum(acc + b3[...], 0.0).astype(bf16)
        # fc1 + ReLU, fc2 : (bt, 128) @ (128, 128); logits land in lanes 0..9.
        f1 = jnp.maximum(jnp.dot(h3, w4[...], preferred_element_type=f32) + b4[...],
                         0.0).astype(bf16)
        o_ref[...] = (jnp.dot(f1, w5[...], preferred_element_type=f32)
                      + b5[...]).astype(o_ref.dtype)

    return kernel


def lenet_pallas(xp, packed, g, b_tile):
    rows_in = b_tile * H0 + TAIL

    def full_spec(a):
        return pl.BlockSpec(a.shape, lambda i: (0,) * a.ndim)

    out = pl.pallas_call(
        _make_kernel(b_tile),
        out_shape=jax.ShapeDtypeStruct((g * b_tile, FC_P), jnp.float32),
        grid=(g,),
        in_specs=[pl.BlockSpec((rows_in, K1), lambda i: (i, 0))]
                 + [full_spec(a) for a in packed],
        out_specs=pl.BlockSpec((b_tile, FC_P), lambda i: (i, 0)),
        scratch_shapes=[pltpu.VMEM((b_tile * ROW1 + TAIL, P1_LANES), jnp.bfloat16)],
        compiler_params=pltpu.CompilerParams(dimension_semantics=("parallel",)),
    )(xp, *packed)
    return out


# ---------------- module boundary: NCHW in, logits out ---------------------------------

def pack_input(x, b_tile):
    n, c, h, w = x.shape
    assert (h, w) == (H0, W0) and c <= CIN_P
    g = -(-n // b_tile)
    xt = jnp.transpose(x, (0, 2, 3, 1))                              # NCHW -> NHWC
    xt = jnp.pad(xt, ((0, g * b_tile - n), (0, 0), (0, 0), (0, CIN_P - c)))
    xt = xt.reshape(g, b_tile * H0, W0 * CIN_P)                      # stack images on sublanes
    xt = jnp.pad(xt, ((0, 0), (0, TAIL), (0, 0)))                    # zero tail per tile
    return xt.reshape(g * (b_tile * H0 + TAIL), W0 * CIN_P).astype(jnp.bfloat16), g


@functools.partial(jax.jit, static_argnums=(2, 3))
def lenet_forward(x, packed, num_classes=10, b_tile=8):
    n = x.shape[0]
    xp, g = pack_input(x, b_tile)
    out = lenet_pallas(xp, packed, g, b_tile)                        # (g*b_tile, 128)
    return out[:n, :num_classes]


# ---------------- parameters (PyTorch layout) & pure-JAX reference ---------------------

def init_params(key, in_channels=3, num_classes=10):
    ks = jax.random.split(key, 10)
    s = 0.05
    return {
        "c1_w": s * jax.random.normal(ks[0], (6, in_channels, 5, 5), jnp.float32),
        "c1_b": s * jax.random.normal(ks[1], (6,), jnp.float32),
        "c2_w": s * jax.random.normal(ks[2], (16, 6, 5, 5), jnp.float32),
        "c2_b": s * jax.random.normal(ks[3], (16,), jnp.float32),
        "c3_w": s * jax.random.normal(ks[4], (120, 16, 5, 5), jnp.float32),
        "c3_b": s * jax.random.normal(ks[5], (120,), jnp.float32),
        "fc1_w": s * jax.random.normal(ks[6], (84, 120), jnp.float32),
        "fc1_b": s * jax.random.normal(ks[7], (84,), jnp.float32),
        "fc2_w": s * jax.random.normal(ks[8], (num_classes, 84), jnp.float32),
        "fc2_b": s * jax.random.normal(ks[9], (num_classes,), jnp.float32),
    }


def ref_forward(x, p):
    def conv(x, w, b):
        y = jax.lax.conv_general_dilated(
            x, w, (1, 1), "VALID", dimension_numbers=("NCHW", "OIHW", "NCHW"))
        return y + b.reshape(1, -1, 1, 1)

    def pool(x):
        n, c, h, w = x.shape
        return x.reshape(n, c, h // 2, 2, w // 2, 2).mean(axis=(3, 5))

    x = jnp.maximum(conv(x, p["c1_w"], p["c1_b"]), 0.0)
    x = pool(x)
    x = jnp.maximum(conv(x, p["c2_w"], p["c2_b"]), 0.0)
    x = pool(x)
    x = jnp.maximum(conv(x, p["c3_w"], p["c3_b"]), 0.0)
    x = x.reshape(x.shape[0], -1)
    x = jnp.maximum(x @ p["fc1_w"].T + p["fc1_b"], 0.0)
    return x @ p["fc2_w"].T + p["fc2_b"]


if __name__ == "__main__":
    key = jax.random.PRNGKey(0)
    kx, kp = jax.random.split(key)
    # LeNet geometry requires 32x32 spatial so the final 5x5 conv sees a 5x5 map.
    B_TILE = 8                      # images per grid step (multiple of 8); grid = 2 here
    x = jax.random.normal(kx, (16, 3, 32, 32), jnp.float32)
    params = init_params(kp)
    packed = pack_params(params, B_TILE)   # one-time host-side packing of all weights

    out = jax.block_until_ready(lenet_forward(x, packed, 10, B_TILE))
    assert out.shape == (16, 10), out.shape

    ref = ref_forward(x, params)
    err = float(jnp.max(jnp.abs(out - ref)))
    # bf16 MXU operands vs. f32 XLA reference -> loosened tolerance.
    assert jnp.allclose(out, ref, rtol=5e-2, atol=5e-3), err

    print("KERNEL_OK")
</pallas_src>

<mosaic_0001>
module attributes {stable_mosaic.version = 11 : i64} {
  func.func @kernel(%arg0: i32, %arg1: memref<264x128xbf16, #tpu.memory_space<vmem>>, %arg2: memref<5x128x256xbf16, #tpu.memory_space<vmem>>, %arg3: memref<1x256xf32, #tpu.memory_space<vmem>>, %arg4: memref<136x256xbf16, #tpu.memory_space<vmem>>, %arg5: memref<256x128xbf16, #tpu.memory_space<vmem>>, %arg6: memref<5x128x256xbf16, #tpu.memory_space<vmem>>, %arg7: memref<1x256xf32, #tpu.memory_space<vmem>>, %arg8: memref<40x128xbf16, #tpu.memory_space<vmem>>, %arg9: memref<256x128xbf16, #tpu.memory_space<vmem>>, %arg10: memref<5x128x128xbf16, #tpu.memory_space<vmem>>, %arg11: memref<1x128xf32, #tpu.memory_space<vmem>>, %arg12: memref<128x128xbf16, #tpu.memory_space<vmem>>, %arg13: memref<1x128xf32, #tpu.memory_space<vmem>>, %arg14: memref<128x128xbf16, #tpu.memory_space<vmem>>, %arg15: memref<1x128xf32, #tpu.memory_space<vmem>>, %arg16: memref<8x128xf32, #tpu.memory_space<vmem>>, %arg17: memref<136x128xbf16, #tpu.memory_space<vmem>>) attributes {dimension_semantics = [#tpu.dimension_semantics<parallel>], iteration_bounds = array<i64: 2>, scalar_prefetch = 0 : i64, scratch_operands = 1 : i64, tpu.core_type = #tpu.core_type<tc>, window_params = [{transform_indices = @transform_0, window_bounds = array<i64: 264, 128>}, {pipeline_mode = #tpu.pipeline_mode<synchronous>, transform_indices = @transform_1, window_bounds = array<i64: 5, 128, 256>}, {pipeline_mode = #tpu.pipeline_mode<synchronous>, transform_indices = @transform_2, window_bounds = array<i64: 1, 256>}, {pipeline_mode = #tpu.pipeline_mode<synchronous>, transform_indices = @transform_3, window_bounds = array<i64: 136, 256>}, {pipeline_mode = #tpu.pipeline_mode<synchronous>, transform_indices = @transform_4, window_bounds = array<i64: 256, 128>}, {pipeline_mode = #tpu.pipeline_mode<synchronous>, transform_indices = @transform_5, window_bounds = array<i64: 5, 128, 256>}, {pipeline_mode = #tpu.pipeline_mode<synchronous>, transform_indices = @transform_6, window_bounds = array<i64: 1, 256>}, {pipeline_mode = #tpu.pipeline_mode<synchronous>, transform_indices = @transform_7, window_bounds = array<i64: 40, 128>}, {pipeline_mode = #tpu.pipeline_mode<synchronous>, transform_indices = @transform_8, window_bounds = array<i64: 256, 128>}, {pipeline_mode = #tpu.pipeline_mode<synchronous>, transform_indices = @transform_9, window_bounds = array<i64: 5, 128, 128>}, {pipeline_mode = #tpu.pipeline_mode<synchronous>, transform_indices = @transform_10, window_bounds = array<i64: 1, 128>}, {pipeline_mode = #tpu.pipeline_mode<synchronous>, transform_indices = @transform_11, window_bounds = array<i64: 128, 128>}, {pipeline_mode = #tpu.pipeline_mode<synchronous>, transform_indices = @transform_12, window_bounds = array<i64: 1, 128>}, {pipeline_mode = #tpu.pipeline_mode<synchronous>, transform_indices = @transform_13, window_bounds = array<i64: 128, 128>}, {pipeline_mode = #tpu.pipeline_mode<synchronous>, transform_indices = @transform_14, window_bounds = array<i64: 1, 128>}, {transform_indices = @transform_15, window_bounds = array<i64: 8, 128>}]} {
    %c0 = arith.constant 0 : index
    %c0_0 = arith.constant 0 : index
    %0 = vector.load %arg1[%c0, %c0_0] : memref<264x128xbf16, #tpu.memory_space<vmem>>, vector<256x128xbf16>
    %c0_1 = arith.constant 0 : index
    %c0_2 = arith.constant 0 : index
    %c0_3 = arith.constant 0 : index
    %1 = vector.load %arg2[%c0_1, %c0_2, %c0_3] : memref<5x128x256xbf16, #tpu.memory_space<vmem>>, vector<1x128x256xbf16>
    %2 = vector.shape_cast %1 : vector<1x128x256xbf16> to vector<128x256xbf16>
    %cst = arith.constant dense<0.000000e+00> : vector<256x256xf32>
    %3 = tpu.matmul %0, %2, %cst {dimension_numbers = #tpu.dot_dimension_numbers<[1], [0], [0], [1], [0, 0, 1, 1], [], []>} : vector<256x128xbf16>, vector<128x256xbf16>, vector<256x256xf32> -> vector<256x256xf32>
    %c1 = arith.constant 1 : index
    %c0_4 = arith.constant 0 : index
    %4 = vector.load %arg1[%c1, %c0_4] : memref<264x128xbf16, #tpu.memory_space<vmem>>, vector<256x128xbf16>
    %c1_5 = arith.constant 1 : index
    %c0_6 = arith.constant 0 : index
    %c0_7 = arith.constant 0 : index
    %5 = vector.load %arg2[%c1_5, %c0_6, %c0_7] : memref<5x128x256xbf16, #tpu.memory_space<vmem>>, vector<1x128x256xbf16>
    %6 = vector.shape_cast %5 : vector<1x128x256xbf16> to vector<128x256xbf16>
    %cst_8 = arith.constant dense<0.000000e+00> : vector<256x256xf32>
    %7 = tpu.matmul %4, %6, %cst_8 {dimension_numbers = #tpu.dot_dimension_numbers<[1], [0], [0], [1], [0, 0, 1, 1], [], []>} : vector<256x128xbf16>, vector<128x256xbf16>, vector<256x256xf32> -> vector<256x256xf32>
    %8 = arith.addf %3, %7 : vector<256x256xf32>
    %c2 = arith.constant 2 : index
    %c0_9 = arith.constant 0 : index
    %9 = vector.load %arg1[%c2, %c0_9] : memref<264x128xbf16, #tpu.memory_space<vmem>>, vector<256x128xbf16>
    %c2_10 = arith.constant 2 : index
    %c0_11 = arith.constant 0 : index
    %c0_12 = arith.constant 0 : index
    %10 = vector.load %arg2[%c2_10, %c0_11, %c0_12] : memref<5x128x256xbf16, #tpu.memory_space<vmem>>, vector<1x128x256xbf16>
    %11 = vector.shape_cast %10 : vector<1x128x256xbf16> to vector<128x256xbf16>
    %cst_13 = arith.constant dense<0.000000e+00> : vector<256x256xf32>
    %12 = tpu.matmul %9, %11, %cst_13 {dimension_numbers = #tpu.dot_dimension_numbers<[1], [0], [0], [1], [0, 0, 1, 1], [], []>} : vector<256x128xbf16>, vector<128x256xbf16>, vector<256x256xf32> -> vector<256x256xf32>
    %13 = arith.addf %8, %12 : vector<256x256xf32>
    %c3 = arith.constant 3 : index
    %c0_14 = arith.constant 0 : index
    %14 = vector.load %arg1[%c3, %c0_14] : memref<264x128xbf16, #tpu.memory_space<vmem>>, vector<256x128xbf16>
    %c3_15 = arith.constant 3 : index
    %c0_16 = arith.constant 0 : index
    %c0_17 = arith.constant 0 : index
    %15 = vector.load %arg2[%c3_15, %c0_16, %c0_17] : memref<5x128x256xbf16, #tpu.memory_space<vmem>>, vector<1x128x256xbf16>
    %16 = vector.shape_cast %15 : vector<1x128x256xbf16> to vector<128x256xbf16>
    %cst_18 = arith.constant dense<0.000000e+00> : vector<256x256xf32>
    %17 = tpu.matmul %14, %16, %cst_18 {dimension_numbers = #tpu.dot_dimension_numbers<[1], [0], [0], [1], [0, 0, 1, 1], [], []>} : vector<256x128xbf16>, vector<128x256xbf16>, vector<256x256xf32> -> vector<256x256xf32>
    %18 = arith.addf %13, %17 : vector<256x256xf32>
    %c4 = arith.constant 4 : index
    %c0_19 = arith.constant 0 : index
    %19 = vector.load %arg1[%c4, %c0_19] : memref<264x128xbf16, #tpu.memory_space<vmem>>, vector<256x128xbf16>
    %c4_20 = arith.constant 4 : index
    %c0_21 = arith.constant 0 : index
    %c0_22 = arith.constant 0 : index
    %20 = vector.load %arg2[%c4_20, %c0_21, %c0_22] : memref<5x128x256xbf16, #tpu.memory_space<vmem>>, vector<1x128x256xbf16>
    %21 = vector.shape_cast %20 : vector<1x128x256xbf16> to vector<128x256xbf16>
    %cst_23 = arith.constant dense<0.000000e+00> : vector<256x256xf32>
    %22 = tpu.matmul %19, %21, %cst_23 {dimension_numbers = #tpu.dot_dimension_numbers<[1], [0], [0], [1], [0, 0, 1, 1], [], []>} : vector<256x128xbf16>, vector<128x256xbf16>, vector<256x256xf32> -> vector<256x256xf32>
    %23 = arith.addf %18, %22 : vector<256x256xf32>
    %c0_24 = arith.constant 0 : index
    %c0_25 = arith.constant 0 : index
    %24 = vector.load %arg3[%c0_24, %c0_25] : memref<1x256xf32, #tpu.memory_space<vmem>>, vector<1x256xf32>
    %25 = vector.broadcast %24 : vector<1x256xf32> to vector<256x256xf32>
    %26 = arith.addf %23, %25 : vector<256x256xf32>
    %cst_26 = arith.constant 0.000000e+00 : f32
    %27 = vector.broadcast %cst_26 : f32 to vector<256x256xf32>
    %28 = arith.maximumf %26, %27 : vector<256x256xf32>
    %29 = arith.truncf %28 : vector<256x256xf32> to vector<256x256xbf16>
    %c0_27 = arith.constant 0 : index
    %c0_28 = arith.constant 0 : index
    %30 = vector.load %arg4[%c0_27, %c0_28] : memref<136x256xbf16, #tpu.memory_space<vmem>>, vector<136x256xbf16>
    %cst_29 = arith.constant dense<0.000000e+00> : vector<136x256xf32>
    %31 = tpu.matmul %30, %29, %cst_29 {dimension_numbers = #tpu.dot_dimension_numbers<[1], [0], [0], [1], [0, 0, 1, 1], [], []>} : vector<136x256xbf16>, vector<256x256xbf16>, vector<136x256xf32> -> vector<136x256xf32>
    %32 = arith.truncf %31 : vector<136x256xf32> to vector<136x256xbf16>
    %c0_30 = arith.constant 0 : index
    %c0_31 = arith.constant 0 : index
    %33 = vector.load %arg5[%c0_30, %c0_31] : memref<256x128xbf16, #tpu.memory_space<vmem>>, vector<256x128xbf16>
    %cst_32 = arith.constant dense<0.000000e+00> : vector<136x128xf32>
    %34 = tpu.matmul %32, %33, %cst_32 {dimension_numbers = #tpu.dot_dimension_numbers<[1], [0], [0], [1], [0, 0, 1, 1], [], []>} : vector<136x256xbf16>, vector<256x128xbf16>, vector<136x128xf32> -> vector<136x128xf32>
    %35 = arith.truncf %34 : vector<136x128xf32> to vector<136x128xbf16>
    %c0_33 = arith.constant 0 : index
    %c0_34 = arith.constant 0 : index
    %36 = vector.load %arg17[%c0_33, %c0_34] : memref<136x128xbf16, #tpu.memory_space<vmem>>, vector<136x128xbf16>
    tpu.vector_store %arg17[%c0_33, %c0_34], %35 {strides = array<i32>} : memref<136x128xbf16, #tpu.memory_space<vmem>>, vector<136x128xbf16>,
    %c0_35 = arith.constant 0 : index
    %c0_36 = arith.constant 0 : index
    %37 = vector.load %arg17[%c0_35, %c0_36] : memref<136x128xbf16, #tpu.memory_space<vmem>>, vector<128x128xbf16>
    %c0_37 = arith.constant 0 : index
    %c0_38 = arith.constant 0 : index
    %c0_39 = arith.constant 0 : index
    %38 = vector.load %arg6[%c0_37, %c0_38, %c0_39] : memref<5x128x256xbf16, #tpu.memory_space<vmem>>, vector<1x128x256xbf16>
    %39 = vector.shape_cast %38 : vector<1x128x256xbf16> to vector<128x256xbf16>
    %cst_40 = arith.constant dense<0.000000e+00> : vector<128x256xf32>
    %40 = tpu.matmul %37, %39, %cst_40 {dimension_numbers = #tpu.dot_dimension_numbers<[1], [0], [0], [1], [0, 0, 1, 1], [], []>} : vector<128x128xbf16>, vector<128x256xbf16>, vector<128x256xf32> -> vector<128x256xf32>
    %c1_41 = arith.constant 1 : index
    %c0_42 = arith.constant 0 : index
    %41 = vector.load %arg17[%c1_41, %c0_42] : memref<136x128xbf16, #tpu.memory_space<vmem>>, vector<128x128xbf16>
    %c1_43 = arith.constant 1 : index
    %c0_44 = arith.constant 0 : index
    %c0_45 = arith.constant 0 : index
    %42 = vector.load %arg6[%c1_43, %c0_44, %c0_45] : memref<5x128x256xbf16, #tpu.memory_space<vmem>>, vector<1x128x256xbf16>
    %43 = vector.shape_cast %42 : vector<1x128x256xbf16> to vector<128x256xbf16>
    %cst_46 = arith.constant dense<0.000000e+00> : vector<128x256xf32>
    %44 = tpu.matmul %41, %43, %cst_46 {dimension_numbers = #tpu.dot_dimension_numbers<[1], [0], [0], [1], [0, 0, 1, 1], [], []>} : vector<128x128xbf16>, vector<128x256xbf16>, vector<128x256xf32> -> vector<128x256xf32>
    %45 = arith.addf %40, %44 : vector<128x256xf32>
    %c2_47 = arith.constant 2 : index
    %c0_48 = arith.constant 0 : index
    %46 = vector.load %arg17[%c2_47, %c0_48] : memref<136x128xbf16, #tpu.memory_space<vmem>>, vector<128x128xbf16>
    %c2_49 = arith.constant 2 : index
    %c0_50 = arith.constant 0 : index
    %c0_51 = arith.constant 0 : index
    %47 = vector.load %arg6[%c2_49, %c0_50, %c0_51] : memref<5x128x256xbf16, #tpu.memory_space<vmem>>, vector<1x128x256xbf16>
    %48 = vector.shape_cast %47 : vector<1x128x256xbf16> to vector<128x256xbf16>
    %cst_52 = arith.constant dense<0.000000e+00> : vector<128x256xf32>
    %49 = tpu.matmul %46, %48, %cst_52 {dimension_numbers = #tpu.dot_dimension_numbers<[1], [0], [0], [1], [0, 0, 1, 1], [], []>} : vector<128x128xbf16>, vector<128x256xbf16>, vector<128x256xf32> -> vector<128x256xf32>
    %50 = arith.addf %45, %49 : vector<128x256xf32>
    %c3_53 = arith.constant 3 : index
    %c0_54 = arith.constant 0 : index
    %51 = vector.load %arg17[%c3_53, %c0_54] : memref<136x128xbf16, #tpu.memory_space<vmem>>, vector<128x128xbf16>
    %c3_55 = arith.constant 3 : index
    %c0_56 = arith.constant 0 : index
    %c0_57 = arith.constant 0 : index
    %52 = vector.load %arg6[%c3_55, %c0_56, %c0_57] : memref<5x128x256xbf16, #tpu.memory_space<vmem>>, vector<1x128x256xbf16>
    %53 = vector.shape_cast %52 : vector<1x128x256xbf16> to vector<128x256xbf16>
    %cst_58 = arith.constant dense<0.000000e+00> : vector<128x256xf32>
    %54 = tpu.matmul %51, %53, %cst_58 {dimension_numbers = #tpu.dot_dimension_numbers<[1], [0], [0], [1], [0, 0, 1, 1], [], []>} : vector<128x128xbf16>, vector<128x256xbf16>, vector<128x256xf32> -> vector<128x256xf32>
    %55 = arith.addf %50, %54 : vector<128x256xf32>
    %c4_59 = arith.constant 4 : index
    %c0_60 = arith.constant 0 : index
    %56 = vector.load %arg17[%c4_59, %c0_60] : memref<136x128xbf16, #tpu.memory_space<vmem>>, vector<128x128xbf16>
    %c4_61 = arith.constant 4 : index
    %c0_62 = arith.constant 0 : index
    %c0_63 = arith.constant 0 : index
    %57 = vector.load %arg6[%c4_61, %c0_62, %c0_63] : memref<5x128x256xbf16, #tpu.memory_space<vmem>>, vector<1x128x256xbf16>
    %58 = vector.shape_cast %57 : vector<1x128x256xbf16> to vector<128x256xbf16>
    %cst_64 = arith.constant dense<0.000000e+00> : vector<128x256xf32>
    %59 = tpu.matmul %56, %58, %cst_64 {dimension_numbers = #tpu.dot_dimension_numbers<[1], [0], [0], [1], [0, 0, 1, 1], [], []>} : vector<128x128xbf16>, vector<128x256xbf16>, vector<128x256xf32> -> vector<128x256xf32>
    %60 = arith.addf %55, %59 : vector<128x256xf32>
    %c0_65 = arith.constant 0 : index
    %c0_66 = arith.constant 0 : index
    %61 = vector.load %arg7[%c0_65, %c0_66] : memref<1x256xf32, #tpu.memory_space<vmem>>, vector<1x256xf32>
    %62 = vector.broadcast %61 : vector<1x256xf32> to vector<128x256xf32>
    %63 = arith.addf %60, %62 : vector<128x256xf32>
    %cst_67 = arith.constant 0.000000e+00 : f32
    %64 = vector.broadcast %cst_67 : f32 to vector<128x256xf32>
    %65 = arith.maximumf %63, %64 : vector<128x256xf32>
    %66 = arith.truncf %65 : vector<128x256xf32> to vector<128x256xbf16>
    %c0_68 = arith.constant 0 : index
    %c0_69 = arith.constant 0 : index
    %67 = vector.load %arg8[%c0_68, %c0_69] : memref<40x128xbf16, #tpu.memory_space<vmem>>, vector<40x128xbf16>
    %cst_70 = arith.constant dense<0.000000e+00> : vector<40x256xf32>
    %68 = tpu.matmul %67, %66, %cst_70 {dimension_numbers = #tpu.dot_dimension_numbers<[1], [0], [0], [1], [0, 0, 1, 1], [], []>} : vector<40x128xbf16>, vector<128x256xbf16>, vector<40x256xf32> -> vector<40x256xf32>
    %69 = arith.truncf %68 : vector<40x256xf32> to vector<40x256xbf16>
    %c0_71 = arith.constant 0 : index
    %c0_72 = arith.constant 0 : index
    %70 = vector.load %arg9[%c0_71, %c0_72] : memref<256x128xbf16, #tpu.memory_space<vmem>>, vector<256x128xbf16>
    %cst_73 = arith.constant dense<0.000000e+00> : vector<40x128xf32>
    %71 = tpu.matmul %69, %70, %cst_73 {dimension_numbers = #tpu.dot_dimension_numbers<[1], [0], [0], [1], [0, 0, 1, 1], [], []>} : vector<40x256xbf16>, vector<256x128xbf16>, vector<40x128xf32> -> vector<40x128xf32>
    %72 = arith.truncf %71 : vector<40x128xf32> to vector<40x128xbf16>
    %73 = vector.extract_strided_slice %72 {offsets = [0, 0], sizes = [8, 128], strides = [1, 1]} : vector<40x128xbf16> to vector<8x128xbf16>
    %c0_74 = arith.constant 0 : index
    %c0_75 = arith.constant 0 : index
    %c0_76 = arith.constant 0 : index
    %74 = vector.load %arg10[%c0_74, %c0_75, %c0_76] : memref<5x128x128xbf16, #tpu.memory_space<vmem>>, vector<1x128x128xbf16>
    %75 = vector.shape_cast %74 : vector<1x128x128xbf16> to vector<128x128xbf16>
    %cst_77 = arith.constant dense<0.000000e+00> : vector<8x128xf32>
    %76 = tpu.matmul %73, %75, %cst_77 {dimension_numbers = #tpu.dot_dimension_numbers<[1], [0], [0], [1], [0, 0, 1, 1], [], []>} : vector<8x128xbf16>, vector<128x128xbf16>, vector<8x128xf32> -> vector<8x128xf32>
    %77 = vector.extract_strided_slice %72 {offsets = [8, 0], sizes = [8, 128], strides = [1, 1]} : vector<40x128xbf16> to vector<8x128xbf16>
    %c1_78 = arith.constant 1 : index
    %c0_79 = arith.constant 0 : index
    %c0_80 = arith.constant 0 : index
    %78 = vector.load %arg10[%c1_78, %c0_79, %c0_80] : memref<5x128x128xbf16, #tpu.memory_space<vmem>>, vector<1x128x128xbf16>
    %79 = vector.shape_cast %78 : vector<1x128x128xbf16> to vector<128x128xbf16>
    %cst_81 = arith.constant dense<0.000000e+00> : vector<8x128xf32>
    %80 = tpu.matmul %77, %79, %cst_81 {dimension_numbers = #tpu.dot_dimension_numbers<[1], [0], [0], [1], [0, 0, 1, 1], [], []>} : vector<8x128xbf16>, vector<128x128xbf16>, vector<8x128xf32> -> vector<8x128xf32>
    %81 = arith.addf %76, %80 : vector<8x128xf32>
    %82 = vector.extract_strided_slice %72 {offsets = [16, 0], sizes = [8, 128], strides = [1, 1]} : vector<40x128xbf16> to vector<8x128xbf16>
    %c2_82 = arith.constant 2 : index
    %c0_83 = arith.constant 0 : index
    %c0_84 = arith.constant 0 : index
    %83 = vector.load %arg10[%c2_82, %c0_83, %c0_84] : memref<5x128x128xbf16, #tpu.memory_space<vmem>>, vector<1x128x128xbf16>
    %84 = vector.shape_cast %83 : vector<1x128x128xbf16> to vector<128x128xbf16>
    %cst_85 = arith.constant dense<0.000000e+00> : vector<8x128xf32>
    %85 = tpu.matmul %82, %84, %cst_85 {dimension_numbers = #tpu.dot_dimension_numbers<[1], [0], [0], [1], [0, 0, 1, 1], [], []>} : vector<8x128xbf16>, vector<128x128xbf16>, vector<8x128xf32> -> vector<8x128xf32>
    %86 = arith.addf %81, %85 : vector<8x128xf32>
    %87 = vector.extract_strided_slice %72 {offsets = [24, 0], sizes = [8, 128], strides = [1, 1]} : vector<40x128xbf16> to vector<8x128xbf16>
    %c3_86 = arith.constant 3 : index
    %c0_87 = arith.constant 0 : index
    %c0_88 = arith.constant 0 : index
    %88 = vector.load %arg10[%c3_86, %c0_87, %c0_88] : memref<5x128x128xbf16, #tpu.memory_space<vmem>>, vector<1x128x128xbf16>
    %89 = vector.shape_cast %88 : vector<1x128x128xbf16> to vector<128x128xbf16>
    %cst_89 = arith.constant dense<0.000000e+00> : vector<8x128xf32>
    %90 = tpu.matmul %87, %89, %cst_89 {dimension_numbers = #tpu.dot_dimension_numbers<[1], [0], [0], [1], [0, 0, 1, 1], [], []>} : vector<8x128xbf16>, vector<128x128xbf16>, vector<8x128xf32> -> vector<8x128xf32>
    %91 = arith.addf %86, %90 : vector<8x128xf32>
    %92 = vector.extract_strided_slice %72 {offsets = [32, 0], sizes = [8, 128], strides = [1, 1]} : vector<40x128xbf16> to vector<8x128xbf16>
    %c4_90 = arith.constant 4 : index
    %c0_91 = arith.constant 0 : index
    %c0_92 = arith.constant 0 : index
    %93 = vector.load %arg10[%c4_90, %c0_91, %c0_92] : memref<5x128x128xbf16, #tpu.memory_space<vmem>>, vector<1x128x128xbf16>
    %94 = vector.shape_cast %93 : vector<1x128x128xbf16> to vector<128x128xbf16>
    %cst_93 = arith.constant dense<0.000000e+00> : vector<8x128xf32>
    %95 = tpu.matmul %92, %94, %cst_93 {dimension_numbers = #tpu.dot_dimension_numbers<[1], [0], [0], [1], [0, 0, 1, 1], [], []>} : vector<8x128xbf16>, vector<128x128xbf16>, vector<8x128xf32> -> vector<8x128xf32>
    %96 = arith.addf %91, %95 : vector<8x128xf32>
    %c0_94 = arith.constant 0 : index
    %c0_95 = arith.constant 0 : index
    %97 = vector.load %arg11[%c0_94, %c0_95] : memref<1x128xf32, #tpu.memory_space<vmem>>, vector<1x128xf32>
    %98 = vector.broadcast %97 : vector<1x128xf32> to vector<8x128xf32>
    %99 = arith.addf %96, %98 : vector<8x128xf32>
    %cst_96 = arith.constant 0.000000e+00 : f32
    %100 = vector.broadcast %cst_96 : f32 to vector<8x128xf32>
    %101 = arith.maximumf %99, %100 : vector<8x128xf32>
    %102 = arith.truncf %101 : vector<8x128xf32> to vector<8x128xbf16>
    %c0_97 = arith.constant 0 : index
    %c0_98 = arith.constant 0 : index
    %103 = vector.load %arg12[%c0_97, %c0_98] : memref<128x128xbf16, #tpu.memory_space<vmem>>, vector<128x128xbf16>
    %cst_99 = arith.constant dense<0.000000e+00> : vector<8x128xf32>
    %104 = tpu.matmul %102, %103, %cst_99 {dimension_numbers = #tpu.dot_dimension_numbers<[1], [0], [0], [1], [0, 0, 1, 1], [], []>} : vector<8x128xbf16>, vector<128x128xbf16>, vector<8x128xf32> -> vector<8x128xf32>
    %c0_100 = arith.constant 0 : index
    %c0_101 = arith.constant 0 : index
    %105 = vector.load %arg13[%c0_100, %c0_101] : memref<1x128xf32, #tpu.memory_space<vmem>>, vector<1x128xf32>
    %106 = vector.broadcast %105 : vector<1x128xf32> to vector<8x128xf32>
    %107 = arith.addf %104, %106 : vector<8x128xf32>
    %cst_102 = arith.constant 0.000000e+00 : f32
    %108 = vector.broadcast %cst_102 : f32 to vector<8x128xf32>
    %109 = arith.maximumf %107, %108 : vector<8x128xf32>
    %110 = arith.truncf %109 : vector<8x128xf32> to vector<8x128xbf16>
    %c0_103 = arith.constant 0 : index
    %c0_104 = arith.constant 0 : index
    %111 = vector.load %arg14[%c0_103, %c0_104] : memref<128x128xbf16, #tpu.memory_space<vmem>>, vector<128x128xbf16>
    %cst_105 = arith.constant dense<0.000000e+00> : vector<8x128xf32>
    %112 = tpu.matmul %110, %111, %cst_105 {dimension_numbers = #tpu.dot_dimension_numbers<[1], [0], [0], [1], [0, 0, 1, 1], [], []>} : vector<8x128xbf16>, vector<128x128xbf16>, vector<8x128xf32> -> vector<8x128xf32>
    %c0_106 = arith.constant 0 : index
    %c0_107 = arith.constant 0 : index
    %113 = vector.load %arg15[%c0_106, %c0_107] : memref<1x128xf32, #tpu.memory_space<vmem>>, vector<1x128xf32>
    %114 = vector.broadcast %113 : vector<1x128xf32> to vector<8x128xf32>
    %115 = arith.addf %112, %114 : vector<8x128xf32>
    %c0_108 = arith.constant 0 : index
    %c0_109 = arith.constant 0 : index
    %116 = vector.load %arg16[%c0_108, %c0_109] : memref<8x128xf32, #tpu.memory_space<vmem>>, vector<8x128xf32>
    tpu.vector_store %arg16[%c0_108, %c0_109], %115 {strides = array<i32>} : memref<8x128xf32, #tpu.memory_space<vmem>>, vector<8x128xf32>,
    return
  }
  func.func @transform_0(%arg0: i32) -> (i32, i32) {
    %c0_i32 = arith.constant 0 : i32
    %c0_i32_0 = arith.constant 0 : i32
    return %arg0, %c0_i32 : i32, i32
  }
  func.func @transform_1(%arg0: i32) -> (i32, i32, i32) {
    %c0_i32 = arith.constant 0 : i32
    %c0_i32_0 = arith.constant 0 : i32
    %c0_i32_1 = arith.constant 0 : i32
    %c0_i32_2 = arith.constant 0 : i32
    return %c0_i32, %c0_i32_0, %c0_i32_1 : i32, i32, i32
  }
  func.func @transform_2(%arg0: i32) -> (i32, i32) {
    %c0_i32 = arith.constant 0 : i32
    %c0_i32_0 = arith.constant 0 : i32
    %c0_i32_1 = arith.constant 0 : i32
    return %c0_i32, %c0_i32_0 : i32, i32
  }
  func.func @transform_3(%arg0: i32) -> (i32, i32) {
    %c0_i32 = arith.constant 0 : i32
    %c0_i32_0 = arith.constant 0 : i32
    %c0_i32_1 = arith.constant 0 : i32
    return %c0_i32, %c0_i32_0 : i32, i32
  }
  func.func @transform_4(%arg0: i32) -> (i32, i32) {
    %c0_i32 = arith.constant 0 : i32
    %c0_i32_0 = arith.constant 0 : i32
    %c0_i32_1 = arith.constant 0 : i32
    return %c0_i32, %c0_i32_0 : i32, i32
  }
  func.func @transform_5(%arg0: i32) -> (i32, i32, i32) {
    %c0_i32 = arith.constant 0 : i32
    %c0_i32_0 = arith.constant 0 : i32
    %c0_i32_1 = arith.constant 0 : i32
    %c0_i32_2 = arith.constant 0 : i32
    return %c0_i32, %c0_i32_0, %c0_i32_1 : i32, i32, i32
  }
  func.func @transform_6(%arg0: i32) -> (i32, i32) {
    %c0_i32 = arith.constant 0 : i32
    %c0_i32_0 = arith.constant 0 : i32
    %c0_i32_1 = arith.constant 0 : i32
    return %c0_i32, %c0_i32_0 : i32, i32
  }
  func.func @transform_7(%arg0: i32) -> (i32, i32) {
    %c0_i32 = arith.constant 0 : i32
    %c0_i32_0 = arith.constant 0 : i32
    %c0_i32_1 = arith.constant 0 : i32
    return %c0_i32, %c0_i32_0 : i32, i32
  }
  func.func @transform_8(%arg0: i32) -> (i32, i32) {
    %c0_i32 = arith.constant 0 : i32
    %c0_i32_0 = arith.constant 0 : i32
    %c0_i32_1 = arith.constant 0 : i32
    return %c0_i32, %c0_i32_0 : i32, i32
  }
  func.func @transform_9(%arg0: i32) -> (i32, i32, i32) {
    %c0_i32 = arith.constant 0 : i32
    %c0_i32_0 = arith.constant 0 : i32
    %c0_i32_1 = arith.constant 0 : i32
    %c0_i32_2 = arith.constant 0 : i32
    return %c0_i32, %c0_i32_0, %c0_i32_1 : i32, i32, i32
  }
  func.func @transform_10(%arg0: i32) -> (i32, i32) {
    %c0_i32 = arith.constant 0 : i32
    %c0_i32_0 = arith.constant 0 : i32
    %c0_i32_1 = arith.constant 0 : i32
    return %c0_i32, %c0_i32_0 : i32, i32
  }
  func.func @transform_11(%arg0: i32) -> (i32, i32) {
    %c0_i32 = arith.constant 0 : i32
    %c0_i32_0 = arith.constant 0 : i32
    %c0_i32_1 = arith.constant 0 : i32
    return %c0_i32, %c0_i32_0 : i32, i32
  }
  func.func @transform_12(%arg0: i32) -> (i32, i32) {
    %c0_i32 = arith.constant 0 : i32
    %c0_i32_0 = arith.constant 0 : i32
    %c0_i32_1 = arith.constant 0 : i32
    return %c0_i32, %c0_i32_0 : i32, i32
  }
  func.func @transform_13(%arg0: i32) -> (i32, i32) {
    %c0_i32 = arith.constant 0 : i32
    %c0_i32_0 = arith.constant 0 : i32
    %c0_i32_1 = arith.constant 0 : i32
    return %c0_i32, %c0_i32_0 : i32, i32
  }
  func.func @transform_14(%arg0: i32) -> (i32, i32) {
    %c0_i32 = arith.constant 0 : i32
    %c0_i32_0 = arith.constant 0 : i32
    %c0_i32_1 = arith.constant 0 : i32
    return %c0_i32, %c0_i32_0 : i32, i32
  }
  func.func @transform_15(%arg0: i32) -> (i32, i32) {
    %c0_i32 = arith.constant 0 : i32
    %c0_i32_0 = arith.constant 0 : i32
    return %arg0, %c0_i32 : i32, i32
  }
}

</mosaic_0001>

<llo_original>
// kernel: lenet_forward.1
$region0: #{lenet_forward.1}
  #allocation0 [shape = 'u32[]', space=smem, size = 0x4, offset = 0x4, fixed_abs, tag = 'smem constant byte address 0x4 - core index']
  #allocation1 [shape = 'u32[144,128]{1,0:T(1,128)}', space=vmem, size = 0x12000, scoped, tag = 'internal scratch']
  #allocation2 [shape = 'bf16[136,128]{1,0:T(8,128)(2,1)}', space=vmem, size = 0x8800, scoped, tag = 'scratch operand']
  %s0 = inlined_call_operand.vmem [shape: bf16[528,128], index: 0, kind: input, shape index: {}]
  %s1 = inlined_call_operand.vmem [shape: bf16[5,128,256], index: 1, kind: input, shape index: {}]
  %s2 = inlined_call_operand.vmem [shape: f32[1,256], index: 2, kind: input, shape index: {}]
  %s3 = inlined_call_operand.vmem [shape: bf16[136,256], index: 3, kind: input, shape index: {}]
  %s4 = inlined_call_operand.vmem [shape: bf16[256,128], index: 4, kind: input, shape index: {}]
  %s5 = inlined_call_operand.vmem [shape: bf16[5,128,256], index: 5, kind: input, shape index: {}]
  %s6 = inlined_call_operand.vmem [shape: f32[1,256], index: 6, kind: input, shape index: {}]
  %s7 = inlined_call_operand.vmem [shape: bf16[40,128], index: 7, kind: input, shape index: {}]
  %s8 = inlined_call_operand.vmem [shape: bf16[256,128], index: 8, kind: input, shape index: {}]
  %s9 = inlined_call_operand.vmem [shape: bf16[5,128,128], index: 9, kind: input, shape index: {}]
  %s10 = inlined_call_operand.vmem [shape: f32[1,128], index: 10, kind: input, shape index: {}]
  %s11 = inlined_call_operand.vmem [shape: bf16[128,128], index: 11, kind: input, shape index: {}]
  %s12 = inlined_call_operand.vmem [shape: f32[1,128], index: 12, kind: input, shape index: {}]
  %s13 = inlined_call_operand.vmem [shape: bf16[128,128], index: 13, kind: input, shape index: {}]
  %s14 = inlined_call_operand.vmem [shape: f32[1,128], index: 14, kind: input, shape index: {}]
  %s15 = inlined_call_operand.hbm [shape: f32[16,128], index: 15, kind: output, shape index: {}]
  %s16 = sld [smem:[#allocation0]]
  $region93: #{lenet_forward.1} parent=0
    _
  %s18 = ssub.s32 1, %s16
  %s19 = scalar_select 0, %s18, %s16
  $region1: #{lenet_forward.1} parent=0
    #allocation3 [shape = 'u8[8192]{0}', space=vmem, size = 0x2000, scoped, tag = 'output window, operand 0']
    #allocation4 [shape = 's32[2]{0}', space=sflag, size = 0x8, scoped, tag = 'scoped memory for lenet_forward.1']
    %20 = vsyncpa [#allocation4], 0
    %s21 = scalar_lea.sflag [#allocation4], 1
    %22 = vsyncpa %s21, 0
    loop: start=0, step=1, limit=4
    $region2: #{lenet_forward.1} parent=1 // loop_pre_header
      _
    $region3: #{lenet_forward.1} parent=1 // loop_header
      %s24 = sphi 0, %s28
      %p25 = scmp.ge.s32.totalorder %s24, 4
      %s34 = sphi 0, %s36
      %s37 = sphi 0, %s34
      %s38 = sphi 0, %s37
      %s54 = sphi 0, %s38
      %s58 = sphi 0, %s58
      %s60 = sphi 0, %s58
      %s61 = sphi 0, %s60
      %s75 = sphi 0, %s61
      %s79 = sphi 0, %s79
      %s81 = sphi 0, %s79
      %s82 = sphi 0, %s81
      %s96 = sphi 0, %s82
      %s100 = sphi 0, %s100
      %s102 = sphi 0, %s100
      %s103 = sphi 0, %s102
      %s117 = sphi 0, %s103
      %s121 = sphi 0, %s121
      %s123 = sphi 0, %s121
      %s124 = sphi 0, %s123
      %s138 = sphi 0, %s124
      %s142 = sphi 0, %s142
      %s144 = sphi 0, %s142
      %s145 = sphi 0, %s144
      %s159 = sphi 0, %s145
      %s163 = sphi 0, %s163
      %s165 = sphi 0, %s163
      %s166 = sphi 0, %s165
      %s180 = sphi 0, %s166
      %s184 = sphi 0, %s184
      %s186 = sphi 0, %s184
      %s187 = sphi 0, %s186
      %s201 = sphi 0, %s187
      %s205 = sphi 0, %s205
      %s207 = sphi 0, %s205
      %s208 = sphi 0, %s207
      %s222 = sphi 0, %s208
      %s226 = sphi 0, %s226
      %s228 = sphi 0, %s226
      %s229 = sphi 0, %s228
      %s243 = sphi 0, %s229
      %s247 = sphi 0, %s247
      %s249 = sphi 0, %s247
      %s250 = sphi 0, %s249
      %s264 = sphi 0, %s250
      %s268 = sphi 0, %s268
      %s270 = sphi 0, %s268
      %s271 = sphi 0, %s270
      %s285 = sphi 0, %s271
      %s289 = sphi 0, %s289
      %s291 = sphi 0, %s289
      %s292 = sphi 0, %s291
      %s306 = sphi 0, %s292
      %s310 = sphi 0, %s310
      %s312 = sphi 0, %s310
      %s313 = sphi 0, %s312
      %s327 = sphi 0, %s313
      %s331 = sphi 0, %s331
      %s333 = sphi 0, %s331
      %s334 = sphi 0, %s333
      %s348 = sphi 0, %s334
      %s354 = sphi 0, %s356
      %s357 = sphi 0, %s354
      %s358 = sphi 0, %s357
      %s374 = sphi 0, %s358
    $region4: #{lenet_forward.1} parent=1 // loop_header_branch
      %27 = sbr.rel (%p25) target = $region8
    $region5: #{lenet_forward.1} parent=1 // loop_body
      %s29 = ssub.s32 %s24, 1
      %s30 = ssub.s32 %s24, 2
      %s31 = sadd.s32 %s24, 1
      %s32 = ssub.s32 %s24, %s31
      %p33 = scmp.eq.s32.totalorder %s32, 0
      %s35 = sadd.s32 %s34, 1
      %s36 = scalar_select %p33, %s34, %s35
      %p39 = pneg %p33
      %p40 = scmp.eq.s32.totalorder %s24, 1
      %p41 = por %p39, %p40
      %p42 = scmp.ne.s32.totalorder %s34, %s37
      %p43 = scmp.eq.s32.totalorder %s24, 0
      %p44 = por %p42, %p43
      %p45 = scmp.ne.s32.totalorder %s34, %s37
      %p46 = scmp.eq.s32.totalorder %s29, 1
      %p47 = por %p45, %p46
      %p48 = scmp.ne.s32.totalorder %s37, %s38
      %p49 = scmp.eq.s32.totalorder %s29, 0
      %p50 = por %p48, %p49
      %p51 = scmp.ne.s32.totalorder %s37, %s38
      %p52 = scmp.eq.s32.totalorder %s30, 1
      %p53 = por %p51, %p52
      %p55 = scmp.ne.s32.totalorder %s38, %s54
      %p56 = scmp.eq.s32.totalorder %s30, 0
      %p57 = por %p55, %p56
      %s59 = sadd.s32 %s58, 1
      %p62 = scmp.eq.s32.totalorder %s24, 1
      %p63 = scmp.ne.s32.totalorder %s58, %s60
      %p64 = scmp.eq.s32.totalorder %s24, 0
      %p65 = por %p63, %p64
      %p66 = scmp.ne.s32.totalorder %s58, %s60
      %p67 = scmp.eq.s32.totalorder %s29, 1
      %p68 = por %p66, %p67
      %p69 = scmp.ne.s32.totalorder %s60, %s61
      %p70 = scmp.eq.s32.totalorder %s29, 0
      %p71 = por %p69, %p70
      %p72 = scmp.ne.s32.totalorder %s60, %s61
      %p73 = scmp.eq.s32.totalorder %s30, 1
      %p74 = por %p72, %p73
      %p76 = scmp.ne.s32.totalorder %s61, %s75
      %p77 = scmp.eq.s32.totalorder %s30, 0
      %p78 = por %p76, %p77
      %s80 = sadd.s32 %s79, 1
      %p83 = scmp.eq.s32.totalorder %s24, 1
      %p84 = scmp.ne.s32.totalorder %s79, %s81
      %p85 = scmp.eq.s32.totalorder %s24, 0
      %p86 = por %p84, %p85
      %p87 = scmp.ne.s32.totalorder %s79, %s81
      %p88 = scmp.eq.s32.totalorder %s29, 1
      %p89 = por %p87, %p88
      %p90 = scmp.ne.s32.totalorder %s81, %s82
      %p91 = scmp.eq.s32.totalorder %s29, 0
      %p92 = por %p90, %p91
      %p93 = scmp.ne.s32.totalorder %s81, %s82
      %p94 = scmp.eq.s32.totalorder %s30, 1
      %p95 = por %p93, %p94
      %p97 = scmp.ne.s32.totalorder %s82, %s96
      %p98 = scmp.eq.s32.totalorder %s30, 0
      %p99 = por %p97, %p98
      %s101 = sadd.s32 %s100, 1
      %p104 = scmp.eq.s32.totalorder %s24, 1
      %p105 = scmp.ne.s32.totalorder %s100, %s102
      %p106 = scmp.eq.s32.totalorder %s24, 0
      %p107 = por %p105, %p106
      %p108 = scmp.ne.s32.totalorder %s100, %s102
      %p109 = scmp.eq.s32.totalorder %s29, 1
      %p110 = por %p108, %p109
      %p111 = scmp.ne.s32.totalorder %s102, %s103
      %p112 = scmp.eq.s32.totalorder %s29, 0
      %p113 = por %p111, %p112
      %p114 = scmp.ne.s32.totalorder %s102, %s103
      %p115 = scmp.eq.s32.totalorder %s30, 1
      %p116 = por %p114, %p115
      %p118 = scmp.ne.s32.totalorder %s103, %s117
      %p119 = scmp.eq.s32.totalorder %s30, 0
      %p120 = por %p118, %p119
      %s122 = sadd.s32 %s121, 1
      %p125 = scmp.eq.s32.totalorder %s24, 1
      %p126 = scmp.ne.s32.totalorder %s121, %s123
      %p127 = scmp.eq.s32.totalorder %s24, 0
      %p128 = por %p126, %p127
      %p129 = scmp.ne.s32.totalorder %s121, %s123
      %p130 = scmp.eq.s32.totalorder %s29, 1
      %p131 = por %p129, %p130
      %p132 = scmp.ne.s32.totalorder %s123, %s124
      %p133 = scmp.eq.s32.totalorder %s29, 0
      %p134 = por %p132, %p133
      %p135 = scmp.ne.s32.totalorder %s123, %s124
      %p136 = scmp.eq.s32.totalorder %s30, 1
      %p137 = por %p135, %p136
      %p139 = scmp.ne.s32.totalorder %s124, %s138
      %p140 = scmp.eq.s32.totalorder %s30, 0
      %p141 = por %p139, %p140
      %s143 = sadd.s32 %s142, 1
      %p146 = scmp.eq.s32.totalorder %s24, 1
      %p147 = scmp.ne.s32.totalorder %s142, %s144
      %p148 = scmp.eq.s32.totalorder %s24, 0
      %p149 = por %p147, %p148
      %p150 = scmp.ne.s32.totalorder %s142, %s144
      %p151 = scmp.eq.s32.totalorder %s29, 1
      %p152 = por %p150, %p151
      %p153 = scmp.ne.s32.totalorder %s144, %s145
      %p154 = scmp.eq.s32.totalorder %s29, 0
      %p155 = por %p153, %p154
      %p156 = scmp.ne.s32.totalorder %s144, %s145
      %p157 = scmp.eq.s32.totalorder %s30, 1
      %p158 = por %p156, %p157
      %p160 = scmp.ne.s32.totalorder %s145, %s159
      %p161 = scmp.eq.s32.totalorder %s30, 0
      %p162 = por %p160, %p161
      %s164 = sadd.s32 %s163, 1
      %p167 = scmp.eq.s32.totalorder %s24, 1
      %p168 = scmp.ne.s32.totalorder %s163, %s165
      %p169 = scmp.eq.s32.totalorder %s24, 0
      %p170 = por %p168, %p169
      %p171 = scmp.ne.s32.totalorder %s163, %s165
      %p172 = scmp.eq.s32.totalorder %s29, 1
      %p173 = por %p171, %p172
      %p174 = scmp.ne.s32.totalorder %s165, %s166
      %p175 = scmp.eq.s32.totalorder %s29, 0
      %p176 = por %p174, %p175
      %p177 = scmp.ne.s32.totalorder %s165, %s166
      %p178 = scmp.eq.s32.totalorder %s30, 1
      %p179 = por %p177, %p178
      %p181 = scmp.ne.s32.totalorder %s166, %s180
      %p182 = scmp.eq.s32.totalorder %s30, 0
      %p183 = por %p181, %p182
      %s185 = sadd.s32 %s184, 1
      %p188 = scmp.eq.s32.totalorder %s24, 1
      %p189 = scmp.ne.s32.totalorder %s184, %s186
      %p190 = scmp.eq.s32.totalorder %s24, 0
      %p191 = por %p189, %p190
      %p192 = scmp.ne.s32.totalorder %s184, %s186
      %p193 = scmp.eq.s32.totalorder %s29, 1
      %p194 = por %p192, %p193
      %p195 = scmp.ne.s32.totalorder %s186, %s187
      %p196 = scmp.eq.s32.totalorder %s29, 0
      %p197 = por %p195, %p196
      %p198 = scmp.ne.s32.totalorder %s186, %s187
      %p199 = scmp.eq.s32.totalorder %s30, 1
      %p200 = por %p198, %p199
      %p202 = scmp.ne.s32.totalorder %s187, %s201
      %p203 = scmp.eq.s32.totalorder %s30, 0
      %p204 = por %p202, %p203
      %s206 = sadd.s32 %s205, 1
      %p209 = scmp.eq.s32.totalorder %s24, 1
      %p210 = scmp.ne.s32.totalorder %s205, %s207
      %p211 = scmp.eq.s32.totalorder %s24, 0
      %p212 = por %p210, %p211
      %p213 = scmp.ne.s32.totalorder %s205, %s207
      %p214 = scmp.eq.s32.totalorder %s29, 1
      %p215 = por %p213, %p214
      %p216 = scmp.ne.s32.totalorder %s207, %s208
      %p217 = scmp.eq.s32.totalorder %s29, 0
      %p218 = por %p216, %p217
      %p219 = scmp.ne.s32.totalorder %s207, %s208
      %p220 = scmp.eq.s32.totalorder %s30, 1
      %p221 = por %p219, %p220
      %p223 = scmp.ne.s32.totalorder %s208, %s222
      %p224 = scmp.eq.s32.totalorder %s30, 0
      %p225 = por %p223, %p224
      %s227 = sadd.s32 %s226, 1
      %p230 = scmp.eq.s32.totalorder %s24, 1
      %p231 = scmp.ne.s32.totalorder %s226, %s228
      %p232 = scmp.eq.s32.totalorder %s24, 0
      %p233 = por %p231, %p232
      %p234 = scmp.ne.s32.totalorder %s226, %s228
      %p235 = scmp.eq.s32.totalorder %s29, 1
      %p236 = por %p234, %p235
      %p237 = scmp.ne.s32.totalorder %s228, %s229
      %p238 = scmp.eq.s32.totalorder %s29, 0
      %p239 = por %p237, %p238
      %p240 = scmp.ne.s32.totalorder %s228, %s229
      %p241 = scmp.eq.s32.totalorder %s30, 1
      %p242 = por %p240, %p241
      %p244 = scmp.ne.s32.totalorder %s229, %s243
      %p245 = scmp.eq.s32.totalorder %s30, 0
      %p246 = por %p244, %p245
      %s248 = sadd.s32 %s247, 1
      %p251 = scmp.eq.s32.totalorder %s24, 1
      %p252 = scmp.ne.s32.totalorder %s247, %s249
      %p253 = scmp.eq.s32.totalorder %s24, 0
      %p254 = por %p252, %p253
      %p255 = scmp.ne.s32.totalorder %s247, %s249
      %p256 = scmp.eq.s32.totalorder %s29, 1
      %p257 = por %p255, %p256
      %p258 = scmp.ne.s32.totalorder %s249, %s250
      %p259 = scmp.eq.s32.totalorder %s29, 0
      %p260 = por %p258, %p259
      %p261 = scmp.ne.s32.totalorder %s249, %s250
      %p262 = scmp.eq.s32.totalorder %s30, 1
      %p263 = por %p261, %p262
      %p265 = scmp.ne.s32.totalorder %s250, %s264
      %p266 = scmp.eq.s32.totalorder %s30, 0
      %p267 = por %p265, %p266
      %s269 = sadd.s32 %s268, 1
      %p272 = scmp.eq.s32.totalorder %s24, 1
      %p273 = scmp.ne.s32.totalorder %s268, %s270
      %p274 = scmp.eq.s32.totalorder %s24, 0
      %p275 = por %p273, %p274
      %p276 = scmp.ne.s32.totalorder %s268, %s270
      %p277 = scmp.eq.s32.totalorder %s29, 1
      %p278 = por %p276, %p277
      %p279 = scmp.ne.s32.totalorder %s270, %s271
      %p280 = scmp.eq.s32.totalorder %s29, 0
      %p281 = por %p279, %p280
      %p282 = scmp.ne.s32.totalorder %s270, %s271
      %p283 = scmp.eq.s32.totalorder %s30, 1
      %p284 = por %p282, %p283
      %p286 = scmp.ne.s32.totalorder %s271, %s285
      %p287 = scmp.eq.s32.totalorder %s30, 0
      %p288 = por %p286, %p287
      %s290 = sadd.s32 %s289, 1
      %p293 = scmp.eq.s32.totalorder %s24, 1
      %p294 = scmp.ne.s32.totalorder %s289, %s291
      %p295 = scmp.eq.s32.totalorder %s24, 0
      %p296 = por %p294, %p295
      %p297 = scmp.ne.s32.totalorder %s289, %s291
      %p298 = scmp.eq.s32.totalorder %s29, 1
      %p299 = por %p297, %p298
      %p300 = scmp.ne.s32.totalorder %s291, %s292
      %p301 = scmp.eq.s32.totalorder %s29, 0
      %p302 = por %p300, %p301
      %p303 = scmp.ne.s32.totalorder %s291, %s292
      %p304 = scmp.eq.s32.totalorder %s30, 1
      %p305 = por %p303, %p304
      %p307 = scmp.ne.s32.totalorder %s292, %s306
      %p308 = scmp.eq.s32.totalorder %s30, 0
      %p309 = por %p307, %p308
      %s311 = sadd.s32 %s310, 1
      %p314 = scmp.eq.s32.totalorder %s24, 1
      %p315 = scmp.ne.s32.totalorder %s310, %s312
      %p316 = scmp.eq.s32.totalorder %s24, 0
      %p317 = por %p315, %p316
      %p318 = scmp.ne.s32.totalorder %s310, %s312
      %p319 = scmp.eq.s32.totalorder %s29, 1
      %p320 = por %p318, %p319
      %p321 = scmp.ne.s32.totalorder %s312, %s313
      %p322 = scmp.eq.s32.totalorder %s29, 0
      %p323 = por %p321, %p322
      %p324 = scmp.ne.s32.totalorder %s312, %s313
      %p325 = scmp.eq.s32.totalorder %s30, 1
      %p326 = por %p324, %p325
      %p328 = scmp.ne.s32.totalorder %s313, %s327
      %p329 = scmp.eq.s32.totalorder %s30, 0
      %p330 = por %p328, %p329
      %s332 = sadd.s32 %s331, 1
      %p335 = scmp.eq.s32.totalorder %s24, 1
      %p336 = scmp.ne.s32.totalorder %s331, %s333
      %p337 = scmp.eq.s32.totalorder %s24, 0
      %p338 = por %p336, %p337
      %p339 = scmp.ne.s32.totalorder %s331, %s333
      %p340 = scmp.eq.s32.totalorder %s29, 1
      %p341 = por %p339, %p340
      %p342 = scmp.ne.s32.totalorder %s333, %s334
      %p343 = scmp.eq.s32.totalorder %s29, 0
      %p344 = por %p342, %p343
      %p345 = scmp.ne.s32.totalorder %s333, %s334
      %p346 = scmp.eq.s32.totalorder %s30, 1
      %p347 = por %p345, %p346
      %p349 = scmp.ne.s32.totalorder %s334, %s348
      %p350 = scmp.eq.s32.totalorder %s30, 0
      %p351 = por %p349, %p350
      %s352 = ssub.s32 %s24, %s31
      %p353 = scmp.eq.s32.totalorder %s352, 0
      %s355 = sadd.s32 %s354, 1
      %s356 = scalar_select %p353, %s354, %s355
      %p359 = pneg %p353
      %p360 = scmp.eq.s32.totalorder %s24, 1
      %p361 = por %p359, %p360
      %p362 = scmp.ne.s32.totalorder %s354, %s357
      %p363 = scmp.eq.s32.totalorder %s24, 0
      %p364 = por %p362, %p363
      %p365 = scmp.ne.s32.totalorder %s354, %s357
      %p366 = scmp.eq.s32.totalorder %s29, 1
      %p367 = por %p365, %p366
      %p368 = scmp.ne.s32.totalorder %s357, %s358
      %p369 = scmp.eq.s32.totalorder %s29, 0
      %p370 = por %p368, %p369
      %p371 = scmp.ne.s32.totalorder %s357, %s358
      %p372 = scmp.eq.s32.totalorder %s30, 1
      %p373 = por %p371, %p372
      %p375 = scmp.ne.s32.totalorder %s358, %s374
      %p376 = scmp.eq.s32.totalorder %s30, 0
      %p377 = por %p375, %p376
      %p378 = scmp.le.s32.totalorder 1, %s24
      %p379 = scmp.lt.s32.totalorder %s24, 3
      %p380 = pnand %p378, %p379
      %p381 = pneg %p380
      // Predicated region
      $region9: #{lenet_forward.1} parent=5 // pred_check
        _
      $region10: #{lenet_forward.1} parent=5 // pred_check_branch
        %383 = sbr.rel (%p380) target = $region12
      $region11: #{lenet_forward.1} parent=5 // pred_region
        %s384 = ssub.s32 %s24, 1
        // Predicated region
        $region13: #{lenet_forward.1} parent=11 // pred_check
          %p385 = pneg %p71
        $region14: #{lenet_forward.1} parent=11 // pred_check_branch
          %387 = sbr.rel (%p385) target = $region16
        $region15: #{lenet_forward.1} parent=11 // pred_region
          _
        $region16: #{lenet_forward.1} parent=11 // pred_fallthru
          _
        // Predicated region
        $region17: #{lenet_forward.1} parent=11 // pred_check
          %p388 = pneg %p92
        $region18: #{lenet_forward.1} parent=11 // pred_check_branch
          %390 = sbr.rel (%p388) target = $region20
        $region19: #{lenet_forward.1} parent=11 // pred_region
          _
        $region20: #{lenet_forward.1} parent=11 // pred_fallthru
          _
        // Predicated region
        $region21: #{lenet_forward.1} parent=11 // pred_check
          %p391 = pneg %p113
        $region22: #{lenet_forward.1} parent=11 // pred_check_branch
          %393 = sbr.rel (%p391) target = $region24
        $region23: #{lenet_forward.1} parent=11 // pred_region
          _
        $region24: #{lenet_forward.1} parent=11 // pred_fallthru
          _
        // Predicated region
        $region25: #{lenet_forward.1} parent=11 // pred_check
          %p394 = pneg %p134
        $region26: #{lenet_forward.1} parent=11 // pred_check_branch
          %396 = sbr.rel (%p394) target = $region28
        $region27: #{lenet_forward.1} parent=11 // pred_region
          _
        $region28: #{lenet_forward.1} parent=11 // pred_fallthru
          _
        // Predicated region
        $region29: #{lenet_forward.1} parent=11 // pred_check
          %p397 = pneg %p155
        $region30: #{lenet_forward.1} parent=11 // pred_check_branch
          %399 = sbr.rel (%p397) target = $region32
        $region31: #{lenet_forward.1} parent=11 // pred_region
          _
        $region32: #{lenet_forward.1} parent=11 // pred_fallthru
          _
        // Predicated region
        $region33: #{lenet_forward.1} parent=11 // pred_check
          %p400 = pneg %p176
        $region34: #{lenet_forward.1} parent=11 // pred_check_branch
          %402 = sbr.rel (%p400) target = $region36
        $region35: #{lenet_forward.1} parent=11 // pred_region
          _
        $region36: #{lenet_forward.1} parent=11 // pred_fallthru
          _
        // Predicated region
        $region37: #{lenet_forward.1} parent=11 // pred_check
          %p403 = pneg %p197
        $region38: #{lenet_forward.1} parent=11 // pred_check_branch
          %405 = sbr.rel (%p403) target = $region40
        $region39: #{lenet_forward.1} parent=11 // pred_region
          _
        $region40: #{lenet_forward.1} parent=11 // pred_fallthru
          _
        // Predicated region
        $region41: #{lenet_forward.1} parent=11 // pred_check
          %p406 = pneg %p218
        $region42: #{lenet_forward.1} parent=11 // pred_check_branch
          %408 = sbr.rel (%p406) target = $region44
        $region43: #{lenet_forward.1} parent=11 // pred_region
          _
        $region44: #{lenet_forward.1} parent=11 // pred_fallthru
          _
        // Predicated region
        $region45: #{lenet_forward.1} parent=11 // pred_check
          %p409 = pneg %p239
        $region46: #{lenet_forward.1} parent=11 // pred_check_branch
          %411 = sbr.rel (%p409) target = $region48
        $region47: #{lenet_forward.1} parent=11 // pred_region
          _
        $region48: #{lenet_forward.1} parent=11 // pred_fallthru
          _
        // Predicated region
        $region49: #{lenet_forward.1} parent=11 // pred_check
          %p412 = pneg %p260
        $region50: #{lenet_forward.1} parent=11 // pred_check_branch
          %414 = sbr.rel (%p412) target = $region52
        $region51: #{lenet_forward.1} parent=11 // pred_region
          _
        $region52: #{lenet_forward.1} parent=11 // pred_fallthru
          _
        // Predicated region
        $region53: #{lenet_forward.1} parent=11 // pred_check
          %p415 = pneg %p281
        $region54: #{lenet_forward.1} parent=11 // pred_check_branch
          %417 = sbr.rel (%p415) target = $region56
        $region55: #{lenet_forward.1} parent=11 // pred_region
          _
        $region56: #{lenet_forward.1} parent=11 // pred_fallthru
          _
        // Predicated region
        $region57: #{lenet_forward.1} parent=11 // pred_check
          %p418 = pneg %p302
        $region58: #{lenet_forward.1} parent=11 // pred_check_branch
          %420 = sbr.rel (%p418) target = $region60
        $region59: #{lenet_forward.1} parent=11 // pred_region
          _
        $region60: #{lenet_forward.1} parent=11 // pred_fallthru
          _
        // Predicated region
        $region61: #{lenet_forward.1} parent=11 // pred_check
          %p421 = pneg %p323
        $region62: #{lenet_forward.1} parent=11 // pred_check_branch
          %423 = sbr.rel (%p421) target = $region64
        $region63: #{lenet_forward.1} parent=11 // pred_region
          _
        $region64: #{lenet_forward.1} parent=11 // pred_fallthru
          _
        // Predicated region
        $region65: #{lenet_forward.1} parent=11 // pred_check
          %p424 = pneg %p344
        $region66: #{lenet_forward.1} parent=11 // pred_check_branch
          %426 = sbr.rel (%p424) target = $region68
        $region67: #{lenet_forward.1} parent=11 // pred_region
          _
        $region68: #{lenet_forward.1} parent=11 // pred_fallthru
          _
      $region12: #{lenet_forward.1} parent=5 // pred_fallthru
        _
      %p427 = scmp.lt.s32.totalorder %s24, 2
      // Predicated region
      $region69: #{lenet_forward.1} parent=5 // pred_check
        %p428 = pneg %p427
      $region70: #{lenet_forward.1} parent=5 // pred_check_branch
        %430 = sbr.rel (%p428) target = $region72
      $region71: #{lenet_forward.1} parent=5 // pred_region
        // Predicated region
        $region73: #{lenet_forward.1} parent=71 // pred_check
          %p431 = pneg %p44
        $region74: #{lenet_forward.1} parent=71 // pred_check_branch
          %433 = sbr.rel (%p431) target = $region76
        $region75: #{lenet_forward.1} parent=71 // pred_region
          %s434 = smul.u32 33, %s24
          %p435 = scmp.lt.s32.totalorder %s434, 65
          %s436 = scalar_select %p435, %s434, 65
          %s437 = smul.addr %s436, 4
          %s438 = scalar_lea.vmem %s0, %s437
          %s439 = smul.u32 33, %s24
        $region76: #{lenet_forward.1} parent=71 // pred_fallthru
          _
      $region72: #{lenet_forward.1} parent=5 // pred_fallthru
        _
      %p440 = scmp.le.s32.totalorder 1, %s24
      %p441 = scmp.lt.s32.totalorder %s24, 3
      %p442 = pnand %p440, %p441
      %p443 = pneg %p442
      // Predicated region
      $region77: #{lenet_forward.1} parent=5 // pred_check
        _
      $region78: #{lenet_forward.1} parent=5 // pred_check_branch
        %445 = sbr.rel (%p442) target = $region80
      $region79: #{lenet_forward.1} parent=5 // pred_region
        %s446 = ssub.s32 %s24, 1
        %s447 = smul.u32 33, %s29
        %p448 = scmp.lt.s32.totalorder %s447, 65
        %s449 = scalar_select %p448, %s447, 65
        %s450 = smul.addr %s449, 4
        %s451 = scalar_lea.vmem %s0, %s450
        %p452 = pneg %p50
        %p453 = pneg %p47
        %p454 = pneg %p71
        %p455 = pneg %p68
        %p456 = pneg %p92
        %p457 = pneg %p89
        %p458 = pneg %p113
        %p459 = pneg %p110
        %p460 = pneg %p134
        %p461 = pneg %p131
        %p462 = pneg %p155
        %p463 = pneg %p152
        %p464 = pneg %p176
        %p465 = pneg %p173
        %p466 = pneg %p197
        %p467 = pneg %p194
        %p468 = pneg %p218
        %p469 = pneg %p215
        %p470 = pneg %p239
        %p471 = pneg %p236
        %p472 = pneg %p260
        %p473 = pneg %p257
        %p474 = pneg %p281
        %p475 = pneg %p278
        %p476 = pneg %p302
        %p477 = pneg %p299
        %p478 = pneg %p323
        %p479 = pneg %p320
        %p480 = pneg %p344
        %p481 = pneg %p341
        %p482 = pneg %p370
        %p483 = pneg %p367
        %s484 = sand.u32 %s357, 1
        %s485 = scalar_lea.sflag [#allocation4], %s484
        %s486 = sand.u32 %s357, 1
        %s487 = smul.addr %s486, 8
        %s488 = scalar_lea.vmem [#allocation3], %s487
        %s489 = smul.u32 33, %s29
        %p490 = scmp.lt.s32.totalorder %s489, 65
        %s491 = scalar_select %p490, %s489, 65
        %s492 = smul.addr %s491, 4
        %s493 = scalar_lea.vmem %s0, %s492
        %s494 = smul.u32 33, %s29
        %v496 = vld [vmem:[%s493] sm:$0xf]
        %v497 = vld [vmem:[%s493 + $0x4] sm:$0xf]
        %v498 = vld [vmem:[%s493 + $0x8] sm:$0xf]
        %v499 = vld [vmem:[%s493 + $0xc] sm:$0xf]
        %v500 = vld [vmem:[%s493 + $0x10] sm:$0xf]
        %v501 = vld [vmem:[%s493 + $0x14] sm:$0xf]
        %v502 = vld [vmem:[%s493 + $0x18] sm:$0xf]
        %v503 = vld [vmem:[%s493 + $0x1c] sm:$0xf]
        %v504 = vld [vmem:[%s493 + $0x20] sm:$0xf]
        %v505 = vld [vmem:[%s493 + $0x24] sm:$0xf]
        %v506 = vld [vmem:[%s493 + $0x28] sm:$0xf]
        %v507 = vld [vmem:[%s493 + $0x2c] sm:$0xf]
        %v508 = vld [vmem:[%s493 + $0x30] sm:$0xf]
        %v509 = vld [vmem:[%s493 + $0x34] sm:$0xf]
        %v510 = vld [vmem:[%s493 + $0x38] sm:$0xf]
        %v511 = vld [vmem:[%s493 + $0x3c] sm:$0xf]
        %v512 = vld [vmem:[%s493 + $0x40] sm:$0xf]
        %v513 = vld [vmem:[%s493 + $0x44] sm:$0xf]
        %v514 = vld [vmem:[%s493 + $0x48] sm:$0xf]
        %v515 = vld [vmem:[%s493 + $0x4c] sm:$0xf]
        %v516 = vld [vmem:[%s493 + $0x50] sm:$0xf]
        %v517 = vld [vmem:[%s493 + $0x54] sm:$0xf]
        %v518 = vld [vmem:[%s493 + $0x58] sm:$0xf]
        %v519 = vld [vmem:[%s493 + $0x5c] sm:$0xf]
        %v520 = vld [vmem:[%s493 + $0x60] sm:$0xf]
        %v521 = vld [vmem:[%s493 + $0x64] sm:$0xf]
        %v522 = vld [vmem:[%s493 + $0x68] sm:$0xf]
        %v523 = vld [vmem:[%s493 + $0x6c] sm:$0xf]
        %v524 = vld [vmem:[%s493 + $0x70] sm:$0xf]
        %v525 = vld [vmem:[%s493 + $0x74] sm:$0xf]
        %v526 = vld [vmem:[%s493 + $0x78] sm:$0xf]
        %v527 = vld [vmem:[%s493 + $0x7c] sm:$0xf]
        %v528 = vld [vmem:[%s1] sm:$0xff]
        %v529 = vld [vmem:[%s1 + $0x8] sm:$0xff]
        %v530 = vld [vmem:[%s1 + $0x10] sm:$0xff]
        %v531 = vld [vmem:[%s1 + $0x18] sm:$0xff]
        %v532 = vld [vmem:[%s1 + $0x20] sm:$0xff]
        %v533 = vld [vmem:[%s1 + $0x28] sm:$0xff]
        %v534 = vld [vmem:[%s1 + $0x30] sm:$0xff]
        %v535 = vld [vmem:[%s1 + $0x38] sm:$0xff]
        %v536 = vld [vmem:[%s1 + $0x40] sm:$0xff]
        %v537 = vld [vmem:[%s1 + $0x48] sm:$0xff]
        %v538 = vld [vmem:[%s1 + $0x50] sm:$0xff]
        %v539 = vld [vmem:[%s1 + $0x58] sm:$0xff]
        %v540 = vld [vmem:[%s1 + $0x60] sm:$0xff]
        %v541 = vld [vmem:[%s1 + $0x68] sm:$0xff]
        %v542 = vld [vmem:[%s1 + $0x70] sm:$0xff]
        %v543 = vld [vmem:[%s1 + $0x78] sm:$0xff]
        %v544 = vld [vmem:[%s493] sm:$0xf]
        %v545 = vld [vmem:[%s493 + $0x4] sm:$0xf]
        %v546 = vld [vmem:[%s493 + $0x8] sm:$0xf]
        %v547 = vld [vmem:[%s493 + $0xc] sm:$0xf]
        %v548 = vld [vmem:[%s493 + $0x10] sm:$0xf]
        %v549 = vld [vmem:[%s493 + $0x14] sm:$0xf]
        %v550 = vld [vmem:[%s493 + $0x18] sm:$0xf]
        %v551 = vld [vmem:[%s493 + $0x1c] sm:$0xf]
        %v552 = vld [vmem:[%s493 + $0x20] sm:$0xf]
        %v553 = vld [vmem:[%s493 + $0x24] sm:$0xf]
        %v554 = vld [vmem:[%s493 + $0x28] sm:$0xf]
        %v555 = vld [vmem:[%s493 + $0x2c] sm:$0xf]
        %v556 = vld [vmem:[%s493 + $0x30] sm:$0xf]
        %v557 = vld [vmem:[%s493 + $0x34] sm:$0xf]
        %v558 = vld [vmem:[%s493 + $0x38] sm:$0xf]
        %v559 = vld [vmem:[%s493 + $0x3c] sm:$0xf]
        %v560 = vld [vmem:[%s493 + $0x40] sm:$0xf]
        %v561 = vld [vmem:[%s493 + $0x44] sm:$0xf]
        %v562 = vld [vmem:[%s493 + $0x48] sm:$0xf]
        %v563 = vld [vmem:[%s493 + $0x4c] sm:$0xf]
        %v564 = vld [vmem:[%s493 + $0x50] sm:$0xf]
        %v565 = vld [vmem:[%s493 + $0x54] sm:$0xf]
        %v566 = vld [vmem:[%s493 + $0x58] sm:$0xf]
        %v567 = vld [vmem:[%s493 + $0x5c] sm:$0xf]
        %v568 = vld [vmem:[%s493 + $0x60] sm:$0xf]
        %v569 = vld [vmem:[%s493 + $0x64] sm:$0xf]
        %v570 = vld [vmem:[%s493 + $0x68] sm:$0xf]
        %v571 = vld [vmem:[%s493 + $0x6c] sm:$0xf]
        %v572 = vld [vmem:[%s493 + $0x70] sm:$0xf]
        %v573 = vld [vmem:[%s493 + $0x74] sm:$0xf]
        %v574 = vld [vmem:[%s493 + $0x78] sm:$0xf]
        %v575 = vld [vmem:[%s493 + $0x7c] sm:$0xf]
        %v576 = vld [vmem:[%s493 + $0x80] sm:$0x1]
        %s577 = scalar_lea.vmem %s1, 128
        %v578 = vld [vmem:[%s577] sm:$0xff]
        %v579 = vld [vmem:[%s577 + $0x8] sm:$0xff]
        %v580 = vld [vmem:[%s577 + $0x10] sm:$0xff]
        %v581 = vld [vmem:[%s577 + $0x18] sm:$0xff]
        %v582 = vld [vmem:[%s577 + $0x20] sm:$0xff]
        %v583 = vld [vmem:[%s577 + $0x28] sm:$0xff]
        %v584 = vld [vmem:[%s577 + $0x30] sm:$0xff]
        %v585 = vld [vmem:[%s577 + $0x38] sm:$0xff]
        %v586 = vld [vmem:[%s577 + $0x40] sm:$0xff]
        %v587 = vld [vmem:[%s577 + $0x48] sm:$0xff]
        %v588 = vld [vmem:[%s577 + $0x50] sm:$0xff]
        %v589 = vld [vmem:[%s577 + $0x58] sm:$0xff]
        %v590 = vld [vmem:[%s577 + $0x60] sm:$0xff]
        %v591 = vld [vmem:[%s577 + $0x68] sm:$0xff]
        %v592 = vld [vmem:[%s577 + $0x70] sm:$0xff]
        %v593 = vld [vmem:[%s577 + $0x78] sm:$0xff]
        %v627 = vunpack.c.l.b16 %v544
        %v628 = vunpack.c.l.b16 %v545
        %v629 = vunpack.c.l.b16 %v546
        %v630 = vunpack.c.l.b16 %v547
        %v631 = vunpack.c.l.b16 %v548
        %v632 = vunpack.c.l.b16 %v549
        %v633 = vunpack.c.l.b16 %v550
        %v634 = vunpack.c.l.b16 %v551
        %v635 = vunpack.c.l.b16 %v552
        %v636 = vunpack.c.l.b16 %v553
        %v637 = vunpack.c.l.b16 %v554
        %v638 = vunpack.c.l.b16 %v555
        %v639 = vunpack.c.l.b16 %v556
        %v640 = vunpack.c.l.b16 %v557
        %v641 = vunpack.c.l.b16 %v558
        %v642 = vunpack.c.l.b16 %v559
        %v643 = vunpack.c.l.b16 %v560
        %v644 = vunpack.c.l.b16 %v561
        %v645 = vunpack.c.l.b16 %v562
        %v646 = vunpack.c.l.b16 %v563
        %v647 = vunpack.c.l.b16 %v564
        %v648 = vunpack.c.l.b16 %v565
        %v649 = vunpack.c.l.b16 %v566
        %v650 = vunpack.c.l.b16 %v567
        %v651 = vunpack.c.l.b16 %v568
        %v652 = vunpack.c.l.b16 %v569
        %v653 = vunpack.c.l.b16 %v570
        %v654 = vunpack.c.l.b16 %v571
        %v655 = vunpack.c.l.b16 %v572
        %v656 = vunpack.c.l.b16 %v573
        %v657 = vunpack.c.l.b16 %v574
        %v658 = vunpack.c.l.b16 %v575
        %v659 = vunpack.c.l.b16 %v576
        %v660 = vpack.c.b16 %v628, %v627
        %v661 = vpack.c.b16 %v630, %v629
        %v662 = vpack.c.b16 %v632, %v631
        %v663 = vpack.c.b16 %v634, %v633
        %v664 = vpack.c.b16 %v636, %v635
        %v665 = vpack.c.b16 %v638, %v637
        %v666 = vpack.c.b16 %v640, %v639
        %v667 = vpack.c.b16 %v642, %v641
        %v668 = vpack.c.b16 %v644, %v643
        %v669 = vpack.c.b16 %v646, %v645
        %v670 = vpack.c.b16 %v648, %v647
        %v671 = vpack.c.b16 %v650, %v649
        %v672 = vpack.c.b16 %v652, %v651
        %v673 = vpack.c.b16 %v654, %v653
        %v674 = vpack.c.b16 %v656, %v655
        %v675 = vpack.c.b16 %v658, %v657
        %v676 = vpack.c.b16 %v659, %v659
        %vm677 = vsmask.f32 7424
        %v679 = vshrl.u32 %v660, 16
        %v681 = vshll.u32 %v660, 16
        %v683 = vrot.slane %v681, 1
        %v684 = vor.u32 %v679, %v683
        %v686 = vshll.u32 %v661, 16
        %v688 = vrot.slane %v686, 1
        %v689 = vsel %vm677, %v684, %v688
        %v690 = vshrl.u32 %v661, 16
        %v692 = vor.u32 %v690, %v688
        %v694 = vshll.u32 %v662, 16
        %v696 = vrot.slane %v694, 1
        %v697 = vsel %vm677, %v692, %v696
        %v698 = vshrl.u32 %v662, 16
        %v700 = vor.u32 %v698, %v696
        %v702 = vshll.u32 %v663, 16
        %v704 = vrot.slane %v702, 1
        %v705 = vsel %vm677, %v700, %v704
        %v706 = vshrl.u32 %v663, 16
        %v708 = vor.u32 %v706, %v704
        %v710 = vshll.u32 %v664, 16
        %v712 = vrot.slane %v710, 1
        %v713 = vsel %vm677, %v708, %v712
        %v714 = vshrl.u32 %v664, 16
        %v716 = vor.u32 %v714, %v712
        %v718 = vshll.u32 %v665, 16
        %v720 = vrot.slane %v718, 1
        %v721 = vsel %vm677, %v716, %v720
        %v722 = vshrl.u32 %v665, 16
        %v724 = vor.u32 %v722, %v720
        %v726 = vshll.u32 %v666, 16
        %v728 = vrot.slane %v726, 1
        %v729 = vsel %vm677, %v724, %v728
        %v730 = vshrl.u32 %v666, 16
        %v732 = vor.u32 %v730, %v728
        %v734 = vshll.u32 %v667, 16
        %v736 = vrot.slane %v734, 1
        %v737 = vsel %vm677, %v732, %v736
        %v738 = vshrl.u32 %v667, 16
        %v740 = vor.u32 %v738, %v736
        %v742 = vshll.u32 %v668, 16
        %v744 = vrot.slane %v742, 1
        %v745 = vsel %vm677, %v740, %v744
        %v746 = vshrl.u32 %v668, 16
        %v748 = vor.u32 %v746, %v744
        %v750 = vshll.u32 %v669, 16
        %v752 = vrot.slane %v750, 1
        %v753 = vsel %vm677, %v748, %v752
        %v754 = vshrl.u32 %v669, 16
        %v756 = vor.u32 %v754, %v752
        %v758 = vshll.u32 %v670, 16
        %v760 = vrot.slane %v758, 1
        %v761 = vsel %vm677, %v756, %v760
        %v762 = vshrl.u32 %v670, 16
        %v764 = vor.u32 %v762, %v760
        %v766 = vshll.u32 %v671, 16
        %v768 = vrot.slane %v766, 1
        %v769 = vsel %vm677, %v764, %v768
        %v770 = vshrl.u32 %v671, 16
        %v772 = vor.u32 %v770, %v768
        %v774 = vshll.u32 %v672, 16
        %v776 = vrot.slane %v774, 1
        %v777 = vsel %vm677, %v772, %v776
        %v778 = vshrl.u32 %v672, 16
        %v780 = vor.u32 %v778, %v776
        %v782 = vshll.u32 %v673, 16
        %v784 = vrot.slane %v782, 1
        %v785 = vsel %vm677, %v780, %v784
        %v786 = vshrl.u32 %v673, 16
        %v788 = vor.u32 %v786, %v784
        %v790 = vshll.u32 %v674, 16
        %v792 = vrot.slane %v790, 1
        %v793 = vsel %vm677, %v788, %v792
        %v794 = vshrl.u32 %v674, 16
        %v796 = vor.u32 %v794, %v792
        %v798 = vshll.u32 %v675, 16
        %v800 = vrot.slane %v798, 1
        %v801 = vsel %vm677, %v796, %v800
        %v802 = vshrl.u32 %v675, 16
        %v804 = vor.u32 %v802, %v800
        %v806 = vshll.u32 %v676, 16
        %v808 = vrot.slane %v806, 1
        %v809 = vsel %vm677, %v804, %v808
        %v842 = vunpack.c.l.b16 %v578
        %v843 = vunpack.c.h.b16 %v578
        %v844 = vunpack.c.l.b16 %v579
        %v845 = vunpack.c.h.b16 %v579
        %v846 = vunpack.c.l.b16 %v580
        %v847 = vunpack.c.h.b16 %v580
        %v848 = vunpack.c.l.b16 %v581
        %v849 = vunpack.c.h.b16 %v581
        %v850 = vunpack.c.l.b16 %v582
        %v851 = vunpack.c.h.b16 %v582
        %v852 = vunpack.c.l.b16 %v583
        %v853 = vunpack.c.h.b16 %v583
        %v854 = vunpack.c.l.b16 %v584
        %v855 = vunpack.c.h.b16 %v584
        %v856 = vunpack.c.l.b16 %v585
        %v857 = vunpack.c.h.b16 %v585
        %v858 = vunpack.c.l.b16 %v586
        %v859 = vunpack.c.h.b16 %v586
        %v860 = vunpack.c.l.b16 %v587
        %v861 = vunpack.c.h.b16 %v587
        %v862 = vunpack.c.l.b16 %v588
        %v863 = vunpack.c.h.b16 %v588
        %v864 = vunpack.c.l.b16 %v589
        %v865 = vunpack.c.h.b16 %v589
        %v866 = vunpack.c.l.b16 %v590
        %v867 = vunpack.c.h.b16 %v590
        %v868 = vunpack.c.l.b16 %v591
        %v869 = vunpack.c.h.b16 %v591
        %v870 = vunpack.c.l.b16 %v592
        %v871 = vunpack.c.h.b16 %v592
        %v872 = vunpack.c.l.b16 %v593
        %v873 = vunpack.c.h.b16 %v593
        %v874 = vpack.c.b16 %v844, %v842
        %v875 = vpack.c.b16 %v845, %v843
        %v876 = vpack.c.b16 %v848, %v846
        %v877 = vpack.c.b16 %v849, %v847
        %v878 = vpack.c.b16 %v852, %v850
        %v879 = vpack.c.b16 %v853, %v851
        %v880 = vpack.c.b16 %v856, %v854
        %v881 = vpack.c.b16 %v857, %v855
        %v882 = vpack.c.b16 %v860, %v858
        %v883 = vpack.c.b16 %v861, %v859
        %v884 = vpack.c.b16 %v864, %v862
        %v885 = vpack.c.b16 %v865, %v863
        %v886 = vpack.c.b16 %v868, %v866
        %v887 = vpack.c.b16 %v869, %v867
        %v888 = vpack.c.b16 %v872, %v870
        %v889 = vpack.c.b16 %v873, %v871
        %906 = vmatprep.subr.bf16.mxu0 %v875
        %907 = vmatpush1.bf16.msra.mxu0 %v874
        %908 = vmatprep.subr.bf16.mxu0 %v877
        %909 = vmatpush1.bf16.msra.mxu0 %v876
        %910 = vmatprep.subr.bf16.mxu0 %v879
        %911 = vmatpush1.bf16.msra.mxu0 %v878
        %912 = vmatprep.subr.bf16.mxu0 %v881
        %913 = vmatpush1.bf16.msra.mxu0 %v880
        %914 = vmatprep.subr.bf16.mxu0 %v883
        %915 = vmatpush1.bf16.msra.mxu0 %v882
        %916 = vmatprep.subr.bf16.mxu0 %v885
        %917 = vmatpush1.bf16.msra.mxu0 %v884
        %918 = vmatprep.subr.bf16.mxu0 %v887
        %919 = vmatpush1.bf16.msra.mxu0 %v886
        %920 = vmatprep.subr.bf16.mxu0 %v889
        %921 = vmatpush1.bf16.msra.mxu0 %v888
        %922 = vmatprep.subr.bf16.mxu0 0
        %923 = vmatpush1.bf16.msra.mxu0 0
        %924 = vmatprep.subr.bf16.mxu0 0
        %925 = vmatpush1.bf16.msra.mxu0 0
        %926 = vmatprep.subr.bf16.mxu0 0
        %927 = vmatpush1.bf16.msra.mxu0 0
        %928 = vmatprep.subr.bf16.mxu0 0
        %929 = vmatpush1.bf16.msra.mxu0 0
        %930 = vmatprep.subr.bf16.mxu0 0
        %931 = vmatpush1.bf16.msra.mxu0 0
        %932 = vmatprep.subr.bf16.mxu0 0
        %933 = vmatpush1.bf16.msra.mxu0 0
        %934 = vmatprep.subr.bf16.mxu0 0
        %935 = vmatpush1.bf16.msra.mxu0 0
        %936 = vmatprep.subr.bf16.mxu0 0
        %937 = vmatpush1.bf16.msra.mxu0 0
        %938 = vmatprep.mubr.bf16.mxu0 0
        %939 = vmatmul.mubr.bf16.gmra.mrb[0].mxu0 %v689
        %v940 = vpop.f32.mrb[0].mxu0
        %v941 = vadd.f32 0.0, %v940
        %v942 = vpop.f32.mrb[0].mxu0
        %v943 = vadd.f32 0.0, %v942
        %v944 = vpop.f32.mrb[0].mxu0
        %v945 = vadd.f32 0.0, %v944
        %v946 = vpop.f32.mrb[0].mxu0
        %v947 = vadd.f32 0.0, %v946
        %948 = vmatprep.mubr.bf16.mxu0 0
        %949 = vmatmul.mubr.bf16.gmra.mrb[0].mxu0 %v697
        %v950 = vpop.f32.mrb[0].mxu0
        %v951 = vadd.f32 0.0, %v950
        %v952 = vpop.f32.mrb[0].mxu0
        %v953 = vadd.f32 0.0, %v952
        %v954 = vpop.f32.mrb[0].mxu0
        %v955 = vadd.f32 0.0, %v954
        %v956 = vpop.f32.mrb[0].mxu0
        %v957 = vadd.f32 0.0, %v956
        %958 = vmatprep.mubr.bf16.mxu0 0
        %959 = vmatmul.mubr.bf16.gmra.mrb[0].mxu0 %v705
        %v960 = vpop.f32.mrb[0].mxu0
        %v961 = vadd.f32 0.0, %v960
        %v962 = vpop.f32.mrb[0].mxu0
        %v963 = vadd.f32 0.0, %v962
        %v964 = vpop.f32.mrb[0].mxu0
        %v965 = vadd.f32 0.0, %v964
        %v966 = vpop.f32.mrb[0].mxu0
        %v967 = vadd.f32 0.0, %v966
        %968 = vmatprep.mubr.bf16.mxu0 0
        %969 = vmatmul.mubr.bf16.gmra.mrb[0].mxu0 %v713
        %v970 = vpop.f32.mrb[0].mxu0
        %v971 = vadd.f32 0.0, %v970
        %v972 = vpop.f32.mrb[0].mxu0
        %v973 = vadd.f32 0.0, %v972
        %v974 = vpop.f32.mrb[0].mxu0
        %v975 = vadd.f32 0.0, %v974
        %v976 = vpop.f32.mrb[0].mxu0
        %v977 = vadd.f32 0.0, %v976
        %978 = vmatprep.mubr.bf16.mxu0 0
        %979 = vmatmul.mubr.bf16.gmra.mrb[0].mxu0 %v721
        %v980 = vpop.f32.mrb[0].mxu0
        %v981 = vadd.f32 0.0, %v980
        %v982 = vpop.f32.mrb[0].mxu0
        %v983 = vadd.f32 0.0, %v982
        %v984 = vpop.f32.mrb[0].mxu0
        %v985 = vadd.f32 0.0, %v984
        %v986 = vpop.f32.mrb[0].mxu0
        %v987 = vadd.f32 0.0, %v986
        %988 = vmatprep.mubr.bf16.mxu0 0
        %989 = vmatmul.mubr.bf16.gmra.mrb[0].mxu0 %v729
        %v990 = vpop.f32.mrb[0].mxu0
        %v991 = vadd.f32 0.0, %v990
        %v992 = vpop.f32.mrb[0].mxu0
        %v993 = vadd.f32 0.0, %v992
        %v994 = vpop.f32.mrb[0].mxu0
        %v995 = vadd.f32 0.0, %v994
        %v996 = vpop.f32.mrb[0].mxu0
        %v997 = vadd.f32 0.0, %v996
        %998 = vmatprep.mubr.bf16.mxu0 0
        %999 = vmatmul.mubr.bf16.gmra.mrb[0].mxu0 %v737
        %v1000 = vpop.f32.mrb[0].mxu0
        %v1001 = vadd.f32 0.0, %v1000
        %v1002 = vpop.f32.mrb[0].mxu0
        %v1003 = vadd.f32 0.0, %v1002
        %v1004 = vpop.f32.mrb[0].mxu0
        %v1005 = vadd.f32 0.0, %v1004
        %v1006 = vpop.f32.mrb[0].mxu0
        %v1007 = vadd.f32 0.0, %v1006
        %1008 = vmatprep.mubr.bf16.mxu0 0
        %1009 = vmatmul.mubr.bf16.gmra.mrb[0].mxu0 %v745
        %v1010 = vpop.f32.mrb[0].mxu0
        %v1011 = vadd.f32 0.0, %v1010
        %v1012 = vpop.f32.mrb[0].mxu0
        %v1013 = vadd.f32 0.0, %v1012
        %v1014 = vpop.f32.mrb[0].mxu0
        %v1015 = vadd.f32 0.0, %v1014
        %v1016 = vpop.f32.mrb[0].mxu0
        %v1017 = vadd.f32 0.0, %v1016
        %1018 = vmatprep.mubr.bf16.mxu0 0
        %1019 = vmatmul.mubr.bf16.gmra.mrb[0].mxu0 %v753
        %v1020 = vpop.f32.mrb[0].mxu0
        %v1021 = vadd.f32 0.0, %v1020
        %v1022 = vpop.f32.mrb[0].mxu0
        %v1023 = vadd.f32 0.0, %v1022
        %v1024 = vpop.f32.mrb[0].mxu0
        %v1025 = vadd.f32 0.0, %v1024
        %v1026 = vpop.f32.mrb[0].mxu0
        %v1027 = vadd.f32 0.0, %v1026
        %1028 = vmatprep.mubr.bf16.mxu0 0
        %1029 = vmatmul.mubr.bf16.gmra.mrb[0].mxu0 %v761
        %v1030 = vpop.f32.mrb[0].mxu0
        %v1031 = vadd.f32 0.0, %v1030
        %v1032 = vpop.f32.mrb[0].mxu0
        %v1033 = vadd.f32 0.0, %v1032
        %v1034 = vpop.f32.mrb[0].mxu0
        %v1035 = vadd.f32 0.0, %v1034
        %v1036 = vpop.f32.mrb[0].mxu0
        %v1037 = vadd.f32 0.0, %v1036
        %1038 = vmatprep.mubr.bf16.mxu0 0
        %1039 = vmatmul.mubr.bf16.gmra.mrb[0].mxu0 %v769
        %v1040 = vpop.f32.mrb[0].mxu0
        %v1041 = vadd.f32 0.0, %v1040
        %v1042 = vpop.f32.mrb[0].mxu0
        %v1043 = vadd.f32 0.0, %v1042
        %v1044 = vpop.f32.mrb[0].mxu0
        %v1045 = vadd.f32 0.0, %v1044
        %v1046 = vpop.f32.mrb[0].mxu0
        %v1047 = vadd.f32 0.0, %v1046
        %1048 = vmatprep.mubr.bf16.mxu0 0
        %1049 = vmatmul.mubr.bf16.gmra.mrb[0].mxu0 %v777
        %v1050 = vpop.f32.mrb[0].mxu0
        %v1051 = vadd.f32 0.0, %v1050
        %v1052 = vpop.f32.mrb[0].mxu0
        %v1053 = vadd.f32 0.0, %v1052
        %v1054 = vpop.f32.mrb[0].mxu0
        %v1055 = vadd.f32 0.0, %v1054
        %v1056 = vpop.f32.mrb[0].mxu0
        %v1057 = vadd.f32 0.0, %v1056
        %1058 = vmatprep.mubr.bf16.mxu0 0
        %1059 = vmatmul.mubr.bf16.gmra.mrb[0].mxu0 %v785
        %v1060 = vpop.f32.mrb[0].mxu0
        %v1061 = vadd.f32 0.0, %v1060
        %v1062 = vpop.f32.mrb[0].mxu0
        %v1063 = vadd.f32 0.0, %v1062
        %v1064 = vpop.f32.mrb[0].mxu0
        %v1065 = vadd.f32 0.0, %v1064
        %v1066 = vpop.f32.mrb[0].mxu0
        %v1067 = vadd.f32 0.0, %v1066
        %1068 = vmatprep.mubr.bf16.mxu0 0
        %1069 = vmatmul.mubr.bf16.gmra.mrb[0].mxu0 %v793
        %v1070 = vpop.f32.mrb[0].mxu0
        %v1071 = vadd.f32 0.0, %v1070
        %v1072 = vpop.f32.mrb[0].mxu0
        %v1073 = vadd.f32 0.0, %v1072
        %v1074 = vpop.f32.mrb[0].mxu0
        %v1075 = vadd.f32 0.0, %v1074
        %v1076 = vpop.f32.mrb[0].mxu0
        %v1077 = vadd.f32 0.0, %v1076
        %1078 = vmatprep.mubr.bf16.mxu0 0
        %1079 = vmatmul.mubr.bf16.gmra.mrb[0].mxu0 %v801
        %v1080 = vpop.f32.mrb[0].mxu0
        %v1081 = vadd.f32 0.0, %v1080
        %v1082 = vpop.f32.mrb[0].mxu0
        %v1083 = vadd.f32 0.0, %v1082
        %v1084 = vpop.f32.mrb[0].mxu0
        %v1085 = vadd.f32 0.0, %v1084
        %v1086 = vpop.f32.mrb[0].mxu0
        %v1087 = vadd.f32 0.0, %v1086
        %1088 = vmatprep.mubr.bf16.mxu0 0
        %1089 = vmatmul.mubr.bf16.gmra.mrb[0].mxu0 %v809
        %v1090 = vpop.f32.mrb[0].mxu0
        %v1091 = vadd.f32 0.0, %v1090
        %v1092 = vpop.f32.mrb[0].mxu0
        %v1093 = vadd.f32 0.0, %v1092
        %v1094 = vpop.f32.mrb[0].mxu0
        %v1095 = vadd.f32 0.0, %v1094
        %v1096 = vpop.f32.mrb[0].mxu0
        %v1097 = vadd.f32 0.0, %v1096
        %1098 = vdwg.mxu0
        %v1131 = vunpack.c.l.b16 %v496
        %v1132 = vunpack.c.l.b16 %v497
        %v1133 = vunpack.c.l.b16 %v498
        %v1134 = vunpack.c.l.b16 %v499
        %v1135 = vunpack.c.l.b16 %v500
        %v1136 = vunpack.c.l.b16 %v501
        %v1137 = vunpack.c.l.b16 %v502
        %v1138 = vunpack.c.l.b16 %v503
        %v1139 = vunpack.c.l.b16 %v504
        %v1140 = vunpack.c.l.b16 %v505
        %v1141 = vunpack.c.l.b16 %v506
        %v1142 = vunpack.c.l.b16 %v507
        %v1143 = vunpack.c.l.b16 %v508
        %v1144 = vunpack.c.l.b16 %v509
        %v1145 = vunpack.c.l.b16 %v510
        %v1146 = vunpack.c.l.b16 %v511
        %v1147 = vunpack.c.l.b16 %v512
        %v1148 = vunpack.c.l.b16 %v513
        %v1149 = vunpack.c.l.b16 %v514
        %v1150 = vunpack.c.l.b16 %v515
        %v1151 = vunpack.c.l.b16 %v516
        %v1152 = vunpack.c.l.b16 %v517
        %v1153 = vunpack.c.l.b16 %v518
        %v1154 = vunpack.c.l.b16 %v519
        %v1155 = vunpack.c.l.b16 %v520
        %v1156 = vunpack.c.l.b16 %v521
        %v1157 = vunpack.c.l.b16 %v522
        %v1158 = vunpack.c.l.b16 %v523
        %v1159 = vunpack.c.l.b16 %v524
        %v1160 = vunpack.c.l.b16 %v525
        %v1161 = vunpack.c.l.b16 %v526
        %v1162 = vunpack.c.l.b16 %v527
        %v1163 = vpack.c.b16 %v1132, %v1131
        %v1164 = vpack.c.b16 %v1134, %v1133
        %v1165 = vpack.c.b16 %v1136, %v1135
        %v1166 = vpack.c.b16 %v1138, %v1137
        %v1167 = vpack.c.b16 %v1140, %v1139
        %v1168 = vpack.c.b16 %v1142, %v1141
        %v1169 = vpack.c.b16 %v1144, %v1143
        %v1170 = vpack.c.b16 %v1146, %v1145
        %v1171 = vpack.c.b16 %v1148, %v1147
        %v1172 = vpack.c.b16 %v1150, %v1149
        %v1173 = vpack.c.b16 %v1152, %v1151
        %v1174 = vpack.c.b16 %v1154, %v1153
        %v1175 = vpack.c.b16 %v1156, %v1155
        %v1176 = vpack.c.b16 %v1158, %v1157
        %v1177 = vpack.c.b16 %v1160, %v1159
        %v1178 = vpack.c.b16 %v1162, %v1161
        %v1211 = vunpack.c.l.b16 %v528
        %v1212 = vunpack.c.h.b16 %v528
        %v1213 = vunpack.c.l.b16 %v529
        %v1214 = vunpack.c.h.b16 %v529
        %v1215 = vunpack.c.l.b16 %v530
        %v1216 = vunpack.c.h.b16 %v530
        %v1217 = vunpack.c.l.b16 %v531
        %v1218 = vunpack.c.h.b16 %v531
        %v1219 = vunpack.c.l.b16 %v532
        %v1220 = vunpack.c.h.b16 %v532
        %v1221 = vunpack.c.l.b16 %v533
        %v1222 = vunpack.c.h.b16 %v533
        %v1223 = vunpack.c.l.b16 %v534
        %v1224 = vunpack.c.h.b16 %v534
        %v1225 = vunpack.c.l.b16 %v535
        %v1226 = vunpack.c.h.b16 %v535
        %v1227 = vunpack.c.l.b16 %v536
        %v1228 = vunpack.c.h.b16 %v536
        %v1229 = vunpack.c.l.b16 %v537
        %v1230 = vunpack.c.h.b16 %v537
        %v1231 = vunpack.c.l.b16 %v538
        %v1232 = vunpack.c.h.b16 %v538
        %v1233 = vunpack.c.l.b16 %v539
        %v1234 = vunpack.c.h.b16 %v539
        %v1235 = vunpack.c.l.b16 %v540
        %v1236 = vunpack.c.h.b16 %v540
        %v1237 = vunpack.c.l.b16 %v541
        %v1238 = vunpack.c.h.b16 %v541
        %v1239 = vunpack.c.l.b16 %v542
        %v1240 = vunpack.c.h.b16 %v542
        %v1241 = vunpack.c.l.b16 %v543
        %v1242 = vunpack.c.h.b16 %v543
        %v1243 = vpack.c.b16 %v1213, %v1211
        %v1244 = vpack.c.b16 %v1214, %v1212
        %v1245 = vpack.c.b16 %v1217, %v1215
        %v1246 = vpack.c.b16 %v1218, %v1216
        %v1247 = vpack.c.b16 %v1221, %v1219
        %v1248 = vpack.c.b16 %v1222, %v1220
        %v1249 = vpack.c.b16 %v1225, %v1223
        %v1250 = vpack.c.b16 %v1226, %v1224
        %v1251 = vpack.c.b16 %v1229, %v1227
        %v1252 = vpack.c.b16 %v1230, %v1228
        %v1253 = vpack.c.b16 %v1233, %v1231
        %v1254 = vpack.c.b16 %v1234, %v1232
        %v1255 = vpack.c.b16 %v1237, %v1235
        %v1256 = vpack.c.b16 %v1238, %v1236
        %v1257 = vpack.c.b16 %v1241, %v1239
        %v1258 = vpack.c.b16 %v1242, %v1240
        %1275 = vmatprep.subr.bf16.mxu0 %v1244
        %1276 = vmatpush1.bf16.msra.mxu0 %v1243
        %1277 = vmatprep.subr.bf16.mxu0 %v1246
        %1278 = vmatpush1.bf16.msra.mxu0 %v1245
        %1279 = vmatprep.subr.bf16.mxu0 %v1248
        %1280 = vmatpush1.bf16.msra.mxu0 %v1247
        %1281 = vmatprep.subr.bf16.mxu0 %v1250
        %1282 = vmatpush1.bf16.msra.mxu0 %v1249
        %1283 = vmatprep.subr.bf16.mxu0 %v1252
        %1284 = vmatpush1.bf16.msra.mxu0 %v1251
        %1285 = vmatprep.subr.bf16.mxu0 %v1254
        %1286 = vmatpush1.bf16.msra.mxu0 %v1253
        %1287 = vmatprep.subr.bf16.mxu0 %v1256
        %1288 = vmatpush1.bf16.msra.mxu0 %v1255
        %1289 = vmatprep.subr.bf16.mxu0 %v1258
        %1290 = vmatpush1.bf16.msra.mxu0 %v1257
        %1291 = vmatprep.subr.bf16.mxu0 0
        %1292 = vmatpush1.bf16.msra.mxu0 0
        %1293 = vmatprep.subr.bf16.mxu0 0
        %1294 = vmatpush1.bf16.msra.mxu0 0
        %1295 = vmatprep.subr.bf16.mxu0 0
        %1296 = vmatpush1.bf16.msra.mxu0 0
        %1297 = vmatprep.subr.bf16.mxu0 0
        %1298 = vmatpush1.bf16.msra.mxu0 0
        %1299 = vmatprep.subr.bf16.mxu0 0
        %1300 = vmatpush1.bf16.msra.mxu0 0
        %1301 = vmatprep.subr.bf16.mxu0 0
        %1302 = vmatpush1.bf16.msra.mxu0 0
        %1303 = vmatprep.subr.bf16.mxu0 0
        %1304 = vmatpush1.bf16.msra.mxu0 0
        %1305 = vmatprep.subr.bf16.mxu0 0
        %1306 = vmatpush1.bf16.msra.mxu0 0
        %1307 = vmatprep.mubr.bf16.mxu0 0
        %1308 = vmatmul.mubr.bf16.gmra.mrb[0].mxu0 %v1163
        %v1309 = vpop.f32.mrb[0].mxu0
        %v1310 = vadd.f32 %v941, %v1309
        %v1311 = vpop.f32.mrb[0].mxu0
        %v1312 = vadd.f32 %v943, %v1311
        %v1313 = vpop.f32.mrb[0].mxu0
        %v1314 = vadd.f32 %v945, %v1313
        %v1315 = vpop.f32.mrb[0].mxu0
        %v1316 = vadd.f32 %v947, %v1315
        %1317 = vmatprep.mubr.bf16.mxu0 0
        %1318 = vmatmul.mubr.bf16.gmra.mrb[0].mxu0 %v1164
        %v1319 = vpop.f32.mrb[0].mxu0
        %v1320 = vadd.f32 %v951, %v1319
        %v1321 = vpop.f32.mrb[0].mxu0
        %v1322 = vadd.f32 %v953, %v1321
        %v1323 = vpop.f32.mrb[0].mxu0
        %v1324 = vadd.f32 %v955, %v1323
        %v1325 = vpop.f32.mrb[0].mxu0
        %v1326 = vadd.f32 %v957, %v1325
        %1327 = vmatprep.mubr.bf16.mxu0 0
        %1328 = vmatmul.mubr.bf16.gmra.mrb[0].mxu0 %v1165
        %v1329 = vpop.f32.mrb[0].mxu0
        %v1330 = vadd.f32 %v961, %v1329
        %v1331 = vpop.f32.mrb[0].mxu0
        %v1332 = vadd.f32 %v963, %v1331
        %v1333 = vpop.f32.mrb[0].mxu0
        %v1334 = vadd.f32 %v965, %v1333
        %v1335 = vpop.f32.mrb[0].mxu0
        %v1336 = vadd.f32 %v967, %v1335
        %1337 = vmatprep.mubr.bf16.mxu0 0
        %1338 = vmatmul.mubr.bf16.gmra.mrb[0].mxu0 %v1166
        %v1339 = vpop.f32.mrb[0].mxu0
        %v1340 = vadd.f32 %v971, %v1339
        %v1341 = vpop.f32.mrb[0].mxu0
        %v1342 = vadd.f32 %v973, %v1341
        %v1343 = vpop.f32.mrb[0].mxu0
        %v1344 = vadd.f32 %v975, %v1343
        %v1345 = vpop.f32.mrb[0].mxu0
        %v1346 = vadd.f32 %v977, %v1345
        %1347 = vmatprep.mubr.bf16.mxu0 0
        %1348 = vmatmul.mubr.bf16.gmra.mrb[0].mxu0 %v1167
        %v1349 = vpop.f32.mrb[0].mxu0
        %v1350 = vadd.f32 %v981, %v1349
        %v1351 = vpop.f32.mrb[0].mxu0
        %v1352 = vadd.f32 %v983, %v1351
        %v1353 = vpop.f32.mrb[0].mxu0
        %v1354 = vadd.f32 %v985, %v1353
        %v1355 = vpop.f32.mrb[0].mxu0
        %v1356 = vadd.f32 %v987, %v1355
        %1357 = vmatprep.mubr.bf16.mxu0 0
        %1358 = vmatmul.mubr.bf16.gmra.mrb[0].mxu0 %v1168
        %v1359 = vpop.f32.mrb[0].mxu0
        %v1360 = vadd.f32 %v991, %v1359
        %v1361 = vpop.f32.mrb[0].mxu0
        %v1362 = vadd.f32 %v993, %v1361
        %v1363 = vpop.f32.mrb[0].mxu0
        %v1364 = vadd.f32 %v995, %v1363
        %v1365 = vpop.f32.mrb[0].mxu0
        %v1366 = vadd.f32 %v997, %v1365
        %1367 = vmatprep.mubr.bf16.mxu0 0
        %1368 = vmatmul.mubr.bf16.gmra.mrb[0].mxu0 %v1169
        %v1369 = vpop.f32.mrb[0].mxu0
        %v1370 = vadd.f32 %v1001, %v1369
        %v1371 = vpop.f32.mrb[0].mxu0
        %v1372 = vadd.f32 %v1003, %v1371
        %v1373 = vpop.f32.mrb[0].mxu0
        %v1374 = vadd.f32 %v1005, %v1373
        %v1375 = vpop.f32.mrb[0].mxu0
        %v1376 = vadd.f32 %v1007, %v1375
        %1377 = vmatprep.mubr.bf16.mxu0 0
        %1378 = vmatmul.mubr.bf16.gmra.mrb[0].mxu0 %v1170
        %v1379 = vpop.f32.mrb[0].mxu0
        %v1380 = vadd.f32 %v1011, %v1379
        %v1381 = vpop.f32.mrb[0].mxu0
        %v1382 = vadd.f32 %v1013, %v1381
        %v1383 = vpop.f32.mrb[0].mxu0
        %v1384 = vadd.f32 %v1015, %v1383
        %v1385 = vpop.f32.mrb[0].mxu0
        %v1386 = vadd.f32 %v1017, %v1385
        %1387 = vmatprep.mubr.bf16.mxu0 0
        %1388 = vmatmul.mubr.bf16.gmra.mrb[0].mxu0 %v1171
        %v1389 = vpop.f32.mrb[0].mxu0
        %v1390 = vadd.f32 %v1021, %v1389
        %v1391 = vpop.f32.mrb[0].mxu0
        %v1392 = vadd.f32 %v1023, %v1391
        %v1393 = vpop.f32.mrb[0].mxu0
        %v1394 = vadd.f32 %v1025, %v1393
        %v1395 = vpop.f32.mrb[0].mxu0
        %v1396 = vadd.f32 %v1027, %v1395
        %1397 = vmatprep.mubr.bf16.mxu0 0
        %1398 = vmatmul.mubr.bf16.gmra.mrb[0].mxu0 %v1172
        %v1399 = vpop.f32.mrb[0].mxu0
        %v1400 = vadd.f32 %v1031, %v1399
        %v1401 = vpop.f32.mrb[0].mxu0
        %v1402 = vadd.f32 %v1033, %v1401
        %v1403 = vpop.f32.mrb[0].mxu0
        %v1404 = vadd.f32 %v1035, %v1403
        %v1405 = vpop.f32.mrb[0].mxu0
        %v1406 = vadd.f32 %v1037, %v1405
        %1407 = vmatprep.mubr.bf16.mxu0 0
        %1408 = vmatmul.mubr.bf16.gmra.mrb[0].mxu0 %v1173
        %v1409 = vpop.f32.mrb[0].mxu0
        %v1410 = vadd.f32 %v1041, %v1409
        %v1411 = vpop.f32.mrb[0].mxu0
        %v1412 = vadd.f32 %v1043, %v1411
        %v1413 = vpop.f32.mrb[0].mxu0
        %v1414 = vadd.f32 %v1045, %v1413
        %v1415 = vpop.f32.mrb[0].mxu0
        %v1416 = vadd.f32 %v1047, %v1415
        %1417 = vmatprep.mubr.bf16.mxu0 0
        %1418 = vmatmul.mubr.bf16.gmra.mrb[0].mxu0 %v1174
        %v1419 = vpop.f32.mrb[0].mxu0
        %v1420 = vadd.f32 %v1051, %v1419
        %v1421 = vpop.f32.mrb[0].mxu0
        %v1422 = vadd.f32 %v1053, %v1421
        %v1423 = vpop.f32.mrb[0].mxu0
        %v1424 = vadd.f32 %v1055, %v1423
        %v1425 = vpop.f32.mrb[0].mxu0
        %v1426 = vadd.f32 %v1057, %v1425
        %1427 = vmatprep.mubr.bf16.mxu0 0
        %1428 = vmatmul.mubr.bf16.gmra.mrb[0].mxu0 %v1175
        %v1429 = vpop.f32.mrb[0].mxu0
        %v1430 = vadd.f32 %v1061, %v1429
        %v1431 = vpop.f32.mrb[0].mxu0
        %v1432 = vadd.f32 %v1063, %v1431
        %v1433 = vpop.f32.mrb[0].mxu0
        %v1434 = vadd.f32 %v1065, %v1433
        %v1435 = vpop.f32.mrb[0].mxu0
        %v1436 = vadd.f32 %v1067, %v1435
        %1437 = vmatprep.mubr.bf16.mxu0 0
        %1438 = vmatmul.mubr.bf16.gmra.mrb[0].mxu0 %v1176
        %v1439 = vpop.f32.mrb[0].mxu0
        %v1440 = vadd.f32 %v1071, %v1439
        %v1441 = vpop.f32.mrb[0].mxu0
        %v1442 = vadd.f32 %v1073, %v1441
        %v1443 = vpop.f32.mrb[0].mxu0
        %v1444 = vadd.f32 %v1075, %v1443
        %v1445 = vpop.f32.mrb[0].mxu0
        %v1446 = vadd.f32 %v1077, %v1445
        %1447 = vmatprep.mubr.bf16.mxu0 0
        %1448 = vmatmul.mubr.bf16.gmra.mrb[0].mxu0 %v1177
        %v1449 = vpop.f32.mrb[0].mxu0
        %v1450 = vadd.f32 %v1081, %v1449
        %v1451 = vpop.f32.mrb[0].mxu0
        %v1452 = vadd.f32 %v1083, %v1451
        %v1453 = vpop.f32.mrb[0].mxu0
        %v1454 = vadd.f32 %v1085, %v1453
        %v1455 = vpop.f32.mrb[0].mxu0
        %v1456 = vadd.f32 %v1087, %v1455
        %1457 = vmatprep.mubr.bf16.mxu0 0
        %1458 = vmatmul.mubr.bf16.gmra.mrb[0].mxu0 %v1178
        %v1459 = vpop.f32.mrb[0].mxu0
        %v1460 = vadd.f32 %v1091, %v1459
        %v1461 = vpop.f32.mrb[0].mxu0
        %v1462 = vadd.f32 %v1093, %v1461
        %v1463 = vpop.f32.mrb[0].mxu0
        %v1464 = vadd.f32 %v1095, %v1463
        %v1465 = vpop.f32.mrb[0].mxu0
        %v1466 = vadd.f32 %v1097, %v1465
        %1467 = vdwg.mxu0
        %v1468 = vld [vmem:[%s493] sm:$0xe]
        %s1469 = scalar_lea.vmem %s1, 256
        %v1470 = vld [vmem:[%s1469] sm:$0xff]
        %v1471 = vld [vmem:[%s1469 + $0x8] sm:$0xff]
        %v1472 = vld [vmem:[%s1469 + $0x10] sm:$0xff]
        %v1473 = vld [vmem:[%s1469 + $0x18] sm:$0xff]
        %v1474 = vld [vmem:[%s1469 + $0x20] sm:$0xff]
        %v1475 = vld [vmem:[%s1469 + $0x28] sm:$0xff]
        %v1476 = vld [vmem:[%s1469 + $0x30] sm:$0xff]
        %v1477 = vld [vmem:[%s1469 + $0x38] sm:$0xff]
        %v1478 = vld [vmem:[%s1469 + $0x40] sm:$0xff]
        %v1479 = vld [vmem:[%s1469 + $0x48] sm:$0xff]
        %v1480 = vld [vmem:[%s1469 + $0x50] sm:$0xff]
        %v1481 = vld [vmem:[%s1469 + $0x58] sm:$0xff]
        %v1482 = vld [vmem:[%s1469 + $0x60] sm:$0xff]
        %v1483 = vld [vmem:[%s1469 + $0x68] sm:$0xff]
        %v1484 = vld [vmem:[%s1469 + $0x70] sm:$0xff]
        %v1485 = vld [vmem:[%s1469 + $0x78] sm:$0xff]
        %v1487 = vunpack.c.l.b16 %v1468
        %v1488 = vpack.c.b16 %v628, %v1487
        %vm1489 = vcmask 1046528
        %v1490 = vrot.slane %v1488, 1
        %v1491 = vrot.slane %v661, 1
        %v1492 = vsel %vm1489, %v1490, %v1491
        %v1493 = vrot.slane %v662, 1
        %v1494 = vsel %vm1489, %v1491, %v1493
        %v1495 = vrot.slane %v663, 1
        %v1496 = vsel %vm1489, %v1493, %v1495
        %v1497 = vrot.slane %v664, 1
        %v1498 = vsel %vm1489, %v1495, %v1497
        %v1499 = vrot.slane %v665, 1
        %v1500 = vsel %vm1489, %v1497, %v1499
        %v1501 = vrot.slane %v666, 1
        %v1502 = vsel %vm1489, %v1499, %v1501
        %v1503 = vrot.slane %v667, 1
        %v1504 = vsel %vm1489, %v1501, %v1503
        %v1505 = vrot.slane %v668, 1
        %v1506 = vsel %vm1489, %v1503, %v1505
        %v1507 = vrot.slane %v669, 1
        %v1508 = vsel %vm1489, %v1505, %v1507
        %v1509 = vrot.slane %v670, 1
        %v1510 = vsel %vm1489, %v1507, %v1509
        %v1511 = vrot.slane %v671, 1
        %v1512 = vsel %vm1489, %v1509, %v1511
        %v1513 = vrot.slane %v672, 1
        %v1514 = vsel %vm1489, %v1511, %v1513
        %v1515 = vrot.slane %v673, 1
        %v1516 = vsel %vm1489, %v1513, %v1515
        %v1517 = vrot.slane %v674, 1
        %v1518 = vsel %vm1489, %v1515, %v1517
        %v1519 = vrot.slane %v675, 1
        %v1520 = vsel %vm1489, %v1517, %v1519
        %v1521 = vrot.slane %v676, 1
        %v1522 = vsel %vm1489, %v1519, %v1521
        %v1555 = vunpack.c.l.b16 %v1470
        %v1556 = vunpack.c.h.b16 %v1470
        %v1557 = vunpack.c.l.b16 %v1471
        %v1558 = vunpack.c.h.b16 %v1471
        %v1559 = vunpack.c.l.b16 %v1472
        %v1560 = vunpack.c.h.b16 %v1472
        %v1561 = vunpack.c.l.b16 %v1473
        %v1562 = vunpack.c.h.b16 %v1473
        %v1563 = vunpack.c.l.b16 %v1474
        %v1564 = vunpack.c.h.b16 %v1474
        %v1565 = vunpack.c.l.b16 %v1475
        %v1566 = vunpack.c.h.b16 %v1475
        %v1567 = vunpack.c.l.b16 %v1476
        %v1568 = vunpack.c.h.b16 %v1476
        %v1569 = vunpack.c.l.b16 %v1477
        %v1570 = vunpack.c.h.b16 %v1477
        %v1571 = vunpack.c.l.b16 %v1478
        %v1572 = vunpack.c.h.b16 %v1478
        %v1573 = vunpack.c.l.b16 %v1479
        %v1574 = vunpack.c.h.b16 %v1479
        %v1575 = vunpack.c.l.b16 %v1480
        %v1576 = vunpack.c.h.b16 %v1480
        %v1577 = vunpack.c.l.b16 %v1481
        %v1578 = vunpack.c.h.b16 %v1481
        %v1579 = vunpack.c.l.b16 %v1482
        %v1580 = vunpack.c.h.b16 %v1482
        %v1581 = vunpack.c.l.b16 %v1483
        %v1582 = vunpack.c.h.b16 %v1483
        %v1583 = vunpack.c.l.b16 %v1484
        %v1584 = vunpack.c.h.b16 %v1484
        %v1585 = vunpack.c.l.b16 %v1485
        %v1586 = vunpack.c.h.b16 %v1485
        %v1587 = vpack.c.b16 %v1557, %v1555
        %v1588 = vpack.c.b16 %v1558, %v1556
        %v1589 = vpack.c.b16 %v1561, %v1559
        %v1590 = vpack.c.b16 %v1562, %v1560
        %v1591 = vpack.c.b16 %v1565, %v1563
        %v1592 = vpack.c.b16 %v1566, %v1564
        %v1593 = vpack.c.b16 %v1569, %v1567
        %v1594 = vpack.c.b16 %v1570, %v1568
        %v1595 = vpack.c.b16 %v1573, %v1571
        %v1596 = vpack.c.b16 %v1574, %v1572
        %v1597 = vpack.c.b16 %v1577, %v1575
        %v1598 = vpack.c.b16 %v1578, %v1576
        %v1599 = vpack.c.b16 %v1581, %v1579
        %v1600 = vpack.c.b16 %v1582, %v1580
        %v1601 = vpack.c.b16 %v1585, %v1583
        %v1602 = vpack.c.b16 %v1586, %v1584
        %1619 = vmatprep.subr.bf16.mxu0 %v1588
        %1620 = vmatpush1.bf16.msra.mxu0 %v1587
        %1621 = vmatprep.subr.bf16.mxu0 %v1590
        %1622 = vmatpush1.bf16.msra.mxu0 %v1589
        %1623 = vmatprep.subr.bf16.mxu0 %v1592
        %1624 = vmatpush1.bf16.msra.mxu0 %v1591
        %1625 = vmatprep.subr.bf16.mxu0 %v1594
        %1626 = vmatpush1.bf16.msra.mxu0 %v1593
        %1627 = vmatprep.subr.bf16.mxu0 %v1596
        %1628 = vmatpush1.bf16.msra.mxu0 %v1595
        %1629 = vmatprep.subr.bf16.mxu0 %v1598
        %1630 = vmatpush1.bf16.msra.mxu0 %v1597
        %1631 = vmatprep.subr.bf16.mxu0 %v1600
        %1632 = vmatpush1.bf16.msra.mxu0 %v1599
        %1633 = vmatprep.subr.bf16.mxu0 %v1602
        %1634 = vmatpush1.bf16.msra.mxu0 %v1601
        %1635 = vmatprep.subr.bf16.mxu0 0
        %1636 = vmatpush1.bf16.msra.mxu0 0
        %1637 = vmatprep.subr.bf16.mxu0 0
        %1638 = vmatpush1.bf16.msra.mxu0 0
        %1639 = vmatprep.subr.bf16.mxu0 0
        %1640 = vmatpush1.bf16.msra.mxu0 0
        %1641 = vmatprep.subr.bf16.mxu0 0
        %1642 = vmatpush1.bf16.msra.mxu0 0
        %1643 = vmatprep.subr.bf16.mxu0 0
        %1644 = vmatpush1.bf16.msra.mxu0 0
        %1645 = vmatprep.subr.bf16.mxu0 0
        %1646 = vmatpush1.bf16.msra.mxu0 0
        %1647 = vmatprep.subr.bf16.mxu0 0
        %1648 = vmatpush1.bf16.msra.mxu0 0
        %1649 = vmatprep.subr.bf16.mxu0 0
        %1650 = vmatpush1.bf16.msra.mxu0 0
        %1651 = vmatprep.mubr.bf16.mxu0 0
        %1652 = vmatmul.mubr.bf16.gmra.mrb[0].mxu0 %v1492
        %v1653 = vpop.f32.mrb[0].mxu0
        %v1654 = vadd.f32 0.0, %v1653
        %v1655 = vpop.f32.mrb[0].mxu0
        %v1656 = vadd.f32 0.0, %v1655
        %v1657 = vpop.f32.mrb[0].mxu0
        %v1658 = vadd.f32 0.0, %v1657
        %v1659 = vpop.f32.mrb[0].mxu0
        %v1660 = vadd.f32 0.0, %v1659
        %1661 = vmatprep.mubr.bf16.mxu0 0
        %1662 = vmatmul.mubr.bf16.gmra.mrb[0].mxu0 %v1494
        %v1663 = vpop.f32.mrb[0].mxu0
        %v1664 = vadd.f32 0.0, %v1663
        %v1665 = vpop.f32.mrb[0].mxu0
        %v1666 = vadd.f32 0.0, %v1665
        %v1667 = vpop.f32.mrb[0].mxu0
        %v1668 = vadd.f32 0.0, %v1667
        %v1669 = vpop.f32.mrb[0].mxu0
        %v1670 = vadd.f32 0.0, %v1669
        %1671 = vmatprep.mubr.bf16.mxu0 0
        %1672 = vmatmul.mubr.bf16.gmra.mrb[0].mxu0 %v1496
        %v1673 = vpop.f32.mrb[0].mxu0
        %v1674 = vadd.f32 0.0, %v1673
        %v1675 = vpop.f32.mrb[0].mxu0
        %v1676 = vadd.f32 0.0, %v1675
        %v1677 = vpop.f32.mrb[0].mxu0
        %v1678 = vadd.f32 0.0, %v1677
        %v1679 = vpop.f32.mrb[0].mxu0
        %v1680 = vadd.f32 0.0, %v1679
        %1681 = vmatprep.mubr.bf16.mxu0 0
        %1682 = vmatmul.mubr.bf16.gmra.mrb[0].mxu0 %v1498
        %v1683 = vpop.f32.mrb[0].mxu0
        %v1684 = vadd.f32 0.0, %v1683
        %v1685 = vpop.f32.mrb[0].mxu0
        %v1686 = vadd.f32 0.0, %v1685
        %v1687 = vpop.f32.mrb[0].mxu0
        %v1688 = vadd.f32 0.0, %v1687
        %v1689 = vpop.f32.mrb[0].mxu0
        %v1690 = vadd.f32 0.0, %v1689
        %1691 = vmatprep.mubr.bf16.mxu0 0
        %1692 = vmatmul.mubr.bf16.gmra.mrb[0].mxu0 %v1500
        %v1693 = vpop.f32.mrb[0].mxu0
        %v1694 = vadd.f32 0.0, %v1693
        %v1695 = vpop.f32.mrb[0].mxu0
        %v1696 = vadd.f32 0.0, %v1695
        %v1697 = vpop.f32.mrb[0].mxu0
        %v1698 = vadd.f32 0.0, %v1697
        %v1699 = vpop.f32.mrb[0].mxu0
        %v1700 = vadd.f32 0.0, %v1699
        %1701 = vmatprep.mubr.bf16.mxu0 0
        %1702 = vmatmul.mubr.bf16.gmra.mrb[0].mxu0 %v1502
        %v1703 = vpop.f32.mrb[0].mxu0
        %v1704 = vadd.f32 0.0, %v1703
        %v1705 = vpop.f32.mrb[0].mxu0
        %v1706 = vadd.f32 0.0, %v1705
        %v1707 = vpop.f32.mrb[0].mxu0
        %v1708 = vadd.f32 0.0, %v1707
        %v1709 = vpop.f32.mrb[0].mxu0
        %v1710 = vadd.f32 0.0, %v1709
        %1711 = vmatprep.mubr.bf16.mxu0 0
        %1712 = vmatmul.mubr.bf16.gmra.mrb[0].mxu0 %v1504
        %v1713 = vpop.f32.mrb[0].mxu0
        %v1714 = vadd.f32 0.0, %v1713
        %v1715 = vpop.f32.mrb[0].mxu0
        %v1716 = vadd.f32 0.0, %v1715
        %v1717 = vpop.f32.mrb[0].mxu0
        %v1718 = vadd.f32 0.0, %v1717
        %v1719 = vpop.f32.mrb[0].mxu0
        %v1720 = vadd.f32 0.0, %v1719
        %1721 = vmatprep.mubr.bf16.mxu0 0
        %1722 = vmatmul.mubr.bf16.gmra.mrb[0].mxu0 %v1506
        %v1723 = vpop.f32.mrb[0].mxu0
        %v1724 = vadd.f32 0.0, %v1723
        %v1725 = vpop.f32.mrb[0].mxu0
        %v1726 = vadd.f32 0.0, %v1725
        %v1727 = vpop.f32.mrb[0].mxu0
        %v1728 = vadd.f32 0.0, %v1727
        %v1729 = vpop.f32.mrb[0].mxu0
        %v1730 = vadd.f32 0.0, %v1729
        %1731 = vmatprep.mubr.bf16.mxu0 0
        %1732 = vmatmul.mubr.bf16.gmra.mrb[0].mxu0 %v1508
        %v1733 = vpop.f32.mrb[0].mxu0
        %v1734 = vadd.f32 0.0, %v1733
        %v1735 = vpop.f32.mrb[0].mxu0
        %v1736 = vadd.f32 0.0, %v1735
        %v1737 = vpop.f32.mrb[0].mxu0
        %v1738 = vadd.f32 0.0, %v1737
        %v1739 = vpop.f32.mrb[0].mxu0
        %v1740 = vadd.f32 0.0, %v1739
        %1741 = vmatprep.mubr.bf16.mxu0 0
        %1742 = vmatmul.mubr.bf16.gmra.mrb[0].mxu0 %v1510
        %v1743 = vpop.f32.mrb[0].mxu0
        %v1744 = vadd.f32 0.0, %v1743
        %v1745 = vpop.f32.mrb[0].mxu0
        %v1746 = vadd.f32 0.0, %v1745
        %v1747 = vpop.f32.mrb[0].mxu0
        %v1748 = vadd.f32 0.0, %v1747
        %v1749 = vpop.f32.mrb[0].mxu0
        %v1750 = vadd.f32 0.0, %v1749
        %1751 = vmatprep.mubr.bf16.mxu0 0
        %1752 = vmatmul.mubr.bf16.gmra.mrb[0].mxu0 %v1512
        %v1753 = vpop.f32.mrb[0].mxu0
        %v1754 = vadd.f32 0.0, %v1753
        %v1755 = vpop.f32.mrb[0].mxu0
        %v1756 = vadd.f32 0.0, %v1755
        %v1757 = vpop.f32.mrb[0].mxu0
        %v1758 = vadd.f32 0.0, %v1757
        %v1759 = vpop.f32.mrb[0].mxu0
        %v1760 = vadd.f32 0.0, %v1759
        %1761 = vmatprep.mubr.bf16.mxu0 0
        %1762 = vmatmul.mubr.bf16.gmra.mrb[0].mxu0 %v1514
        %v1763 = vpop.f32.mrb[0].mxu0
        %v1764 = vadd.f32 0.0, %v1763
        %v1765 = vpop.f32.mrb[0].mxu0
        %v1766 = vadd.f32 0.0, %v1765
        %v1767 = vpop.f32.mrb[0].mxu0
        %v1768 = vadd.f32 0.0, %v1767
        %v1769 = vpop.f32.mrb[0].mxu0
        %v1770 = vadd.f32 0.0, %v1769
        %1771 = vmatprep.mubr.bf16.mxu0 0
        %1772 = vmatmul.mubr.bf16.gmra.mrb[0].mxu0 %v1516
        %v1773 = vpop.f32.mrb[0].mxu0
        %v1774 = vadd.f32 0.0, %v1773
        %v1775 = vpop.f32.mrb[0].mxu0
        %v1776 = vadd.f32 0.0, %v1775
        %v1777 = vpop.f32.mrb[0].mxu0
        %v1778 = vadd.f32 0.0, %v1777
        %v1779 = vpop.f32.mrb[0].mxu0
        %v1780 = vadd.f32 0.0, %v1779
        %1781 = vmatprep.mubr.bf16.mxu0 0
        %1782 = vmatmul.mubr.bf16.gmra.mrb[0].mxu0 %v1518
        %v1783 = vpop.f32.mrb[0].mxu0
        %v1784 = vadd.f32 0.0, %v1783
        %v1785 = vpop.f32.mrb[0].mxu0
        %v1786 = vadd.f32 0.0, %v1785
        %v1787 = vpop.f32.mrb[0].mxu0
        %v1788 = vadd.f32 0.0, %v1787
        %v1789 = vpop.f32.mrb[0].mxu0
        %v1790 = vadd.f32 0.0, %v1789
        %1791 = vmatprep.mubr.bf16.mxu0 0
        %1792 = vmatmul.mubr.bf16.gmra.mrb[0].mxu0 %v1520
        %v1793 = vpop.f32.mrb[0].mxu0
        %v1794 = vadd.f32 0.0, %v1793
        %v1795 = vpop.f32.mrb[0].mxu0
        %v1796 = vadd.f32 0.0, %v1795
        %v1797 = vpop.f32.mrb[0].mxu0
        %v1798 = vadd.f32 0.0, %v1797
        %v1799 = vpop.f32.mrb[0].mxu0
        %v1800 = vadd.f32 0.0, %v1799
        %1801 = vmatprep.mubr.bf16.mxu0 0
        %1802 = vmatmul.mubr.bf16.gmra.mrb[0].mxu0 %v1522
        %v1803 = vpop.f32.mrb[0].mxu0
        %v1804 = vadd.f32 0.0, %v1803
        %v1805 = vpop.f32.mrb[0].mxu0
        %v1806 = vadd.f32 0.0, %v1805
        %v1807 = vpop.f32.mrb[0].mxu0
        %v1808 = vadd.f32 0.0, %v1807
        %v1809 = vpop.f32.mrb[0].mxu0
        %v1810 = vadd.f32 0.0, %v1809
        %1811 = vdwg.mxu0
        %v1812 = vadd.f32 %v1310, %v1654
        %v1813 = vadd.f32 %v1312, %v1656
        %v1814 = vadd.f32 %v1314, %v1658
        %v1815 = vadd.f32 %v1316, %v1660
        %v1816 = vadd.f32 %v1320, %v1664
        %v1817 = vadd.f32 %v1322, %v1666
        %v1818 = vadd.f32 %v1324, %v1668
        %v1819 = vadd.f32 %v1326, %v1670
        %v1820 = vadd.f32 %v1330, %v1674
        %v1821 = vadd.f32 %v1332, %v1676
        %v1822 = vadd.f32 %v1334, %v1678
        %v1823 = vadd.f32 %v1336, %v1680
        %v1824 = vadd.f32 %v1340, %v1684
        %v1825 = vadd.f32 %v1342, %v1686
        %v1826 = vadd.f32 %v1344, %v1688
        %v1827 = vadd.f32 %v1346, %v1690
        %v1828 = vadd.f32 %v1350, %v1694
        %v1829 = vadd.f32 %v1352, %v1696
        %v1830 = vadd.f32 %v1354, %v1698
        %v1831 = vadd.f32 %v1356, %v1700
        %v1832 = vadd.f32 %v1360, %v1704
        %v1833 = vadd.f32 %v1362, %v1706
        %v1834 = vadd.f32 %v1364, %v1708
        %v1835 = vadd.f32 %v1366, %v1710
        %v1836 = vadd.f32 %v1370, %v1714
        %v1837 = vadd.f32 %v1372, %v1716
        %v1838 = vadd.f32 %v1374, %v1718
        %v1839 = vadd.f32 %v1376, %v1720
        %v1840 = vadd.f32 %v1380, %v1724
        %v1841 = vadd.f32 %v1382, %v1726
        %v1842 = vadd.f32 %v1384, %v1728
        %v1843 = vadd.f32 %v1386, %v1730
        %v1844 = vadd.f32 %v1390, %v1734
        %v1845 = vadd.f32 %v1392, %v1736
        %v1846 = vadd.f32 %v1394, %v1738
        %v1847 = vadd.f32 %v1396, %v1740
        %v1848 = vadd.f32 %v1400, %v1744
        %v1849 = vadd.f32 %v1402, %v1746
        %v1850 = vadd.f32 %v1404, %v1748
        %v1851 = vadd.f32 %v1406, %v1750
        %v1852 = vadd.f32 %v1410, %v1754
        %v1853 = vadd.f32 %v1412, %v1756
        %v1854 = vadd.f32 %v1414, %v1758
        %v1855 = vadd.f32 %v1416, %v1760
        %v1856 = vadd.f32 %v1420, %v1764
        %v1857 = vadd.f32 %v1422, %v1766
        %v1858 = vadd.f32 %v1424, %v1768
        %v1859 = vadd.f32 %v1426, %v1770
        %v1860 = vadd.f32 %v1430, %v1774
        %v1861 = vadd.f32 %v1432, %v1776
        %v1862 = vadd.f32 %v1434, %v1778
        %v1863 = vadd.f32 %v1436, %v1780
        %v1864 = vadd.f32 %v1440, %v1784
        %v1865 = vadd.f32 %v1442, %v1786
        %v1866 = vadd.f32 %v1444, %v1788
        %v1867 = vadd.f32 %v1446, %v1790
        %v1868 = vadd.f32 %v1450, %v1794
        %v1869 = vadd.f32 %v1452, %v1796
        %v1870 = vadd.f32 %v1454, %v1798
        %v1871 = vadd.f32 %v1456, %v1800
        %v1872 = vadd.f32 %v1460, %v1804
        %v1873 = vadd.f32 %v1462, %v1806
        %v1874 = vadd.f32 %v1464, %v1808
        %v1875 = vadd.f32 %v1466, %v1810
        %v1876 = vld [vmem:[%s493 + $0x80] sm:$0x3]
        %s1877 = scalar_lea.vmem %s1, 384
        %v1878 = vld [vmem:[%s1877] sm:$0xff]
        %v1879 = vld [vmem:[%s1877 + $0x8] sm:$0xff]
        %v1880 = vld [vmem:[%s1877 + $0x10] sm:$0xff]
        %v1881 = vld [vmem:[%s1877 + $0x18] sm:$0xff]
        %v1882 = vld [vmem:[%s1877 + $0x20] sm:$0xff]
        %v1883 = vld [vmem:[%s1877 + $0x28] sm:$0xff]
        %v1884 = vld [vmem:[%s1877 + $0x30] sm:$0xff]
        %v1885 = vld [vmem:[%s1877 + $0x38] sm:$0xff]
        %v1886 = vld [vmem:[%s1877 + $0x40] sm:$0xff]
        %v1887 = vld [vmem:[%s1877 + $0x48] sm:$0xff]
        %v1888 = vld [vmem:[%s1877 + $0x50] sm:$0xff]
        %v1889 = vld [vmem:[%s1877 + $0x58] sm:$0xff]
        %v1890 = vld [vmem:[%s1877 + $0x60] sm:$0xff]
        %v1891 = vld [vmem:[%s1877 + $0x68] sm:$0xff]
        %v1892 = vld [vmem:[%s1877 + $0x70] sm:$0xff]
        %v1893 = vld [vmem:[%s1877 + $0x78] sm:$0xff]
        %v1895 = vunpack.c.l.b16 %v1876
        %v1896 = vpack.c.b16 %v1895, %v1895
        %vm1897 = vsmask.f32 6400
        %v1899 = vshrl.u32 %v1488, 16
        %v1901 = vrot.slane %v1899, 1
        %v1902 = vshll.u32 %v1488, 16
        %v1904 = vrot.slane %v1902, 2
        %v1905 = vor.u32 %v1901, %v1904
        %v1906 = vrot.slane %v690, 1
        %v1907 = vrot.slane %v686, 2
        %v1908 = vor.u32 %v1906, %v1907
        %v1909 = vsel %vm1897, %v1905, %v1908
        %v1910 = vrot.slane %v698, 1
        %v1911 = vrot.slane %v694, 2
        %v1912 = vor.u32 %v1910, %v1911
        %v1913 = vsel %vm1897, %v1908, %v1912
        %v1914 = vrot.slane %v706, 1
        %v1915 = vrot.slane %v702, 2
        %v1916 = vor.u32 %v1914, %v1915
        %v1917 = vsel %vm1897, %v1912, %v1916
        %v1918 = vrot.slane %v714, 1
        %v1919 = vrot.slane %v710, 2
        %v1920 = vor.u32 %v1918, %v1919
        %v1921 = vsel %vm1897, %v1916, %v1920
        %v1922 = vrot.slane %v722, 1
        %v1923 = vrot.slane %v718, 2
        %v1924 = vor.u32 %v1922, %v1923
        %v1925 = vsel %vm1897, %v1920, %v1924
        %v1926 = vrot.slane %v730, 1
        %v1927 = vrot.slane %v726, 2
        %v1928 = vor.u32 %v1926, %v1927
        %v1929 = vsel %vm1897, %v1924, %v1928
        %v1930 = vrot.slane %v738, 1
        %v1931 = vrot.slane %v734, 2
        %v1932 = vor.u32 %v1930, %v1931
        %v1933 = vsel %vm1897, %v1928, %v1932
        %v1934 = vrot.slane %v746, 1
        %v1935 = vrot.slane %v742, 2
        %v1936 = vor.u32 %v1934, %v1935
        %v1937 = vsel %vm1897, %v1932, %v1936
        %v1938 = vrot.slane %v754, 1
        %v1939 = vrot.slane %v750, 2
        %v1940 = vor.u32 %v1938, %v1939
        %v1941 = vsel %vm1897, %v1936, %v1940
        %v1942 = vrot.slane %v762, 1
        %v1943 = vrot.slane %v758, 2
        %v1944 = vor.u32 %v1942, %v1943
        %v1945 = vsel %vm1897, %v1940, %v1944
        %v1946 = vrot.slane %v770, 1
        %v1947 = vrot.slane %v766, 2
        %v1948 = vor.u32 %v1946, %v1947
        %v1949 = vsel %vm1897, %v1944, %v1948
        %v1950 = vrot.slane %v778, 1
        %v1951 = vrot.slane %v774, 2
        %v1952 = vor.u32 %v1950, %v1951
        %v1953 = vsel %vm1897, %v1948, %v1952
        %v1954 = vrot.slane %v786, 1
        %v1955 = vrot.slane %v782, 2
        %v1956 = vor.u32 %v1954, %v1955
        %v1957 = vsel %vm1897, %v1952, %v1956
        %v1958 = vrot.slane %v794, 1
        %v1959 = vrot.slane %v790, 2
        %v1960 = vor.u32 %v1958, %v1959
        %v1961 = vsel %vm1897, %v1956, %v1960
        %v1962 = vrot.slane %v802, 1
        %v1963 = vrot.slane %v798, 2
        %v1964 = vor.u32 %v1962, %v1963
        %v1965 = vsel %vm1897, %v1960, %v1964
        %v1967 = vshrl.u32 %v1896, 16
        %v1969 = vrot.slane %v1967, 1
        %v1970 = vshll.u32 %v1896, 16
        %v1972 = vrot.slane %v1970, 2
        %v1973 = vor.u32 %v1969, %v1972
        %v1974 = vsel %vm1897, %v1964, %v1973
        %v2007 = vunpack.c.l.b16 %v1878
        %v2008 = vunpack.c.h.b16 %v1878
        %v2009 = vunpack.c.l.b16 %v1879
        %v2010 = vunpack.c.h.b16 %v1879
        %v2011 = vunpack.c.l.b16 %v1880
        %v2012 = vunpack.c.h.b16 %v1880
        %v2013 = vunpack.c.l.b16 %v1881
        %v2014 = vunpack.c.h.b16 %v1881
        %v2015 = vunpack.c.l.b16 %v1882
        %v2016 = vunpack.c.h.b16 %v1882
        %v2017 = vunpack.c.l.b16 %v1883
        %v2018 = vunpack.c.h.b16 %v1883
        %v2019 = vunpack.c.l.b16 %v1884
        %v2020 = vunpack.c.h.b16 %v1884
        %v2021 = vunpack.c.l.b16 %v1885
        %v2022 = vunpack.c.h.b16 %v1885
        %v2023 = vunpack.c.l.b16 %v1886
        %v2024 = vunpack.c.h.b16 %v1886
        %v2025 = vunpack.c.l.b16 %v1887
        %v2026 = vunpack.c.h.b16 %v1887
        %v2027 = vunpack.c.l.b16 %v1888
        %v2028 = vunpack.c.h.b16 %v1888
        %v2029 = vunpack.c.l.b16 %v1889
        %v2030 = vunpack.c.h.b16 %v1889
        %v2031 = vunpack.c.l.b16 %v1890
        %v2032 = vunpack.c.h.b16 %v1890
        %v2033 = vunpack.c.l.b16 %v1891
        %v2034 = vunpack.c.h.b16 %v1891
        %v2035 = vunpack.c.l.b16 %v1892
        %v2036 = vunpack.c.h.b16 %v1892
        %v2037 = vunpack.c.l.b16 %v1893
        %v2038 = vunpack.c.h.b16 %v1893
        %v2039 = vpack.c.b16 %v2009, %v2007
        %v2040 = vpack.c.b16 %v2010, %v2008
        %v2041 = vpack.c.b16 %v2013, %v2011
        %v2042 = vpack.c.b16 %v2014, %v2012
        %v2043 = vpack.c.b16 %v2017, %v2015
        %v2044 = vpack.c.b16 %v2018, %v2016
        %v2045 = vpack.c.b16 %v2021, %v2019
        %v2046 = vpack.c.b16 %v2022, %v2020
        %v2047 = vpack.c.b16 %v2025, %v2023
        %v2048 = vpack.c.b16 %v2026, %v2024
        %v2049 = vpack.c.b16 %v2029, %v2027
        %v2050 = vpack.c.b16 %v2030, %v2028
        %v2051 = vpack.c.b16 %v2033, %v2031
        %v2052 = vpack.c.b16 %v2034, %v2032
        %v2053 = vpack.c.b16 %v2037, %v2035
        %v2054 = vpack.c.b16 %v2038, %v2036
        %2071 = vmatprep.subr.bf16.mxu0 %v2040
        %2072 = vmatpush1.bf16.msra.mxu0 %v2039
        %2073 = vmatprep.subr.bf16.mxu0 %v2042
        %2074 = vmatpush1.bf16.msra.mxu0 %v2041
        %2075 = vmatprep.subr.bf16.mxu0 %v2044
        %2076 = vmatpush1.bf16.msra.mxu0 %v2043
        %2077 = vmatprep.subr.bf16.mxu0 %v2046
        %2078 = vmatpush1.bf16.msra.mxu0 %v2045
        %2079 = vmatprep.subr.bf16.mxu0 %v2048
        %2080 = vmatpush1.bf16.msra.mxu0 %v2047
        %2081 = vmatprep.subr.bf16.mxu0 %v2050
        %2082 = vmatpush1.bf16.msra.mxu0 %v2049
        %2083 = vmatprep.subr.bf16.mxu0 %v2052
        %2084 = vmatpush1.bf16.msra.mxu0 %v2051
        %2085 = vmatprep.subr.bf16.mxu0 %v2054
        %2086 = vmatpush1.bf16.msra.mxu0 %v2053
        %2087 = vmatprep.subr.bf16.mxu0 0
        %2088 = vmatpush1.bf16.msra.mxu0 0
        %2089 = vmatprep.subr.bf16.mxu0 0
        %2090 = vmatpush1.bf16.msra.mxu0 0
        %2091 = vmatprep.subr.bf16.mxu0 0
        %2092 = vmatpush1.bf16.msra.mxu0 0
        %2093 = vmatprep.subr.bf16.mxu0 0
        %2094 = vmatpush1.bf16.msra.mxu0 0
        %2095 = vmatprep.subr.bf16.mxu0 0
        %2096 = vmatpush1.bf16.msra.mxu0 0
        %2097 = vmatprep.subr.bf16.mxu0 0
        %2098 = vmatpush1.bf16.msra.mxu0 0
        %2099 = vmatprep.subr.bf16.mxu0 0
        %2100 = vmatpush1.bf16.msra.mxu0 0
        %2101 = vmatprep.subr.bf16.mxu0 0
        %2102 = vmatpush1.bf16.msra.mxu0 0
        %2103 = vmatprep.mubr.bf16.mxu0 0
        %2104 = vmatmul.mubr.bf16.gmra.mrb[0].mxu0 %v1909
        %v2105 = vpop.f32.mrb[0].mxu0
        %v2106 = vadd.f32 0.0, %v2105
        %v2107 = vpop.f32.mrb[0].mxu0
        %v2108 = vadd.f32 0.0, %v2107
        %v2109 = vpop.f32.mrb[0].mxu0
        %v2110 = vadd.f32 0.0, %v2109
        %v2111 = vpop.f32.mrb[0].mxu0
        %v2112 = vadd.f32 0.0, %v2111
        %2113 = vmatprep.mubr.bf16.mxu0 0
        %2114 = vmatmul.mubr.bf16.gmra.mrb[0].mxu0 %v1913
        %v2115 = vpop.f32.mrb[0].mxu0
        %v2116 = vadd.f32 0.0, %v2115
        %v2117 = vpop.f32.mrb[0].mxu0
        %v2118 = vadd.f32 0.0, %v2117
        %v2119 = vpop.f32.mrb[0].mxu0
        %v2120 = vadd.f32 0.0, %v2119
        %v2121 = vpop.f32.mrb[0].mxu0
        %v2122 = vadd.f32 0.0, %v2121
        %2123 = vmatprep.mubr.bf16.mxu0 0
        %2124 = vmatmul.mubr.bf16.gmra.mrb[0].mxu0 %v1917
        %v2125 = vpop.f32.mrb[0].mxu0
        %v2126 = vadd.f32 0.0, %v2125
        %v2127 = vpop.f32.mrb[0].mxu0
        %v2128 = vadd.f32 0.0, %v2127
        %v2129 = vpop.f32.mrb[0].mxu0
        %v2130 = vadd.f32 0.0, %v2129
        %v2131 = vpop.f32.mrb[0].mxu0
        %v2132 = vadd.f32 0.0, %v2131
        %2133 = vmatprep.mubr.bf16.mxu0 0
        %2134 = vmatmul.mubr.bf16.gmra.mrb[0].mxu0 %v1921
        %v2135 = vpop.f32.mrb[0].mxu0
        %v2136 = vadd.f32 0.0, %v2135
        %v2137 = vpop.f32.mrb[0].mxu0
        %v2138 = vadd.f32 0.0, %v2137
        %v2139 = vpop.f32.mrb[0].mxu0
        %v2140 = vadd.f32 0.0, %v2139
        %v2141 = vpop.f32.mrb[0].mxu0
        %v2142 = vadd.f32 0.0, %v2141
        %2143 = vmatprep.mubr.bf16.mxu0 0
        %2144 = vmatmul.mubr.bf16.gmra.mrb[0].mxu0 %v1925
        %v2145 = vpop.f32.mrb[0].mxu0
        %v2146 = vadd.f32 0.0, %v2145
        %v2147 = vpop.f32.mrb[0].mxu0
        %v2148 = vadd.f32 0.0, %v2147
        %v2149 = vpop.f32.mrb[0].mxu0
        %v2150 = vadd.f32 0.0, %v2149
        %v2151 = vpop.f32.mrb[0].mxu0
        %v2152 = vadd.f32 0.0, %v2151
        %2153 = vmatprep.mubr.bf16.mxu0 0
        %2154 = vmatmul.mubr.bf16.gmra.mrb[0].mxu0 %v1929
        %v2155 = vpop.f32.mrb[0].mxu0
        %v2156 = vadd.f32 0.0, %v2155
        %v2157 = vpop.f32.mrb[0].mxu0
        %v2158 = vadd.f32 0.0, %v2157
        %v2159 = vpop.f32.mrb[0].mxu0
        %v2160 = vadd.f32 0.0, %v2159
        %v2161 = vpop.f32.mrb[0].mxu0
        %v2162 = vadd.f32 0.0, %v2161
        %2163 = vmatprep.mubr.bf16.mxu0 0
        %2164 = vmatmul.mubr.bf16.gmra.mrb[0].mxu0 %v1933
        %v2165 = vpop.f32.mrb[0].mxu0
        %v2166 = vadd.f32 0.0, %v2165
        %v2167 = vpop.f32.mrb[0].mxu0
        %v2168 = vadd.f32 0.0, %v2167
        %v2169 = vpop.f32.mrb[0].mxu0
        %v2170 = vadd.f32 0.0, %v2169
        %v2171 = vpop.f32.mrb[0].mxu0
        %v2172 = vadd.f32 0.0, %v2171
        %2173 = vmatprep.mubr.bf16.mxu0 0
        %2174 = vmatmul.mubr.bf16.gmra.mrb[0].mxu0 %v1937
        %v2175 = vpop.f32.mrb[0].mxu0
        %v2176 = vadd.f32 0.0, %v2175
        %v2177 = vpop.f32.mrb[0].mxu0
        %v2178 = vadd.f32 0.0, %v2177
        %v2179 = vpop.f32.mrb[0].mxu0
        %v2180 = vadd.f32 0.0, %v2179
        %v2181 = vpop.f32.mrb[0].mxu0
        %v2182 = vadd.f32 0.0, %v2181
        %2183 = vmatprep.mubr.bf16.mxu0 0
        %2184 = vmatmul.mubr.bf16.gmra.mrb[0].mxu0 %v1941
        %v2185 = vpop.f32.mrb[0].mxu0
        %v2186 = vadd.f32 0.0, %v2185
        %v2187 = vpop.f32.mrb[0].mxu0
        %v2188 = vadd.f32 0.0, %v2187
        %v2189 = vpop.f32.mrb[0].mxu0
        %v2190 = vadd.f32 0.0, %v2189
        %v2191 = vpop.f32.mrb[0].mxu0
        %v2192 = vadd.f32 0.0, %v2191
        %2193 = vmatprep.mubr.bf16.mxu0 0
        %2194 = vmatmul.mubr.bf16.gmra.mrb[0].mxu0 %v1945
        %v2195 = vpop.f32.mrb[0].mxu0
        %v2196 = vadd.f32 0.0, %v2195
        %v2197 = vpop.f32.mrb[0].mxu0
        %v2198 = vadd.f32 0.0, %v2197
        %v2199 = vpop.f32.mrb[0].mxu0
        %v2200 = vadd.f32 0.0, %v2199
        %v2201 = vpop.f32.mrb[0].mxu0
        %v2202 = vadd.f32 0.0, %v2201
        %2203 = vmatprep.mubr.bf16.mxu0 0
        %2204 = vmatmul.mubr.bf16.gmra.mrb[0].mxu0 %v1949
        %v2205 = vpop.f32.mrb[0].mxu0
        %v2206 = vadd.f32 0.0, %v2205
        %v2207 = vpop.f32.mrb[0].mxu0
        %v2208 = vadd.f32 0.0, %v2207
        %v2209 = vpop.f32.mrb[0].mxu0
        %v2210 = vadd.f32 0.0, %v2209
        %v2211 = vpop.f32.mrb[0].mxu0
        %v2212 = vadd.f32 0.0, %v2211
        %2213 = vmatprep.mubr.bf16.mxu0 0
        %2214 = vmatmul.mubr.bf16.gmra.mrb[0].mxu0 %v1953
        %v2215 = vpop.f32.mrb[0].mxu0
        %v2216 = vadd.f32 0.0, %v2215
        %v2217 = vpop.f32.mrb[0].mxu0
        %v2218 = vadd.f32 0.0, %v2217
        %v2219 = vpop.f32.mrb[0].mxu0
        %v2220 = vadd.f32 0.0, %v2219
        %v2221 = vpop.f32.mrb[0].mxu0
        %v2222 = vadd.f32 0.0, %v2221
        %2223 = vmatprep.mubr.bf16.mxu0 0
        %2224 = vmatmul.mubr.bf16.gmra.mrb[0].mxu0 %v1957
        %v2225 = vpop.f32.mrb[0].mxu0
        %v2226 = vadd.f32 0.0, %v2225
        %v2227 = vpop.f32.mrb[0].mxu0
        %v2228 = vadd.f32 0.0, %v2227
        %v2229 = vpop.f32.mrb[0].mxu0
        %v2230 = vadd.f32 0.0, %v2229
        %v2231 = vpop.f32.mrb[0].mxu0
        %v2232 = vadd.f32 0.0, %v2231
        %2233 = vmatprep.mubr.bf16.mxu0 0
        %2234 = vmatmul.mubr.bf16.gmra.mrb[0].mxu0 %v1961
        %v2235 = vpop.f32.mrb[0].mxu0
        %v2236 = vadd.f32 0.0, %v2235
        %v2237 = vpop.f32.mrb[0].mxu0
        %v2238 = vadd.f32 0.0, %v2237
        %v2239 = vpop.f32.mrb[0].mxu0
        %v2240 = vadd.f32 0.0, %v2239
        %v2241 = vpop.f32.mrb[0].mxu0
        %v2242 = vadd.f32 0.0, %v2241
        %2243 = vmatprep.mubr.bf16.mxu0 0
        %2244 = vmatmul.mubr.bf16.gmra.mrb[0].mxu0 %v1965
        %v2245 = vpop.f32.mrb[0].mxu0
        %v2246 = vadd.f32 0.0, %v2245
        %v2247 = vpop.f32.mrb[0].mxu0
        %v2248 = vadd.f32 0.0, %v2247
        %v2249 = vpop.f32.mrb[0].mxu0
        %v2250 = vadd.f32 0.0, %v2249
        %v2251 = vpop.f32.mrb[0].mxu0
        %v2252 = vadd.f32 0.0, %v2251
        %2253 = vmatprep.mubr.bf16.mxu0 0
        %2254 = vmatmul.mubr.bf16.gmra.mrb[0].mxu0 %v1974
        %v2255 = vpop.f32.mrb[0].mxu0
        %v2256 = vadd.f32 0.0, %v2255
        %v2257 = vpop.f32.mrb[0].mxu0
        %v2258 = vadd.f32 0.0, %v2257
        %v2259 = vpop.f32.mrb[0].mxu0
        %v2260 = vadd.f32 0.0, %v2259
        %v2261 = vpop.f32.mrb[0].mxu0
        %v2262 = vadd.f32 0.0, %v2261
        %2263 = vdwg.mxu0
        %v2264 = vadd.f32 %v1812, %v2106
        %v2265 = vadd.f32 %v1813, %v2108
        %v2266 = vadd.f32 %v1814, %v2110
        %v2267 = vadd.f32 %v1815, %v2112
        %v2268 = vadd.f32 %v1816, %v2116
        %v2269 = vadd.f32 %v1817, %v2118
        %v2270 = vadd.f32 %v1818, %v2120
        %v2271 = vadd.f32 %v1819, %v2122
        %v2272 = vadd.f32 %v1820, %v2126
        %v2273 = vadd.f32 %v1821, %v2128
        %v2274 = vadd.f32 %v1822, %v2130
        %v2275 = vadd.f32 %v1823, %v2132
        %v2276 = vadd.f32 %v1824, %v2136
        %v2277 = vadd.f32 %v1825, %v2138
        %v2278 = vadd.f32 %v1826, %v2140
        %v2279 = vadd.f32 %v1827, %v2142
        %v2280 = vadd.f32 %v1828, %v2146
        %v2281 = vadd.f32 %v1829, %v2148
        %v2282 = vadd.f32 %v1830, %v2150
        %v2283 = vadd.f32 %v1831, %v2152
        %v2284 = vadd.f32 %v1832, %v2156
        %v2285 = vadd.f32 %v1833, %v2158
        %v2286 = vadd.f32 %v1834, %v2160
        %v2287 = vadd.f32 %v1835, %v2162
        %v2288 = vadd.f32 %v1836, %v2166
        %v2289 = vadd.f32 %v1837, %v2168
        %v2290 = vadd.f32 %v1838, %v2170
        %v2291 = vadd.f32 %v1839, %v2172
        %v2292 = vadd.f32 %v1840, %v2176
        %v2293 = vadd.f32 %v1841, %v2178
        %v2294 = vadd.f32 %v1842, %v2180
        %v2295 = vadd.f32 %v1843, %v2182
        %v2296 = vadd.f32 %v1844, %v2186
        %v2297 = vadd.f32 %v1845, %v2188
        %v2298 = vadd.f32 %v1846, %v2190
        %v2299 = vadd.f32 %v1847, %v2192
        %v2300 = vadd.f32 %v1848, %v2196
        %v2301 = vadd.f32 %v1849, %v2198
        %v2302 = vadd.f32 %v1850, %v2200
        %v2303 = vadd.f32 %v1851, %v2202
        %v2304 = vadd.f32 %v1852, %v2206
        %v2305 = vadd.f32 %v1853, %v2208
        %v2306 = vadd.f32 %v1854, %v2210
        %v2307 = vadd.f32 %v1855, %v2212
        %v2308 = vadd.f32 %v1856, %v2216
        %v2309 = vadd.f32 %v1857, %v2218
        %v2310 = vadd.f32 %v1858, %v2220
        %v2311 = vadd.f32 %v1859, %v2222
        %v2312 = vadd.f32 %v1860, %v2226
        %v2313 = vadd.f32 %v1861, %v2228
        %v2314 = vadd.f32 %v1862, %v2230
        %v2315 = vadd.f32 %v1863, %v2232
        %v2316 = vadd.f32 %v1864, %v2236
        %v2317 = vadd.f32 %v1865, %v2238
        %v2318 = vadd.f32 %v1866, %v2240
        %v2319 = vadd.f32 %v1867, %v2242
        %v2320 = vadd.f32 %v1868, %v2246
        %v2321 = vadd.f32 %v1869, %v2248
        %v2322 = vadd.f32 %v1870, %v2250
        %v2323 = vadd.f32 %v1871, %v2252
        %v2324 = vadd.f32 %v1872, %v2256
        %v2325 = vadd.f32 %v1873, %v2258
        %v2326 = vadd.f32 %v1874, %v2260
        %v2327 = vadd.f32 %v1875, %v2262
        %v2328 = vld [vmem:[%s493] sm:$0xc]
        %s2329 = scalar_lea.vmem %s1, 512
        %v2330 = vld [vmem:[%s2329] sm:$0xff]
        %v2331 = vld [vmem:[%s2329 + $0x8] sm:$0xff]
        %v2332 = vld [vmem:[%s2329 + $0x10] sm:$0xff]
        %v2333 = vld [vmem:[%s2329 + $0x18] sm:$0xff]
        %v2334 = vld [vmem:[%s2329 + $0x20] sm:$0xff]
        %v2335 = vld [vmem:[%s2329 + $0x28] sm:$0xff]
        %v2336 = vld [vmem:[%s2329 + $0x30] sm:$0xff]
        %v2337 = vld [vmem:[%s2329 + $0x38] sm:$0xff]
        %v2338 = vld [vmem:[%s2329 + $0x40] sm:$0xff]
        %v2339 = vld [vmem:[%s2329 + $0x48] sm:$0xff]
        %v2340 = vld [vmem:[%s2329 + $0x50] sm:$0xff]
        %v2341 = vld [vmem:[%s2329 + $0x58] sm:$0xff]
        %v2342 = vld [vmem:[%s2329 + $0x60] sm:$0xff]
        %v2343 = vld [vmem:[%s2329 + $0x68] sm:$0xff]
        %v2344 = vld [vmem:[%s2329 + $0x70] sm:$0xff]
        %v2345 = vld [vmem:[%s2329 + $0x78] sm:$0xff]
        %v2347 = vunpack.c.l.b16 %v2328
        %v2348 = vpack.c.b16 %v628, %v2347
        %vm2349 = vcmask 1045504
        %v2350 = vrot.slane %v2348, 2
        %v2351 = vrot.slane %v661, 2
        %v2352 = vsel %vm2349, %v2350, %v2351
        %v2353 = vrot.slane %v662, 2
        %v2354 = vsel %vm2349, %v2351, %v2353
        %v2355 = vrot.slane %v663, 2
        %v2356 = vsel %vm2349, %v2353, %v2355
        %v2357 = vrot.slane %v664, 2
        %v2358 = vsel %vm2349, %v2355, %v2357
        %v2359 = vrot.slane %v665, 2
        %v2360 = vsel %vm2349, %v2357, %v2359
        %v2361 = vrot.slane %v666, 2
        %v2362 = vsel %vm2349, %v2359, %v2361
        %v2363 = vrot.slane %v667, 2
        %v2364 = vsel %vm2349, %v2361, %v2363
        %v2365 = vrot.slane %v668, 2
        %v2366 = vsel %vm2349, %v2363, %v2365
        %v2367 = vrot.slane %v669, 2
        %v2368 = vsel %vm2349, %v2365, %v2367
        %v2369 = vrot.slane %v670, 2
        %v2370 = vsel %vm2349, %v2367, %v2369
        %v2371 = vrot.slane %v671, 2
        %v2372 = vsel %vm2349, %v2369, %v2371
        %v2373 = vrot.slane %v672, 2
        %v2374 = vsel %vm2349, %v2371, %v2373
        %v2375 = vrot.slane %v673, 2
        %v2376 = vsel %vm2349, %v2373, %v2375
        %v2377 = vrot.slane %v674, 2
        %v2378 = vsel %vm2349, %v2375, %v2377
        %v2379 = vrot.slane %v675, 2
        %v2380 = vsel %vm2349, %v2377, %v2379
        %v2381 = vrot.slane %v1896, 2
        %v2382 = vsel %vm2349, %v2379, %v2381
        %v2415 = vunpack.c.l.b16 %v2330
        %v2416 = vunpack.c.h.b16 %v2330
        %v2417 = vunpack.c.l.b16 %v2331
        %v2418 = vunpack.c.h.b16 %v2331
        %v2419 = vunpack.c.l.b16 %v2332
        %v2420 = vunpack.c.h.b16 %v2332
        %v2421 = vunpack.c.l.b16 %v2333
        %v2422 = vunpack.c.h.b16 %v2333
        %v2423 = vunpack.c.l.b16 %v2334
        %v2424 = vunpack.c.h.b16 %v2334
        %v2425 = vunpack.c.l.b16 %v2335
        %v2426 = vunpack.c.h.b16 %v2335
        %v2427 = vunpack.c.l.b16 %v2336
        %v2428 = vunpack.c.h.b16 %v2336
        %v2429 = vunpack.c.l.b16 %v2337
        %v2430 = vunpack.c.h.b16 %v2337
        %v2431 = vunpack.c.l.b16 %v2338
        %v2432 = vunpack.c.h.b16 %v2338
        %v2433 = vunpack.c.l.b16 %v2339
        %v2434 = vunpack.c.h.b16 %v2339
        %v2435 = vunpack.c.l.b16 %v2340
        %v2436 = vunpack.c.h.b16 %v2340
        %v2437 = vunpack.c.l.b16 %v2341
        %v2438 = vunpack.c.h.b16 %v2341
        %v2439 = vunpack.c.l.b16 %v2342
        %v2440 = vunpack.c.h.b16 %v2342
        %v2441 = vunpack.c.l.b16 %v2343
        %v2442 = vunpack.c.h.b16 %v2343
        %v2443 = vunpack.c.l.b16 %v2344
        %v2444 = vunpack.c.h.b16 %v2344
        %v2445 = vunpack.c.l.b16 %v2345
        %v2446 = vunpack.c.h.b16 %v2345
        %v2447 = vpack.c.b16 %v2417, %v2415
        %v2448 = vpack.c.b16 %v2418, %v2416
        %v2449 = vpack.c.b16 %v2421, %v2419
        %v2450 = vpack.c.b16 %v2422, %v2420
        %v2451 = vpack.c.b16 %v2425, %v2423
        %v2452 = vpack.c.b16 %v2426, %v2424
        %v2453 = vpack.c.b16 %v2429, %v2427
        %v2454 = vpack.c.b16 %v2430, %v2428
        %v2455 = vpack.c.b16 %v2433, %v2431
        %v2456 = vpack.c.b16 %v2434, %v2432
        %v2457 = vpack.c.b16 %v2437, %v2435
        %v2458 = vpack.c.b16 %v2438, %v2436
        %v2459 = vpack.c.b16 %v2441, %v2439
        %v2460 = vpack.c.b16 %v2442, %v2440
        %v2461 = vpack.c.b16 %v2445, %v2443
        %v2462 = vpack.c.b16 %v2446, %v2444
        %2479 = vmatprep.subr.bf16.mxu0 %v2448
        %2480 = vmatpush1.bf16.msra.mxu0 %v2447
        %2481 = vmatprep.subr.bf16.mxu0 %v2450
        %2482 = vmatpush1.bf16.msra.mxu0 %v2449
        %2483 = vmatprep.subr.bf16.mxu0 %v2452
        %2484 = vmatpush1.bf16.msra.mxu0 %v2451
        %2485 = vmatprep.subr.bf16.mxu0 %v2454
        %2486 = vmatpush1.bf16.msra.mxu0 %v2453
        %2487 = vmatprep.subr.bf16.mxu0 %v2456
        %2488 = vmatpush1.bf16.msra.mxu0 %v2455
        %2489 = vmatprep.subr.bf16.mxu0 %v2458
        %2490 = vmatpush1.bf16.msra.mxu0 %v2457
        %2491 = vmatprep.subr.bf16.mxu0 %v2460
        %2492 = vmatpush1.bf16.msra.mxu0 %v2459
        %2493 = vmatprep.subr.bf16.mxu0 %v2462
        %2494 = vmatpush1.bf16.msra.mxu0 %v2461
        %2495 = vmatprep.subr.bf16.mxu0 0
        %2496 = vmatpush1.bf16.msra.mxu0 0
        %2497 = vmatprep.subr.bf16.mxu0 0
        %2498 = vmatpush1.bf16.msra.mxu0 0
        %2499 = vmatprep.subr.bf16.mxu0 0
        %2500 = vmatpush1.bf16.msra.mxu0 0
        %2501 = vmatprep.subr.bf16.mxu0 0
        %2502 = vmatpush1.bf16.msra.mxu0 0
        %2503 = vmatprep.subr.bf16.mxu0 0
        %2504 = vmatpush1.bf16.msra.mxu0 0
        %2505 = vmatprep.subr.bf16.mxu0 0
        %2506 = vmatpush1.bf16.msra.mxu0 0
        %2507 = vmatprep.subr.bf16.mxu0 0
        %2508 = vmatpush1.bf16.msra.mxu0 0
        %2509 = vmatprep.subr.bf16.mxu0 0
        %2510 = vmatpush1.bf16.msra.mxu0 0
        %2511 = vmatprep.mubr.bf16.mxu0 0
        %2512 = vmatmul.mubr.bf16.gmra.mrb[0].mxu0 %v2352
        %v2513 = vpop.f32.mrb[0].mxu0
        %v2514 = vadd.f32 0.0, %v2513
        %v2515 = vpop.f32.mrb[0].mxu0
        %v2516 = vadd.f32 0.0, %v2515
        %v2517 = vpop.f32.mrb[0].mxu0
        %v2518 = vadd.f32 0.0, %v2517
        %v2519 = vpop.f32.mrb[0].mxu0
        %v2520 = vadd.f32 0.0, %v2519
        %2521 = vmatprep.mubr.bf16.mxu0 0
        %2522 = vmatmul.mubr.bf16.gmra.mrb[0].mxu0 %v2354
        %v2523 = vpop.f32.mrb[0].mxu0
        %v2524 = vadd.f32 0.0, %v2523
        %v2525 = vpop.f32.mrb[0].mxu0
        %v2526 = vadd.f32 0.0, %v2525
        %v2527 = vpop.f32.mrb[0].mxu0
        %v2528 = vadd.f32 0.0, %v2527
        %v2529 = vpop.f32.mrb[0].mxu0
        %v2530 = vadd.f32 0.0, %v2529
        %2531 = vmatprep.mubr.bf16.mxu0 0
        %2532 = vmatmul.mubr.bf16.gmra.mrb[0].mxu0 %v2356
        %v2533 = vpop.f32.mrb[0].mxu0
        %v2534 = vadd.f32 0.0, %v2533
        %v2535 = vpop.f32.mrb[0].mxu0
        %v2536 = vadd.f32 0.0, %v2535
        %v2537 = vpop.f32.mrb[0].mxu0
        %v2538 = vadd.f32 0.0, %v2537
        %v2539 = vpop.f32.mrb[0].mxu0
        %v2540 = vadd.f32 0.0, %v2539
        %2541 = vmatprep.mubr.bf16.mxu0 0
        %2542 = vmatmul.mubr.bf16.gmra.mrb[0].mxu0 %v2358
        %v2543 = vpop.f32.mrb[0].mxu0
        %v2544 = vadd.f32 0.0, %v2543
        %v2545 = vpop.f32.mrb[0].mxu0
        %v2546 = vadd.f32 0.0, %v2545
        %v2547 = vpop.f32.mrb[0].mxu0
        %v2548 = vadd.f32 0.0, %v2547
        %v2549 = vpop.f32.mrb[0].mxu0
        %v2550 = vadd.f32 0.0, %v2549
        %2551 = vmatprep.mubr.bf16.mxu0 0
        %2552 = vmatmul.mubr.bf16.gmra.mrb[0].mxu0 %v2360
        %v2553 = vpop.f32.mrb[0].mxu0
        %v2554 = vadd.f32 0.0, %v2553
        %v2555 = vpop.f32.mrb[0].mxu0
        %v2556 = vadd.f32 0.0, %v2555
        %v2557 = vpop.f32.mrb[0].mxu0
        %v2558 = vadd.f32 0.0, %v2557
        %v2559 = vpop.f32.mrb[0].mxu0
        %v2560 = vadd.f32 0.0, %v2559
        %2561 = vmatprep.mubr.bf16.mxu0 0
        %2562 = vmatmul.mubr.bf16.gmra.mrb[0].mxu0 %v2362
        %v2563 = vpop.f32.mrb[0].mxu0
        %v2564 = vadd.f32 0.0, %v2563
        %v2565 = vpop.f32.mrb[0].mxu0
        %v2566 = vadd.f32 0.0, %v2565
        %v2567 = vpop.f32.mrb[0].mxu0
        %v2568 = vadd.f32 0.0, %v2567
        %v2569 = vpop.f32.mrb[0].mxu0
        %v2570 = vadd.f32 0.0, %v2569
        %2571 = vmatprep.mubr.bf16.mxu0 0
        %2572 = vmatmul.mubr.bf16.gmra.mrb[0].mxu0 %v2364
        %v2573 = vpop.f32.mrb[0].mxu0
        %v2574 = vadd.f32 0.0, %v2573
        %v2575 = vpop.f32.mrb[0].mxu0
        %v2576 = vadd.f32 0.0, %v2575
        %v2577 = vpop.f32.mrb[0].mxu0
        %v2578 = vadd.f32 0.0, %v2577
        %v2579 = vpop.f32.mrb[0].mxu0
        %v2580 = vadd.f32 0.0, %v2579
        %2581 = vmatprep.mubr.bf16.mxu0 0
        %2582 = vmatmul.mubr.bf16.gmra.mrb[0].mxu0 %v2366
        %v2583 = vpop.f32.mrb[0].mxu0
        %v2584 = vadd.f32 0.0, %v2583
        %v2585 = vpop.f32.mrb[0].mxu0
        %v2586 = vadd.f32 0.0, %v2585
        %v2587 = vpop.f32.mrb[0].mxu0
        %v2588 = vadd.f32 0.0, %v2587
        %v2589 = vpop.f32.mrb[0].mxu0
        %v2590 = vadd.f32 0.0, %v2589
        %2591 = vmatprep.mubr.bf16.mxu0 0
        %2592 = vmatmul.mubr.bf16.gmra.mrb[0].mxu0 %v2368
        %v2593 = vpop.f32.mrb[0].mxu0
        %v2594 = vadd.f32 0.0, %v2593
        %v2595 = vpop.f32.mrb[0].mxu0
        %v2596 = vadd.f32 0.0, %v2595
        %v2597 = vpop.f32.mrb[0].mxu0
        %v2598 = vadd.f32 0.0, %v2597
        %v2599 = vpop.f32.mrb[0].mxu0
        %v2600 = vadd.f32 0.0, %v2599
        %2601 = vmatprep.mubr.bf16.mxu0 0
        %2602 = vmatmul.mubr.bf16.gmra.mrb[0].mxu0 %v2370
        %v2603 = vpop.f32.mrb[0].mxu0
        %v2604 = vadd.f32 0.0, %v2603
        %v2605 = vpop.f32.mrb[0].mxu0
        %v2606 = vadd.f32 0.0, %v2605
        %v2607 = vpop.f32.mrb[0].mxu0
        %v2608 = vadd.f32 0.0, %v2607
        %v2609 = vpop.f32.mrb[0].mxu0
        %v2610 = vadd.f32 0.0, %v2609
        %2611 = vmatprep.mubr.bf16.mxu0 0
        %2612 = vmatmul.mubr.bf16.gmra.mrb[0].mxu0 %v2372
        %v2613 = vpop.f32.mrb[0].mxu0
        %v2614 = vadd.f32 0.0, %v2613
        %v2615 = vpop.f32.mrb[0].mxu0
        %v2616 = vadd.f32 0.0, %v2615
        %v2617 = vpop.f32.mrb[0].mxu0
        %v2618 = vadd.f32 0.0, %v2617
        %v2619 = vpop.f32.mrb[0].mxu0
        %v2620 = vadd.f32 0.0, %v2619
        %2621 = vmatprep.mubr.bf16.mxu0 0
        %2622 = vmatmul.mubr.bf16.gmra.mrb[0].mxu0 %v2374
        %v2623 = vpop.f32.mrb[0].mxu0
        %v2624 = vadd.f32 0.0, %v2623
        %v2625 = vpop.f32.mrb[0].mxu0
        %v2626 = vadd.f32 0.0, %v2625
        %v2627 = vpop.f32.mrb[0].mxu0
        %v2628 = vadd.f32 0.0, %v2627
        %v2629 = vpop.f32.mrb[0].mxu0
        %v2630 = vadd.f32 0.0, %v2629
        %2631 = vmatprep.mubr.bf16.mxu0 0
        %2632 = vmatmul.mubr.bf16.gmra.mrb[0].mxu0 %v2376
        %v2633 = vpop.f32.mrb[0].mxu0
        %v2634 = vadd.f32 0.0, %v2633
        %v2635 = vpop.f32.mrb[0].mxu0
        %v2636 = vadd.f32 0.0, %v2635
        %v2637 = vpop.f32.mrb[0].mxu0
        %v2638 = vadd.f32 0.0, %v2637
        %v2639 = vpop.f32.mrb[0].mxu0
        %v2640 = vadd.f32 0.0, %v2639
        %2641 = vmatprep.mubr.bf16.mxu0 0
        %2642 = vmatmul.mubr.bf16.gmra.mrb[0].mxu0 %v2378
        %v2643 = vpop.f32.mrb[0].mxu0
        %v2644 = vadd.f32 0.0, %v2643
        %v2645 = vpop.f32.mrb[0].mxu0
        %v2646 = vadd.f32 0.0, %v2645
        %v2647 = vpop.f32.mrb[0].mxu0
        %v2648 = vadd.f32 0.0, %v2647
        %v2649 = vpop.f32.mrb[0].mxu0
        %v2650 = vadd.f32 0.0, %v2649
        %2651 = vmatprep.mubr.bf16.mxu0 0
        %2652 = vmatmul.mubr.bf16.gmra.mrb[0].mxu0 %v2380
        %v2653 = vpop.f32.mrb[0].mxu0
        %v2654 = vadd.f32 0.0, %v2653
        %v2655 = vpop.f32.mrb[0].mxu0
        %v2656 = vadd.f32 0.0, %v2655
        %v2657 = vpop.f32.mrb[0].mxu0
        %v2658 = vadd.f32 0.0, %v2657
        %v2659 = vpop.f32.mrb[0].mxu0
        %v2660 = vadd.f32 0.0, %v2659
        %2661 = vmatprep.mubr.bf16.mxu0 0
        %2662 = vmatmul.mubr.bf16.gmra.mrb[0].mxu0 %v2382
        %v2663 = vpop.f32.mrb[0].mxu0
        %v2664 = vadd.f32 0.0, %v2663
        %v2665 = vpop.f32.mrb[0].mxu0
        %v2666 = vadd.f32 0.0, %v2665
        %v2667 = vpop.f32.mrb[0].mxu0
        %v2668 = vadd.f32 0.0, %v2667
        %v2669 = vpop.f32.mrb[0].mxu0
        %v2670 = vadd.f32 0.0, %v2669
        %2671 = vdwg.mxu0
        %v2672 = vadd.f32 %v2264, %v2514
        %v2673 = vadd.f32 %v2265, %v2516
        %v2674 = vadd.f32 %v2266, %v2518
        %v2675 = vadd.f32 %v2267, %v2520
        %v2676 = vadd.f32 %v2268, %v2524
        %v2677 = vadd.f32 %v2269, %v2526
        %v2678 = vadd.f32 %v2270, %v2528
        %v2679 = vadd.f32 %v2271, %v2530
        %v2680 = vadd.f32 %v2272, %v2534
        %v2681 = vadd.f32 %v2273, %v2536
        %v2682 = vadd.f32 %v2274, %v2538
        %v2683 = vadd.f32 %v2275, %v2540
        %v2684 = vadd.f32 %v2276, %v2544
        %v2685 = vadd.f32 %v2277, %v2546
        %v2686 = vadd.f32 %v2278, %v2548
        %v2687 = vadd.f32 %v2279, %v2550
        %v2688 = vadd.f32 %v2280, %v2554
        %v2689 = vadd.f32 %v2281, %v2556
        %v2690 = vadd.f32 %v2282, %v2558
        %v2691 = vadd.f32 %v2283, %v2560
        %v2692 = vadd.f32 %v2284, %v2564
        %v2693 = vadd.f32 %v2285, %v2566
        %v2694 = vadd.f32 %v2286, %v2568
        %v2695 = vadd.f32 %v2287, %v2570
        %v2696 = vadd.f32 %v2288, %v2574
        %v2697 = vadd.f32 %v2289, %v2576
        %v2698 = vadd.f32 %v2290, %v2578
        %v2699 = vadd.f32 %v2291, %v2580
        %v2700 = vadd.f32 %v2292, %v2584
        %v2701 = vadd.f32 %v2293, %v2586
        %v2702 = vadd.f32 %v2294, %v2588
        %v2703 = vadd.f32 %v2295, %v2590
        %v2704 = vadd.f32 %v2296, %v2594
        %v2705 = vadd.f32 %v2297, %v2596
        %v2706 = vadd.f32 %v2298, %v2598
        %v2707 = vadd.f32 %v2299, %v2600
        %v2708 = vadd.f32 %v2300, %v2604
        %v2709 = vadd.f32 %v2301, %v2606
        %v2710 = vadd.f32 %v2302, %v2608
        %v2711 = vadd.f32 %v2303, %v2610
        %v2712 = vadd.f32 %v2304, %v2614
        %v2713 = vadd.f32 %v2305, %v2616
        %v2714 = vadd.f32 %v2306, %v2618
        %v2715 = vadd.f32 %v2307, %v2620
        %v2716 = vadd.f32 %v2308, %v2624
        %v2717 = vadd.f32 %v2309, %v2626
        %v2718 = vadd.f32 %v2310, %v2628
        %v2719 = vadd.f32 %v2311, %v2630
        %v2720 = vadd.f32 %v2312, %v2634
        %v2721 = vadd.f32 %v2313, %v2636
        %v2722 = vadd.f32 %v2314, %v2638
        %v2723 = vadd.f32 %v2315, %v2640
        %v2724 = vadd.f32 %v2316, %v2644
        %v2725 = vadd.f32 %v2317, %v2646
        %v2726 = vadd.f32 %v2318, %v2648
        %v2727 = vadd.f32 %v2319, %v2650
        %v2728 = vadd.f32 %v2320, %v2654
        %v2729 = vadd.f32 %v2321, %v2656
        %v2730 = vadd.f32 %v2322, %v2658
        %v2731 = vadd.f32 %v2323, %v2660
        %v2732 = vadd.f32 %v2324, %v2664
        %v2733 = vadd.f32 %v2325, %v2666
        %v2734 = vadd.f32 %v2326, %v2668
        %v2735 = vadd.f32 %v2327, %v2670
        %v2736 = vld [vmem:[%s2] sm:$0x3]
        %v2738 = vlaneseq
        %v2739 = vshrl.u32 %v2738, 7
        %v2740 = vsub.s32 0, %v2739
        %v2741 = vrot.slane %v2736, %v2740
        %v2742 = vlaneseq
        %v2743 = vshrl.u32 %v2742, 7
        %v2744 = vsub.s32 1, %v2743
        %v2745 = vrot.slane %v2736, %v2744
        %v2748 = vadd.f32 %v2672, %v2741
        %v2749 = vadd.f32 %v2673, %v2745
        %v2750 = vadd.f32 %v2674, %v2741
        %v2751 = vadd.f32 %v2675, %v2745
        %v2752 = vadd.f32 %v2676, %v2741
        %v2753 = vadd.f32 %v2677, %v2745
        %v2754 = vadd.f32 %v2678, %v2741
        %v2755 = vadd.f32 %v2679, %v2745
        %v2756 = vadd.f32 %v2680, %v2741
        %v2757 = vadd.f32 %v2681, %v2745
        %v2758 = vadd.f32 %v2682, %v2741
        %v2759 = vadd.f32 %v2683, %v2745
        %v2760 = vadd.f32 %v2684, %v2741
        %v2761 = vadd.f32 %v2685, %v2745
        %v2762 = vadd.f32 %v2686, %v2741
        %v2763 = vadd.f32 %v2687, %v2745
        %v2764 = vadd.f32 %v2688, %v2741
        %v2765 = vadd.f32 %v2689, %v2745
        %v2766 = vadd.f32 %v2690, %v2741
        %v2767 = vadd.f32 %v2691, %v2745
        %v2768 = vadd.f32 %v2692, %v2741
        %v2769 = vadd.f32 %v2693, %v2745
        %v2770 = vadd.f32 %v2694, %v2741
        %v2771 = vadd.f32 %v2695, %v2745
        %v2772 = vadd.f32 %v2696, %v2741
        %v2773 = vadd.f32 %v2697, %v2745
        %v2774 = vadd.f32 %v2698, %v2741
        %v2775 = vadd.f32 %v2699, %v2745
        %v2776 = vadd.f32 %v2700, %v2741
        %v2777 = vadd.f32 %v2701, %v2745
        %v2778 = vadd.f32 %v2702, %v2741
        %v2779 = vadd.f32 %v2703, %v2745
        %v2780 = vadd.f32 %v2704, %v2741
        %v2781 = vadd.f32 %v2705, %v2745
        %v2782 = vadd.f32 %v2706, %v2741
        %v2783 = vadd.f32 %v2707, %v2745
        %v2784 = vadd.f32 %v2708, %v2741
        %v2785 = vadd.f32 %v2709, %v2745
        %v2786 = vadd.f32 %v2710, %v2741
        %v2787 = vadd.f32 %v2711, %v2745
        %v2788 = vadd.f32 %v2712, %v2741
        %v2789 = vadd.f32 %v2713, %v2745
        %v2790 = vadd.f32 %v2714, %v2741
        %v2791 = vadd.f32 %v2715, %v2745
        %v2792 = vadd.f32 %v2716, %v2741
        %v2793 = vadd.f32 %v2717, %v2745
        %v2794 = vadd.f32 %v2718, %v2741
        %v2795 = vadd.f32 %v2719, %v2745
        %v2796 = vadd.f32 %v2720, %v2741
        %v2797 = vadd.f32 %v2721, %v2745
        %v2798 = vadd.f32 %v2722, %v2741
        %v2799 = vadd.f32 %v2723, %v2745
        %v2800 = vadd.f32 %v2724, %v2741
        %v2801 = vadd.f32 %v2725, %v2745
        %v2802 = vadd.f32 %v2726, %v2741
        %v2803 = vadd.f32 %v2727, %v2745
        %v2804 = vadd.f32 %v2728, %v2741
        %v2805 = vadd.f32 %v2729, %v2745
        %v2806 = vadd.f32 %v2730, %v2741
        %v2807 = vadd.f32 %v2731, %v2745
        %v2808 = vadd.f32 %v2732, %v2741
        %v2809 = vadd.f32 %v2733, %v2745
        %v2810 = vadd.f32 %v2734, %v2741
        %v2811 = vadd.f32 %v2735, %v2745
        %v2812 = vmax.f32 %v2748, 0.0
        %v2813 = vmax.f32 %v2749, 0.0
        %v2814 = vmax.f32 %v2750, 0.0
        %v2815 = vmax.f32 %v2751, 0.0
        %v2816 = vmax.f32 %v2752, 0.0
        %v2817 = vmax.f32 %v2753, 0.0
        %v2818 = vmax.f32 %v2754, 0.0
        %v2819 = vmax.f32 %v2755, 0.0
        %v2820 = vmax.f32 %v2756, 0.0
        %v2821 = vmax.f32 %v2757, 0.0
        %v2822 = vmax.f32 %v2758, 0.0
        %v2823 = vmax.f32 %v2759, 0.0
        %v2824 = vmax.f32 %v2760, 0.0
        %v2825 = vmax.f32 %v2761, 0.0
        %v2826 = vmax.f32 %v2762, 0.0
        %v2827 = vmax.f32 %v2763, 0.0
        %v2828 = vmax.f32 %v2764, 0.0
        %v2829 = vmax.f32 %v2765, 0.0
        %v2830 = vmax.f32 %v2766, 0.0
        %v2831 = vmax.f32 %v2767, 0.0
        %v2832 = vmax.f32 %v2768, 0.0
        %v2833 = vmax.f32 %v2769, 0.0
        %v2834 = vmax.f32 %v2770, 0.0
        %v2835 = vmax.f32 %v2771, 0.0
        %v2836 = vmax.f32 %v2772, 0.0
        %v2837 = vmax.f32 %v2773, 0.0
        %v2838 = vmax.f32 %v2774, 0.0
        %v2839 = vmax.f32 %v2775, 0.0
        %v2840 = vmax.f32 %v2776, 0.0
        %v2841 = vmax.f32 %v2777, 0.0
        %v2842 = vmax.f32 %v2778, 0.0
        %v2843 = vmax.f32 %v2779, 0.0
        %v2844 = vmax.f32 %v2780, 0.0
        %v2845 = vmax.f32 %v2781, 0.0
        %v2846 = vmax.f32 %v2782, 0.0
        %v2847 = vmax.f32 %v2783, 0.0
        %v2848 = vmax.f32 %v2784, 0.0
        %v2849 = vmax.f32 %v2785, 0.0
        %v2850 = vmax.f32 %v2786, 0.0
        %v2851 = vmax.f32 %v2787, 0.0
        %v2852 = vmax.f32 %v2788, 0.0
        %v2853 = vmax.f32 %v2789, 0.0
        %v2854 = vmax.f32 %v2790, 0.0
        %v2855 = vmax.f32 %v2791, 0.0
        %v2856 = vmax.f32 %v2792, 0.0
        %v2857 = vmax.f32 %v2793, 0.0
        %v2858 = vmax.f32 %v2794, 0.0
        %v2859 = vmax.f32 %v2795, 0.0
        %v2860 = vmax.f32 %v2796, 0.0
        %v2861 = vmax.f32 %v2797, 0.0
        %v2862 = vmax.f32 %v2798, 0.0
        %v2863 = vmax.f32 %v2799, 0.0
        %v2864 = vmax.f32 %v2800, 0.0
        %v2865 = vmax.f32 %v2801, 0.0
        %v2866 = vmax.f32 %v2802, 0.0
        %v2867 = vmax.f32 %v2803, 0.0
        %v2868 = vmax.f32 %v2804, 0.0
        %v2869 = vmax.f32 %v2805, 0.0
        %v2870 = vmax.f32 %v2806, 0.0
        %v2871 = vmax.f32 %v2807, 0.0
        %v2872 = vmax.f32 %v2808, 0.0
        %v2873 = vmax.f32 %v2809, 0.0
        %v2874 = vmax.f32 %v2810, 0.0
        %v2875 = vmax.f32 %v2811, 0.0
        %v2876 = vpack.c.bf16 %v2814, %v2812
        %v2877 = vpack.c.bf16 %v2815, %v2813
        %v2878 = vpack.c.bf16 %v2818, %v2816
        %v2879 = vpack.c.bf16 %v2819, %v2817
        %v2880 = vpack.c.bf16 %v2822, %v2820
        %v2881 = vpack.c.bf16 %v2823, %v2821
        %v2882 = vpack.c.bf16 %v2826, %v2824
        %v2883 = vpack.c.bf16 %v2827, %v2825
        %v2884 = vpack.c.bf16 %v2830, %v2828
        %v2885 = vpack.c.bf16 %v2831, %v2829
        %v2886 = vpack.c.bf16 %v2834, %v2832
        %v2887 = vpack.c.bf16 %v2835, %v2833
        %v2888 = vpack.c.bf16 %v2838, %v2836
        %v2889 = vpack.c.bf16 %v2839, %v2837
        %v2890 = vpack.c.bf16 %v2842, %v2840
        %v2891 = vpack.c.bf16 %v2843, %v2841
        %v2892 = vpack.c.bf16 %v2846, %v2844
        %v2893 = vpack.c.bf16 %v2847, %v2845
        %v2894 = vpack.c.bf16 %v2850, %v2848
        %v2895 = vpack.c.bf16 %v2851, %v2849
        %v2896 = vpack.c.bf16 %v2854, %v2852
        %v2897 = vpack.c.bf16 %v2855, %v2853
        %v2898 = vpack.c.bf16 %v2858, %v2856
        %v2899 = vpack.c.bf16 %v2859, %v2857
        %v2900 = vpack.c.bf16 %v2862, %v2860
        %v2901 = vpack.c.bf16 %v2863, %v2861
        %v2902 = vpack.c.bf16 %v2866, %v2864
        %v2903 = vpack.c.bf16 %v2867, %v2865
        %v2904 = vpack.c.bf16 %v2870, %v2868
        %v2905 = vpack.c.bf16 %v2871, %v2869
        %v2906 = vpack.c.bf16 %v2874, %v2872
        %v2907 = vpack.c.bf16 %v2875, %v2873
        %v2908 = vld [vmem:[%s3] sm:$0xff]
        %v2909 = vld [vmem:[%s3 + $0x8] sm:$0xff]
        %v2910 = vld [vmem:[%s3 + $0x10] sm:$0xff]
        %v2911 = vld [vmem:[%s3 + $0x18] sm:$0xff]
        %v2912 = vld [vmem:[%s3 + $0x20] sm:$0xff]
        %v2913 = vld [vmem:[%s3 + $0x28] sm:$0xff]
        %v2914 = vld [vmem:[%s3 + $0x30] sm:$0xff]
        %v2915 = vld [vmem:[%s3 + $0x38] sm:$0xff]
        %v2916 = vld [vmem:[%s3 + $0x40] sm:$0xff]
        %v2917 = vld [vmem:[%s3 + $0x48] sm:$0xff]
        %v2918 = vld [vmem:[%s3 + $0x50] sm:$0xff]
        %v2919 = vld [vmem:[%s3 + $0x58] sm:$0xff]
        %v2920 = vld [vmem:[%s3 + $0x60] sm:$0xff]
        %v2921 = vld [vmem:[%s3 + $0x68] sm:$0xff]
        %v2922 = vld [vmem:[%s3 + $0x70] sm:$0xff]
        %v2923 = vld [vmem:[%s3 + $0x78] sm:$0xff]
        %v2924 = vld [vmem:[%s3 + $0x80] sm:$0xff]
        %v2942 = vunpack.c.l.b16 %v2908
        %v2943 = vunpack.c.h.b16 %v2908
        %v2944 = vunpack.c.l.b16 %v2909
        %v2945 = vunpack.c.h.b16 %v2909
        %v2946 = vunpack.c.l.b16 %v2910
        %v2947 = vunpack.c.h.b16 %v2910
        %v2948 = vunpack.c.l.b16 %v2911
        %v2949 = vunpack.c.h.b16 %v2911
        %v2950 = vunpack.c.l.b16 %v2912
        %v2951 = vunpack.c.h.b16 %v2912
        %v2952 = vunpack.c.l.b16 %v2913
        %v2953 = vunpack.c.h.b16 %v2913
        %v2954 = vunpack.c.l.b16 %v2914
        %v2955 = vunpack.c.h.b16 %v2914
        %v2956 = vunpack.c.l.b16 %v2915
        %v2957 = vunpack.c.h.b16 %v2915
        %v2958 = vunpack.c.l.b16 %v2916
        %v2959 = vunpack.c.h.b16 %v2916
        %v2960 = vunpack.c.l.b16 %v2917
        %v2961 = vunpack.c.h.b16 %v2917
        %v2962 = vunpack.c.l.b16 %v2918
        %v2963 = vunpack.c.h.b16 %v2918
        %v2964 = vunpack.c.l.b16 %v2919
        %v2965 = vunpack.c.h.b16 %v2919
        %v2966 = vunpack.c.l.b16 %v2920
        %v2967 = vunpack.c.h.b16 %v2920
        %v2968 = vunpack.c.l.b16 %v2921
        %v2969 = vunpack.c.h.b16 %v2921
        %v2970 = vunpack.c.l.b16 %v2922
        %v2971 = vunpack.c.h.b16 %v2922
        %v2972 = vunpack.c.l.b16 %v2923
        %v2973 = vunpack.c.h.b16 %v2923
        %v2974 = vunpack.c.l.b16 %v2924
        %v2975 = vunpack.c.h.b16 %v2924
        %v2976 = vpack.c.b16 %v2944, %v2942
        %v2977 = vpack.c.b16 %v2945, %v2943
        %v2978 = vpack.c.b16 %v2948, %v2946
        %v2979 = vpack.c.b16 %v2949, %v2947
        %v2980 = vpack.c.b16 %v2952, %v2950
        %v2981 = vpack.c.b16 %v2953, %v2951
        %v2982 = vpack.c.b16 %v2956, %v2954
        %v2983 = vpack.c.b16 %v2957, %v2955
        %v2984 = vpack.c.b16 %v2960, %v2958
        %v2985 = vpack.c.b16 %v2961, %v2959
        %v2986 = vpack.c.b16 %v2964, %v2962
        %v2987 = vpack.c.b16 %v2965, %v2963
        %v2988 = vpack.c.b16 %v2968, %v2966
        %v2989 = vpack.c.b16 %v2969, %v2967
        %v2990 = vpack.c.b16 %v2972, %v2970
        %v2991 = vpack.c.b16 %v2973, %v2971
        %v2992 = vpack.c.b16 %v2974, %v2974
        %v2993 = vpack.c.b16 %v2975, %v2975
        %3012 = vmatprep.subr.bf16.mxu0 %v2877
        %3013 = vmatpush1.bf16.msra.mxu0 %v2876
        %3014 = vmatprep.subr.bf16.mxu0 %v2879
        %3015 = vmatpush1.bf16.msra.mxu0 %v2878
        %3016 = vmatprep.subr.bf16.mxu0 %v2881
        %3017 = vmatpush1.bf16.msra.mxu0 %v2880
        %3018 = vmatprep.subr.bf16.mxu0 %v2883
        %3019 = vmatpush1.bf16.msra.mxu0 %v2882
        %3020 = vmatprep.subr.bf16.mxu0 %v2885
        %3021 = vmatpush1.bf16.msra.mxu0 %v2884
        %3022 = vmatprep.subr.bf16.mxu0 %v2887
        %3023 = vmatpush1.bf16.msra.mxu0 %v2886
        %3024 = vmatprep.subr.bf16.mxu0 %v2889
        %3025 = vmatpush1.bf16.msra.mxu0 %v2888
        %3026 = vmatprep.subr.bf16.mxu0 %v2891
        %3027 = vmatpush1.bf16.msra.mxu0 %v2890
        %3028 = vmatprep.subr.bf16.mxu0 %v2893
        %3029 = vmatpush1.bf16.msra.mxu0 %v2892
        %3030 = vmatprep.subr.bf16.mxu0 %v2895
        %3031 = vmatpush1.bf16.msra.mxu0 %v2894
        %3032 = vmatprep.subr.bf16.mxu0 %v2897
        %3033 = vmatpush1.bf16.msra.mxu0 %v2896
        %3034 = vmatprep.subr.bf16.mxu0 %v2899
        %3035 = vmatpush1.bf16.msra.mxu0 %v2898
        %3036 = vmatprep.subr.bf16.mxu0 %v2901
        %3037 = vmatpush1.bf16.msra.mxu0 %v2900
        %3038 = vmatprep.subr.bf16.mxu0 %v2903
        %3039 = vmatpush1.bf16.msra.mxu0 %v2902
        %3040 = vmatprep.subr.bf16.mxu0 %v2905
        %3041 = vmatpush1.bf16.msra.mxu0 %v2904
        %3042 = vmatprep.subr.bf16.mxu0 %v2907
        %3043 = vmatpush1.bf16.msra.mxu0 %v2906
        %3044 = vmatprep.mubr.bf16.mxu0 %v2977
        %3045 = vmatmul.mubr.bf16.gmra.mrb[0].mxu0 %v2976
        %v3046 = vpop.f32.mrb[0].mxu0
        %v3047 = vadd.f32 0.0, %v3046
        %v3048 = vpop.f32.mrb[0].mxu0
        %v3049 = vadd.f32 0.0, %v3048
        %v3050 = vpop.f32.mrb[0].mxu0
        %v3051 = vadd.f32 0.0, %v3050
        %v3052 = vpop.f32.mrb[0].mxu0
        %v3053 = vadd.f32 0.0, %v3052
        %3054 = vmatprep.mubr.bf16.mxu0 %v2979
        %3055 = vmatmul.mubr.bf16.gmra.mrb[0].mxu0 %v2978
        %v3056 = vpop.f32.mrb[0].mxu0
        %v3057 = vadd.f32 0.0, %v3056
        %v3058 = vpop.f32.mrb[0].mxu0
        %v3059 = vadd.f32 0.0, %v3058
        %v3060 = vpop.f32.mrb[0].mxu0
        %v3061 = vadd.f32 0.0, %v3060
        %v3062 = vpop.f32.mrb[0].mxu0
        %v3063 = vadd.f32 0.0, %v3062
        %3064 = vmatprep.mubr.bf16.mxu0 %v2981
        %3065 = vmatmul.mubr.bf16.gmra.mrb[0].mxu0 %v2980
        %v3066 = vpop.f32.mrb[0].mxu0
        %v3067 = vadd.f32 0.0, %v3066
        %v3068 = vpop.f32.mrb[0].mxu0
        %v3069 = vadd.f32 0.0, %v3068
        %v3070 = vpop.f32.mrb[0].mxu0
        %v3071 = vadd.f32 0.0, %v3070
        %v3072 = vpop.f32.mrb[0].mxu0
        %v3073 = vadd.f32 0.0, %v3072
        %3074 = vmatprep.mubr.bf16.mxu0 %v2983
        %3075 = vmatmul.mubr.bf16.gmra.mrb[0].mxu0 %v2982
        %v3076 = vpop.f32.mrb[0].mxu0
        %v3077 = vadd.f32 0.0, %v3076
        %v3078 = vpop.f32.mrb[0].mxu0
        %v3079 = vadd.f32 0.0, %v3078
        %v3080 = vpop.f32.mrb[0].mxu0
        %v3081 = vadd.f32 0.0, %v3080
        %v3082 = vpop.f32.mrb[0].mxu0
        %v3083 = vadd.f32 0.0, %v3082
        %3084 = vmatprep.mubr.bf16.mxu0 %v2985
        %3085 = vmatmul.mubr.bf16.gmra.mrb[0].mxu0 %v2984
        %v3086 = vpop.f32.mrb[0].mxu0
        %v3087 = vadd.f32 0.0, %v3086
        %v3088 = vpop.f32.mrb[0].mxu0
        %v3089 = vadd.f32 0.0, %v3088
        %v3090 = vpop.f32.mrb[0].mxu0
        %v3091 = vadd.f32 0.0, %v3090
        %v3092 = vpop.f32.mrb[0].mxu0
        %v3093 = vadd.f32 0.0, %v3092
        %3094 = vmatprep.mubr.bf16.mxu0 %v2987
        %3095 = vmatmul.mubr.bf16.gmra.mrb[0].mxu0 %v2986
        %v3096 = vpop.f32.mrb[0].mxu0
        %v3097 = vadd.f32 0.0, %v3096
        %v3098 = vpop.f32.mrb[0].mxu0
        %v3099 = vadd.f32 0.0, %v3098
        %v3100 = vpop.f32.mrb[0].mxu0
        %v3101 = vadd.f32 0.0, %v3100
        %v3102 = vpop.f32.mrb[0].mxu0
        %v3103 = vadd.f32 0.0, %v3102
        %3104 = vmatprep.mubr.bf16.mxu0 %v2989
        %3105 = vmatmul.mubr.bf16.gmra.mrb[0].mxu0 %v2988
        %v3106 = vpop.f32.mrb[0].mxu0
        %v3107 = vadd.f32 0.0, %v3106
        %v3108 = vpop.f32.mrb[0].mxu0
        %v3109 = vadd.f32 0.0, %v3108
        %v3110 = vpop.f32.mrb[0].mxu0
        %v3111 = vadd.f32 0.0, %v3110
        %v3112 = vpop.f32.mrb[0].mxu0
        %v3113 = vadd.f32 0.0, %v3112
        %3114 = vmatprep.mubr.bf16.mxu0 %v2991
        %3115 = vmatmul.mubr.bf16.gmra.mrb[0].mxu0 %v2990
        %v3116 = vpop.f32.mrb[0].mxu0
        %v3117 = vadd.f32 0.0, %v3116
        %v3118 = vpop.f32.mrb[0].mxu0
        %v3119 = vadd.f32 0.0, %v3118
        %v3120 = vpop.f32.mrb[0].mxu0
        %v3121 = vadd.f32 0.0, %v3120
        %v3122 = vpop.f32.mrb[0].mxu0
        %v3123 = vadd.f32 0.0, %v3122
        %3124 = vmatprep.mubr.bf16.mxu0 %v2993
        %3125 = vmatmul.mubr.bf16.gmra.mrb[0].mxu0 %v2992
        %v3126 = vpop.f32.mrb[0].mxu0
        %v3127 = vadd.f32 0.0, %v3126
        %v3128 = vpop.f32.mrb[0].mxu0
        %v3129 = vadd.f32 0.0, %v3128
        %v3130 = vpop.f32.mrb[0].mxu0
        %v3131 = vpop.f32.mrb[0].mxu0
        %3132 = vdwg.mxu0
        %v3133 = vpack.c.bf16 %v3051, %v3047
        %v3134 = vpack.c.bf16 %v3053, %v3049
        %v3135 = vpack.c.bf16 %v3061, %v3057
        %v3136 = vpack.c.bf16 %v3063, %v3059
        %v3137 = vpack.c.bf16 %v3071, %v3067
        %v3138 = vpack.c.bf16 %v3073, %v3069
        %v3139 = vpack.c.bf16 %v3081, %v3077
        %v3140 = vpack.c.bf16 %v3083, %v3079
        %v3141 = vpack.c.bf16 %v3091, %v3087
        %v3142 = vpack.c.bf16 %v3093, %v3089
        %v3143 = vpack.c.bf16 %v3101, %v3097
        %v3144 = vpack.c.bf16 %v3103, %v3099
        %v3145 = vpack.c.bf16 %v3111, %v3107
        %v3146 = vpack.c.bf16 %v3113, %v3109
        %v3147 = vpack.c.bf16 %v3121, %v3117
        %v3148 = vpack.c.bf16 %v3123, %v3119
        %v3149 = vpack.c.bf16 %v3127, %v3127
        %v3150 = vpack.c.bf16 %v3129, %v3129
        %v3151 = vld [vmem:[%s4] sm:$0xf]
        %v3152 = vld [vmem:[%s4 + $0x4] sm:$0xf]
        %v3153 = vld [vmem:[%s4 + $0x8] sm:$0xf]
        %v3154 = vld [vmem:[%s4 + $0xc] sm:$0xf]
        %v3155 = vld [vmem:[%s4 + $0x10] sm:$0xf]
        %v3156 = vld [vmem:[%s4 + $0x14] sm:$0xf]
        %v3157 = vld [vmem:[%s4 + $0x18] sm:$0xf]
        %v3158 = vld [vmem:[%s4 + $0x1c] sm:$0xf]
        %v3159 = vld [vmem:[%s4 + $0x20] sm:$0xf]
        %v3160 = vld [vmem:[%s4 + $0x24] sm:$0xf]
        %v3161 = vld [vmem:[%s4 + $0x28] sm:$0xf]
        %v3162 = vld [vmem:[%s4 + $0x2c] sm:$0xf]
        %v3163 = vld [vmem:[%s4 + $0x30] sm:$0xf]
        %v3164 = vld [vmem:[%s4 + $0x34] sm:$0xf]
        %v3165 = vld [vmem:[%s4 + $0x38] sm:$0xf]
        %v3166 = vld [vmem:[%s4 + $0x3c] sm:$0xf]
        %v3167 = vld [vmem:[%s4 + $0x40] sm:$0xf]
        %v3168 = vld [vmem:[%s4 + $0x44] sm:$0xf]
        %v3169 = vld [vmem:[%s4 + $0x48] sm:$0xf]
        %v3170 = vld [vmem:[%s4 + $0x4c] sm:$0xf]
        %v3171 = vld [vmem:[%s4 + $0x50] sm:$0xf]
        %v3172 = vld [vmem:[%s4 + $0x54] sm:$0xf]
        %v3173 = vld [vmem:[%s4 + $0x58] sm:$0xf]
        %v3174 = vld [vmem:[%s4 + $0x5c] sm:$0xf]
        %v3175 = vld [vmem:[%s4 + $0x60] sm:$0xf]
        %v3176 = vld [vmem:[%s4 + $0x64] sm:$0xf]
        %v3177 = vld [vmem:[%s4 + $0x68] sm:$0xf]
        %v3178 = vld [vmem:[%s4 + $0x6c] sm:$0xf]
        %v3179 = vld [vmem:[%s4 + $0x70] sm:$0xf]
        %v3180 = vld [vmem:[%s4 + $0x74] sm:$0xf]
        %v3181 = vld [vmem:[%s4 + $0x78] sm:$0xf]
        %v3182 = vld [vmem:[%s4 + $0x7c] sm:$0xf]
        %v3215 = vunpack.c.l.b16 %v3151
        %v3216 = vunpack.c.l.b16 %v3152
        %v3217 = vunpack.c.l.b16 %v3153
        %v3218 = vunpack.c.l.b16 %v3154
        %v3219 = vunpack.c.l.b16 %v3155
        %v3220 = vunpack.c.l.b16 %v3156
        %v3221 = vunpack.c.l.b16 %v3157
        %v3222 = vunpack.c.l.b16 %v3158
        %v3223 = vunpack.c.l.b16 %v3159
        %v3224 = vunpack.c.l.b16 %v3160
        %v3225 = vunpack.c.l.b16 %v3161
        %v3226 = vunpack.c.l.b16 %v3162
        %v3227 = vunpack.c.l.b16 %v3163
        %v3228 = vunpack.c.l.b16 %v3164
        %v3229 = vunpack.c.l.b16 %v3165
        %v3230 = vunpack.c.l.b16 %v3166
        %v3231 = vunpack.c.l.b16 %v3167
        %v3232 = vunpack.c.l.b16 %v3168
        %v3233 = vunpack.c.l.b16 %v3169
        %v3234 = vunpack.c.l.b16 %v3170
        %v3235 = vunpack.c.l.b16 %v3171
        %v3236 = vunpack.c.l.b16 %v3172
        %v3237 = vunpack.c.l.b16 %v3173
        %v3238 = vunpack.c.l.b16 %v3174
        %v3239 = vunpack.c.l.b16 %v3175
        %v3240 = vunpack.c.l.b16 %v3176
        %v3241 = vunpack.c.l.b16 %v3177
        %v3242 = vunpack.c.l.b16 %v3178
        %v3243 = vunpack.c.l.b16 %v3179
        %v3244 = vunpack.c.l.b16 %v3180
        %v3245 = vunpack.c.l.b16 %v3181
        %v3246 = vunpack.c.l.b16 %v3182
        %v3247 = vpack.c.b16 %v3216, %v3215
        %v3248 = vpack.c.b16 %v3218, %v3217
        %v3249 = vpack.c.b16 %v3220, %v3219
        %v3250 = vpack.c.b16 %v3222, %v3221
        %v3251 = vpack.c.b16 %v3224, %v3223
        %v3252 = vpack.c.b16 %v3226, %v3225
        %v3253 = vpack.c.b16 %v3228, %v3227
        %v3254 = vpack.c.b16 %v3230, %v3229
        %v3255 = vpack.c.b16 %v3232, %v3231
        %v3256 = vpack.c.b16 %v3234, %v3233
        %v3257 = vpack.c.b16 %v3236, %v3235
        %v3258 = vpack.c.b16 %v3238, %v3237
        %v3259 = vpack.c.b16 %v3240, %v3239
        %v3260 = vpack.c.b16 %v3242, %v3241
        %v3261 = vpack.c.b16 %v3244, %v3243
        %v3262 = vpack.c.b16 %v3246, %v3245
        %3279 = vmatprep.subr.bf16.mxu0 0
        %3280 = vmatpush1.bf16.msra.mxu0 %v3247
        %3281 = vmatprep.subr.bf16.mxu0 0
        %3282 = vmatpush1.bf16.msra.mxu0 %v3248
        %3283 = vmatprep.subr.bf16.mxu0 0
        %3284 = vmatpush1.bf16.msra.mxu0 %v3249
        %3285 = vmatprep.subr.bf16.mxu0 0
        %3286 = vmatpush1.bf16.msra.mxu0 %v3250
        %3287 = vmatprep.subr.bf16.mxu0 0
        %3288 = vmatpush1.bf16.msra.mxu0 %v3251
        %3289 = vmatprep.subr.bf16.mxu0 0
        %3290 = vmatpush1.bf16.msra.mxu0 %v3252
        %3291 = vmatprep.subr.bf16.mxu0 0
        %3292 = vmatpush1.bf16.msra.mxu0 %v3253
        %3293 = vmatprep.subr.bf16.mxu0 0
        %3294 = vmatpush1.bf16.msra.mxu0 %v3254
        %3295 = vmatprep.subr.bf16.mxu0 0
        %3296 = vmatpush1.bf16.msra.mxu0 %v3255
        %3297 = vmatprep.subr.bf16.mxu0 0
        %3298 = vmatpush1.bf16.msra.mxu0 %v3256
        %3299 = vmatprep.subr.bf16.mxu0 0
        %3300 = vmatpush1.bf16.msra.mxu0 %v3257
        %3301 = vmatprep.subr.bf16.mxu0 0
        %3302 = vmatpush1.bf16.msra.mxu0 %v3258
        %3303 = vmatprep.subr.bf16.mxu0 0
        %3304 = vmatpush1.bf16.msra.mxu0 %v3259
        %3305 = vmatprep.subr.bf16.mxu0 0
        %3306 = vmatpush1.bf16.msra.mxu0 %v3260
        %3307 = vmatprep.subr.bf16.mxu0 0
        %3308 = vmatpush1.bf16.msra.mxu0 %v3261
        %3309 = vmatprep.subr.bf16.mxu0 0
        %3310 = vmatpush1.bf16.msra.mxu0 %v3262
        %3311 = vmatprep.mubr.bf16.mxu0 %v3134
        %3312 = vmatmul.mubr.bf16.gmra.mrb[0].mxu0 %v3133
        %v3313 = vpop.f32.mrb[0].mxu0
        %v3314 = vadd.f32 0.0, %v3313
        %v3315 = vpop.f32.mrb[0].mxu0
        %v3316 = vpop.f32.mrb[0].mxu0
        %v3317 = vadd.f32 0.0, %v3316
        %v3318 = vpop.f32.mrb[0].mxu0
        %3319 = vmatprep.mubr.bf16.mxu0 %v3136
        %3320 = vmatmul.mubr.bf16.gmra.mrb[0].mxu0 %v3135
        %v3321 = vpop.f32.mrb[0].mxu0
        %v3322 = vadd.f32 0.0, %v3321
        %v3323 = vpop.f32.mrb[0].mxu0
        %v3324 = vpop.f32.mrb[0].mxu0
        %v3325 = vadd.f32 0.0, %v3324
        %v3326 = vpop.f32.mrb[0].mxu0
        %3327 = vmatprep.mubr.bf16.mxu0 %v3138
        %3328 = vmatmul.mubr.bf16.gmra.mrb[0].mxu0 %v3137
        %v3329 = vpop.f32.mrb[0].mxu0
        %v3330 = vadd.f32 0.0, %v3329
        %v3331 = vpop.f32.mrb[0].mxu0
        %v3332 = vpop.f32.mrb[0].mxu0
        %v3333 = vadd.f32 0.0, %v3332
        %v3334 = vpop.f32.mrb[0].mxu0
        %3335 = vmatprep.mubr.bf16.mxu0 %v3140
        %3336 = vmatmul.mubr.bf16.gmra.mrb[0].mxu0 %v3139
        %v3337 = vpop.f32.mrb[0].mxu0
        %v3338 = vadd.f32 0.0, %v3337
        %v3339 = vpop.f32.mrb[0].mxu0
        %v3340 = vpop.f32.mrb[0].mxu0
        %v3341 = vadd.f32 0.0, %v3340
        %v3342 = vpop.f32.mrb[0].mxu0
        %3343 = vmatprep.mubr.bf16.mxu0 %v3142
        %3344 = vmatmul.mubr.bf16.gmra.mrb[0].mxu0 %v3141
        %v3345 = vpop.f32.mrb[0].mxu0
        %v3346 = vadd.f32 0.0, %v3345
        %v3347 = vpop.f32.mrb[0].mxu0
        %v3348 = vpop.f32.mrb[0].mxu0
        %v3349 = vadd.f32 0.0, %v3348
        %v3350 = vpop.f32.mrb[0].mxu0
        %3351 = vmatprep.mubr.bf16.mxu0 %v3144
        %3352 = vmatmul.mubr.bf16.gmra.mrb[0].mxu0 %v3143
        %v3353 = vpop.f32.mrb[0].mxu0
        %v3354 = vadd.f32 0.0, %v3353
        %v3355 = vpop.f32.mrb[0].mxu0
        %v3356 = vpop.f32.mrb[0].mxu0
        %v3357 = vadd.f32 0.0, %v3356
        %v3358 = vpop.f32.mrb[0].mxu0
        %3359 = vmatprep.mubr.bf16.mxu0 %v3146
        %3360 = vmatmul.mubr.bf16.gmra.mrb[0].mxu0 %v3145
        %v3361 = vpop.f32.mrb[0].mxu0
        %v3362 = vadd.f32 0.0, %v3361
        %v3363 = vpop.f32.mrb[0].mxu0
        %v3364 = vpop.f32.mrb[0].mxu0
        %v3365 = vadd.f32 0.0, %v3364
        %v3366 = vpop.f32.mrb[0].mxu0
        %3367 = vmatprep.mubr.bf16.mxu0 %v3148
        %3368 = vmatmul.mubr.bf16.gmra.mrb[0].mxu0 %v3147
        %v3369 = vpop.f32.mrb[0].mxu0
        %v3370 = vadd.f32 0.0, %v3369
        %v3371 = vpop.f32.mrb[0].mxu0
        %v3372 = vpop.f32.mrb[0].mxu0
        %v3373 = vadd.f32 0.0, %v3372
        %v3374 = vpop.f32.mrb[0].mxu0
        %3375 = vmatprep.mubr.bf16.mxu0 %v3150
        %3376 = vmatmul.mubr.bf16.gmra.mrb[0].mxu0 %v3149
        %v3377 = vpop.f32.mrb[0].mxu0
        %v3378 = vadd.f32 0.0, %v3377
        %v3379 = vpop.f32.mrb[0].mxu0
        %v3380 = vpop.f32.mrb[0].mxu0
        %v3381 = vpop.f32.mrb[0].mxu0
        %3382 = vdwg.mxu0
        %v3383 = vpack.c.bf16 %v3317, %v3314
        %v3384 = vpack.c.bf16 %v3325, %v3322
        %v3385 = vpack.c.bf16 %v3333, %v3330
        %v3386 = vpack.c.bf16 %v3341, %v3338
        %v3387 = vpack.c.bf16 %v3349, %v3346
        %v3388 = vpack.c.bf16 %v3357, %v3354
        %v3389 = vpack.c.bf16 %v3365, %v3362
        %v3390 = vpack.c.bf16 %v3373, %v3370
        %v3391 = vpack.c.bf16 %v3378, %v3378
        %v3401 = vunpack.c.l.b16 %v3383
        %v3402 = vunpack.c.h.b16 %v3383
        %v3403 = vunpack.c.l.b16 %v3384
        %v3404 = vunpack.c.h.b16 %v3384
        %v3405 = vunpack.c.l.b16 %v3385
        %v3406 = vunpack.c.h.b16 %v3385
        %v3407 = vunpack.c.l.b16 %v3386
        %v3408 = vunpack.c.h.b16 %v3386
        %v3409 = vunpack.c.l.b16 %v3387
        %v3410 = vunpack.c.h.b16 %v3387
        %v3411 = vunpack.c.l.b16 %v3388
        %v3412 = vunpack.c.h.b16 %v3388
        %v3413 = vunpack.c.l.b16 %v3389
        %v3414 = vunpack.c.h.b16 %v3389
        %v3415 = vunpack.c.l.b16 %v3390
        %v3416 = vunpack.c.h.b16 %v3390
        %v3417 = vunpack.c.l.b16 %v3391
        %v3418 = vpack.c.b16 %v3401, %v3401
        %v3419 = vpack.c.b16 %v3402, %v3402
        %v3420 = vpack.c.b16 %v3403, %v3403
        %v3421 = vpack.c.b16 %v3404, %v3404
        %v3422 = vpack.c.b16 %v3405, %v3405
        %v3423 = vpack.c.b16 %v3406, %v3406
        %v3424 = vpack.c.b16 %v3407, %v3407
        %v3425 = vpack.c.b16 %v3408, %v3408
        %v3426 = vpack.c.b16 %v3409, %v3409
        %v3427 = vpack.c.b16 %v3410, %v3410
        %v3428 = vpack.c.b16 %v3411, %v3411
        %v3429 = vpack.c.b16 %v3412, %v3412
        %v3430 = vpack.c.b16 %v3413, %v3413
        %v3431 = vpack.c.b16 %v3414, %v3414
        %v3432 = vpack.c.b16 %v3415, %v3415
        %v3433 = vpack.c.b16 %v3416, %v3416
        %v3434 = vpack.c.b16 %v3417, %v3417
        %3452 = vst [vmem:[#allocation2] sm:$0xf] %v3418
        %3453 = vst [vmem:[#allocation2 + $0x4] sm:$0xf] %v3419
        %3454 = vst [vmem:[#allocation2 + $0x8] sm:$0xf] %v3420
        %3455 = vst [vmem:[#allocation2 + $0xc] sm:$0xf] %v3421
        %3456 = vst [vmem:[#allocation2 + $0x10] sm:$0xf] %v3422
        %3457 = vst [vmem:[#allocation2 + $0x14] sm:$0xf] %v3423
        %3458 = vst [vmem:[#allocation2 + $0x18] sm:$0xf] %v3424
        %3459 = vst [vmem:[#allocation2 + $0x1c] sm:$0xf] %v3425
        %3460 = vst [vmem:[#allocation2 + $0x20] sm:$0xf] %v3426
        %3461 = vst [vmem:[#allocation2 + $0x24] sm:$0xf] %v3427
        %3462 = vst [vmem:[#allocation2 + $0x28] sm:$0xf] %v3428
        %3463 = vst [vmem:[#allocation2 + $0x2c] sm:$0xf] %v3429
        %3464 = vst [vmem:[#allocation2 + $0x30] sm:$0xf] %v3430
        %3465 = vst [vmem:[#allocation2 + $0x34] sm:$0xf] %v3431
        %3466 = vst [vmem:[#allocation2 + $0x38] sm:$0xf] %v3432
        %3467 = vst [vmem:[#allocation2 + $0x3c] sm:$0xf] %v3433
        %3468 = vst [vmem:[#allocation2 + $0x40] sm:$0xf] %v3434
        %v3469 = vld [vmem:[#allocation2] sm:$0xf]
        %v3470 = vld [vmem:[#allocation2 + $0x4] sm:$0xf]
        %v3471 = vld [vmem:[#allocation2 + $0x8] sm:$0xf]
        %v3472 = vld [vmem:[#allocation2 + $0xc] sm:$0xf]
        %v3473 = vld [vmem:[#allocation2 + $0x10] sm:$0xf]
        %v3474 = vld [vmem:[#allocation2 + $0x14] sm:$0xf]
        %v3475 = vld [vmem:[#allocation2 + $0x18] sm:$0xf]
        %v3476 = vld [vmem:[#allocation2 + $0x1c] sm:$0xf]
        %v3477 = vld [vmem:[#allocation2 + $0x20] sm:$0xf]
        %v3478 = vld [vmem:[#allocation2 + $0x24] sm:$0xf]
        %v3479 = vld [vmem:[#allocation2 + $0x28] sm:$0xf]
        %v3480 = vld [vmem:[#allocation2 + $0x2c] sm:$0xf]
        %v3481 = vld [vmem:[#allocation2 + $0x30] sm:$0xf]
        %v3482 = vld [vmem:[#allocation2 + $0x34] sm:$0xf]
        %v3483 = vld [vmem:[#allocation2 + $0x38] sm:$0xf]
        %v3484 = vld [vmem:[#allocation2 + $0x3c] sm:$0xf]
        %v3485 = vld [vmem:[%s5] sm:$0xff]
        %v3486 = vld [vmem:[%s5 + $0x8] sm:$0xff]
        %v3487 = vld [vmem:[%s5 + $0x10] sm:$0xff]
        %v3488 = vld [vmem:[%s5 + $0x18] sm:$0xff]
        %v3489 = vld [vmem:[%s5 + $0x20] sm:$0xff]
        %v3490 = vld [vmem:[%s5 + $0x28] sm:$0xff]
        %v3491 = vld [vmem:[%s5 + $0x30] sm:$0xff]
        %v3492 = vld [vmem:[%s5 + $0x38] sm:$0xff]
        %v3493 = vld [vmem:[%s5 + $0x40] sm:$0xff]
        %v3494 = vld [vmem:[%s5 + $0x48] sm:$0xff]
        %v3495 = vld [vmem:[%s5 + $0x50] sm:$0xff]
        %v3496 = vld [vmem:[%s5 + $0x58] sm:$0xff]
        %v3497 = vld [vmem:[%s5 + $0x60] sm:$0xff]
        %v3498 = vld [vmem:[%s5 + $0x68] sm:$0xff]
        %v3499 = vld [vmem:[%s5 + $0x70] sm:$0xff]
        %v3500 = vld [vmem:[%s5 + $0x78] sm:$0xff]
        %v3501 = vld [vmem:[#allocation2] sm:$0xf]
        %v3502 = vld [vmem:[#allocation2 + $0x4] sm:$0xf]
        %v3503 = vld [vmem:[#allocation2 + $0x8] sm:$0xf]
        %v3504 = vld [vmem:[#allocation2 + $0xc] sm:$0xf]
        %v3505 = vld [vmem:[#allocation2 + $0x10] sm:$0xf]
        %v3506 = vld [vmem:[#allocation2 + $0x14] sm:$0xf]
        %v3507 = vld [vmem:[#allocation2 + $0x18] sm:$0xf]
        %v3508 = vld [vmem:[#allocation2 + $0x1c] sm:$0xf]
        %v3509 = vld [vmem:[#allocation2 + $0x20] sm:$0xf]
        %v3510 = vld [vmem:[#allocation2 + $0x24] sm:$0xf]
        %v3511 = vld [vmem:[#allocation2 + $0x28] sm:$0xf]
        %v3512 = vld [vmem:[#allocation2 + $0x2c] sm:$0xf]
        %v3513 = vld [vmem:[#allocation2 + $0x30] sm:$0xf]
        %v3514 = vld [vmem:[#allocation2 + $0x34] sm:$0xf]
        %v3515 = vld [vmem:[#allocation2 + $0x38] sm:$0xf]
        %v3516 = vld [vmem:[#allocation2 + $0x3c] sm:$0xf]
        %v3517 = vld [vmem:[#allocation2 + $0x40] sm:$0x1]
        %s3518 = scalar_lea.vmem %s5, 128
        %v3519 = vld [vmem:[%s3518] sm:$0xff]
        %v3520 = vld [vmem:[%s3518 + $0x8] sm:$0xff]
        %v3521 = vld [vmem:[%s3518 + $0x10] sm:$0xff]
        %v3522 = vld [vmem:[%s3518 + $0x18] sm:$0xff]
        %v3523 = vld [vmem:[%s3518 + $0x20] sm:$0xff]
        %v3524 = vld [vmem:[%s3518 + $0x28] sm:$0xff]
        %v3525 = vld [vmem:[%s3518 + $0x30] sm:$0xff]
        %v3526 = vld [vmem:[%s3518 + $0x38] sm:$0xff]
        %v3527 = vld [vmem:[%s3518 + $0x40] sm:$0xff]
        %v3528 = vld [vmem:[%s3518 + $0x48] sm:$0xff]
        %v3529 = vld [vmem:[%s3518 + $0x50] sm:$0xff]
        %v3530 = vld [vmem:[%s3518 + $0x58] sm:$0xff]
        %v3531 = vld [vmem:[%s3518 + $0x60] sm:$0xff]
        %v3532 = vld [vmem:[%s3518 + $0x68] sm:$0xff]
        %v3533 = vld [vmem:[%s3518 + $0x70] sm:$0xff]
        %v3534 = vld [vmem:[%s3518 + $0x78] sm:$0xff]
        %v3552 = vunpack.c.l.b16 %v3501
        %v3553 = vunpack.c.l.b16 %v3502
        %v3554 = vunpack.c.l.b16 %v3503
        %v3555 = vunpack.c.l.b16 %v3504
        %v3556 = vunpack.c.l.b16 %v3505
        %v3557 = vunpack.c.l.b16 %v3506
        %v3558 = vunpack.c.l.b16 %v3507
        %v3559 = vunpack.c.l.b16 %v3508
        %v3560 = vunpack.c.l.b16 %v3509
        %v3561 = vunpack.c.l.b16 %v3510
        %v3562 = vunpack.c.l.b16 %v3511
        %v3563 = vunpack.c.l.b16 %v3512
        %v3564 = vunpack.c.l.b16 %v3513
        %v3565 = vunpack.c.l.b16 %v3514
        %v3566 = vunpack.c.l.b16 %v3515
        %v3567 = vunpack.c.l.b16 %v3516
        %v3568 = vunpack.c.l.b16 %v3517
        %v3569 = vpack.c.b16 %v3553, %v3552
        %v3570 = vpack.c.b16 %v3555, %v3554
        %v3571 = vpack.c.b16 %v3557, %v3556
        %v3572 = vpack.c.b16 %v3559, %v3558
        %v3573 = vpack.c.b16 %v3561, %v3560
        %v3574 = vpack.c.b16 %v3563, %v3562
        %v3575 = vpack.c.b16 %v3565, %v3564
        %v3576 = vpack.c.b16 %v3567, %v3566
        %v3577 = vpack.c.b16 %v3568, %v3568
        %v3579 = vshrl.u32 %v3569, 16
        %v3581 = vshll.u32 %v3569, 16
        %v3583 = vrot.slane %v3581, 1
        %v3584 = vor.u32 %v3579, %v3583
        %v3586 = vshll.u32 %v3570, 16
        %v3588 = vrot.slane %v3586, 1
        %v3589 = vsel %vm677, %v3584, %v3588
        %v3590 = vshrl.u32 %v3570, 16
        %v3592 = vor.u32 %v3590, %v3588
        %v3594 = vshll.u32 %v3571, 16
        %v3596 = vrot.slane %v3594, 1
        %v3597 = vsel %vm677, %v3592, %v3596
        %v3598 = vshrl.u32 %v3571, 16
        %v3600 = vor.u32 %v3598, %v3596
        %v3602 = vshll.u32 %v3572, 16
        %v3604 = vrot.slane %v3602, 1
        %v3605 = vsel %vm677, %v3600, %v3604
        %v3606 = vshrl.u32 %v3572, 16
        %v3608 = vor.u32 %v3606, %v3604
        %v3610 = vshll.u32 %v3573, 16
        %v3612 = vrot.slane %v3610, 1
        %v3613 = vsel %vm677, %v3608, %v3612
        %v3614 = vshrl.u32 %v3573, 16
        %v3616 = vor.u32 %v3614, %v3612
        %v3618 = vshll.u32 %v3574, 16
        %v3620 = vrot.slane %v3618, 1
        %v3621 = vsel %vm677, %v3616, %v3620
        %v3622 = vshrl.u32 %v3574, 16
        %v3624 = vor.u32 %v3622, %v3620
        %v3626 = vshll.u32 %v3575, 16
        %v3628 = vrot.slane %v3626, 1
        %v3629 = vsel %vm677, %v3624, %v3628
        %v3630 = vshrl.u32 %v3575, 16
        %v3632 = vor.u32 %v3630, %v3628
        %v3634 = vshll.u32 %v3576, 16
        %v3636 = vrot.slane %v3634, 1
        %v3637 = vsel %vm677, %v3632, %v3636
        %v3638 = vshrl.u32 %v3576, 16
        %v3640 = vor.u32 %v3638, %v3636
        %v3642 = vshll.u32 %v3577, 16
        %v3644 = vrot.slane %v3642, 1
        %v3645 = vsel %vm677, %v3640, %v3644
        %v3670 = vunpack.c.l.b16 %v3519
        %v3671 = vunpack.c.h.b16 %v3519
        %v3672 = vunpack.c.l.b16 %v3520
        %v3673 = vunpack.c.h.b16 %v3520
        %v3674 = vunpack.c.l.b16 %v3521
        %v3675 = vunpack.c.h.b16 %v3521
        %v3676 = vunpack.c.l.b16 %v3522
        %v3677 = vunpack.c.h.b16 %v3522
        %v3678 = vunpack.c.l.b16 %v3523
        %v3679 = vunpack.c.h.b16 %v3523
        %v3680 = vunpack.c.l.b16 %v3524
        %v3681 = vunpack.c.h.b16 %v3524
        %v3682 = vunpack.c.l.b16 %v3525
        %v3683 = vunpack.c.h.b16 %v3525
        %v3684 = vunpack.c.l.b16 %v3526
        %v3685 = vunpack.c.h.b16 %v3526
        %v3686 = vunpack.c.l.b16 %v3527
        %v3687 = vunpack.c.h.b16 %v3527
        %v3688 = vunpack.c.l.b16 %v3528
        %v3689 = vunpack.c.h.b16 %v3528
        %v3690 = vunpack.c.l.b16 %v3529
        %v3691 = vunpack.c.h.b16 %v3529
        %v3692 = vunpack.c.l.b16 %v3530
        %v3693 = vunpack.c.h.b16 %v3530
        %v3694 = vunpack.c.l.b16 %v3531
        %v3695 = vunpack.c.h.b16 %v3531
        %v3696 = vunpack.c.l.b16 %v3532
        %v3697 = vunpack.c.h.b16 %v3532
        %v3698 = vunpack.c.l.b16 %v3533
        %v3699 = vunpack.c.h.b16 %v3533
        %v3700 = vunpack.c.l.b16 %v3534
        %v3701 = vunpack.c.h.b16 %v3534
        %v3702 = vpack.c.b16 %v3672, %v3670
        %v3703 = vpack.c.b16 %v3673, %v3671
        %v3704 = vpack.c.b16 %v3676, %v3674
        %v3705 = vpack.c.b16 %v3677, %v3675
        %v3706 = vpack.c.b16 %v3680, %v3678
        %v3707 = vpack.c.b16 %v3681, %v3679
        %v3708 = vpack.c.b16 %v3684, %v3682
        %v3709 = vpack.c.b16 %v3685, %v3683
        %v3710 = vpack.c.b16 %v3688, %v3686
        %v3711 = vpack.c.b16 %v3689, %v3687
        %v3712 = vpack.c.b16 %v3692, %v3690
        %v3713 = vpack.c.b16 %v3693, %v3691
        %v3714 = vpack.c.b16 %v3696, %v3694
        %v3715 = vpack.c.b16 %v3697, %v3695
        %v3716 = vpack.c.b16 %v3700, %v3698
        %v3717 = vpack.c.b16 %v3701, %v3699
        %3734 = vmatprep.subr.bf16.mxu0 %v3703
        %3735 = vmatpush1.bf16.msra.mxu0 %v3702
        %3736 = vmatprep.subr.bf16.mxu0 %v3705
        %3737 = vmatpush1.bf16.msra.mxu0 %v3704
        %3738 = vmatprep.subr.bf16.mxu0 %v3707
        %3739 = vmatpush1.bf16.msra.mxu0 %v3706
        %3740 = vmatprep.subr.bf16.mxu0 %v3709
        %3741 = vmatpush1.bf16.msra.mxu0 %v3708
        %3742 = vmatprep.subr.bf16.mxu0 %v3711
        %3743 = vmatpush1.bf16.msra.mxu0 %v3710
        %3744 = vmatprep.subr.bf16.mxu0 %v3713
        %3745 = vmatpush1.bf16.msra.mxu0 %v3712
        %3746 = vmatprep.subr.bf16.mxu0 %v3715
        %3747 = vmatpush1.bf16.msra.mxu0 %v3714
        %3748 = vmatprep.subr.bf16.mxu0 %v3717
        %3749 = vmatpush1.bf16.msra.mxu0 %v3716
        %3750 = vmatprep.subr.bf16.mxu0 0
        %3751 = vmatpush1.bf16.msra.mxu0 0
        %3752 = vmatprep.subr.bf16.mxu0 0
        %3753 = vmatpush1.bf16.msra.mxu0 0
        %3754 = vmatprep.subr.bf16.mxu0 0
        %3755 = vmatpush1.bf16.msra.mxu0 0
        %3756 = vmatprep.subr.bf16.mxu0 0
        %3757 = vmatpush1.bf16.msra.mxu0 0
        %3758 = vmatprep.subr.bf16.mxu0 0
        %3759 = vmatpush1.bf16.msra.mxu0 0
        %3760 = vmatprep.subr.bf16.mxu0 0
        %3761 = vmatpush1.bf16.msra.mxu0 0
        %3762 = vmatprep.subr.bf16.mxu0 0
        %3763 = vmatpush1.bf16.msra.mxu0 0
        %3764 = vmatprep.subr.bf16.mxu0 0
        %3765 = vmatpush1.bf16.msra.mxu0 0
        %3766 = vmatprep.mubr.bf16.mxu0 0
        %3767 = vmatmul.mubr.bf16.gmra.mrb[0].mxu0 %v3589
        %v3768 = vpop.f32.mrb[0].mxu0
        %v3769 = vadd.f32 0.0, %v3768
        %v3770 = vpop.f32.mrb[0].mxu0
        %v3771 = vadd.f32 0.0, %v3770
        %v3772 = vpop.f32.mrb[0].mxu0
        %v3773 = vadd.f32 0.0, %v3772
        %v3774 = vpop.f32.mrb[0].mxu0
        %v3775 = vadd.f32 0.0, %v3774
        %3776 = vmatprep.mubr.bf16.mxu0 0
        %3777 = vmatmul.mubr.bf16.gmra.mrb[0].mxu0 %v3597
        %v3778 = vpop.f32.mrb[0].mxu0
        %v3779 = vadd.f32 0.0, %v3778
        %v3780 = vpop.f32.mrb[0].mxu0
        %v3781 = vadd.f32 0.0, %v3780
        %v3782 = vpop.f32.mrb[0].mxu0
        %v3783 = vadd.f32 0.0, %v3782
        %v3784 = vpop.f32.mrb[0].mxu0
        %v3785 = vadd.f32 0.0, %v3784
        %3786 = vmatprep.mubr.bf16.mxu0 0
        %3787 = vmatmul.mubr.bf16.gmra.mrb[0].mxu0 %v3605
        %v3788 = vpop.f32.mrb[0].mxu0
        %v3789 = vadd.f32 0.0, %v3788
        %v3790 = vpop.f32.mrb[0].mxu0
        %v3791 = vadd.f32 0.0, %v3790
        %v3792 = vpop.f32.mrb[0].mxu0
        %v3793 = vadd.f32 0.0, %v3792
        %v3794 = vpop.f32.mrb[0].mxu0
        %v3795 = vadd.f32 0.0, %v3794
        %3796 = vmatprep.mubr.bf16.mxu0 0
        %3797 = vmatmul.mubr.bf16.gmra.mrb[0].mxu0 %v3613
        %v3798 = vpop.f32.mrb[0].mxu0
        %v3799 = vadd.f32 0.0, %v3798
        %v3800 = vpop.f32.mrb[0].mxu0
        %v3801 = vadd.f32 0.0, %v3800
        %v3802 = vpop.f32.mrb[0].mxu0
        %v3803 = vadd.f32 0.0, %v3802
        %v3804 = vpop.f32.mrb[0].mxu0
        %v3805 = vadd.f32 0.0, %v3804
        %3806 = vmatprep.mubr.bf16.mxu0 0
        %3807 = vmatmul.mubr.bf16.gmra.mrb[0].mxu0 %v3621
        %v3808 = vpop.f32.mrb[0].mxu0
        %v3809 = vadd.f32 0.0, %v3808
        %v3810 = vpop.f32.mrb[0].mxu0
        %v3811 = vadd.f32 0.0, %v3810
        %v3812 = vpop.f32.mrb[0].mxu0
        %v3813 = vadd.f32 0.0, %v3812
        %v3814 = vpop.f32.mrb[0].mxu0
        %v3815 = vadd.f32 0.0, %v3814
        %3816 = vmatprep.mubr.bf16.mxu0 0
        %3817 = vmatmul.mubr.bf16.gmra.mrb[0].mxu0 %v3629
        %v3818 = vpop.f32.mrb[0].mxu0
        %v3819 = vadd.f32 0.0, %v3818
        %v3820 = vpop.f32.mrb[0].mxu0
        %v3821 = vadd.f32 0.0, %v3820
        %v3822 = vpop.f32.mrb[0].mxu0
        %v3823 = vadd.f32 0.0, %v3822
        %v3824 = vpop.f32.mrb[0].mxu0
        %v3825 = vadd.f32 0.0, %v3824
        %3826 = vmatprep.mubr.bf16.mxu0 0
        %3827 = vmatmul.mubr.bf16.gmra.mrb[0].mxu0 %v3637
        %v3828 = vpop.f32.mrb[0].mxu0
        %v3829 = vadd.f32 0.0, %v3828
        %v3830 = vpop.f32.mrb[0].mxu0
        %v3831 = vadd.f32 0.0, %v3830
        %v3832 = vpop.f32.mrb[0].mxu0
        %v3833 = vadd.f32 0.0, %v3832
        %v3834 = vpop.f32.mrb[0].mxu0
        %v3835 = vadd.f32 0.0, %v3834
        %3836 = vmatprep.mubr.bf16.mxu0 0
        %3837 = vmatmul.mubr.bf16.gmra.mrb[0].mxu0 %v3645
        %v3838 = vpop.f32.mrb[0].mxu0
        %v3839 = vadd.f32 0.0, %v3838
        %v3840 = vpop.f32.mrb[0].mxu0
        %v3841 = vadd.f32 0.0, %v3840
        %v3842 = vpop.f32.mrb[0].mxu0
        %v3843 = vadd.f32 0.0, %v3842
        %v3844 = vpop.f32.mrb[0].mxu0
        %v3845 = vadd.f32 0.0, %v3844
        %3846 = vdwg.mxu0
        %v3863 = vunpack.c.l.b16 %v3469
        %v3864 = vunpack.c.l.b16 %v3470
        %v3865 = vunpack.c.l.b16 %v3471
        %v3866 = vunpack.c.l.b16 %v3472
        %v3867 = vunpack.c.l.b16 %v3473
        %v3868 = vunpack.c.l.b16 %v3474
        %v3869 = vunpack.c.l.b16 %v3475
        %v3870 = vunpack.c.l.b16 %v3476
        %v3871 = vunpack.c.l.b16 %v3477
        %v3872 = vunpack.c.l.b16 %v3478
        %v3873 = vunpack.c.l.b16 %v3479
        %v3874 = vunpack.c.l.b16 %v3480
        %v3875 = vunpack.c.l.b16 %v3481
        %v3876 = vunpack.c.l.b16 %v3482
        %v3877 = vunpack.c.l.b16 %v3483
        %v3878 = vunpack.c.l.b16 %v3484
        %v3879 = vpack.c.b16 %v3864, %v3863
        %v3880 = vpack.c.b16 %v3866, %v3865
        %v3881 = vpack.c.b16 %v3868, %v3867
        %v3882 = vpack.c.b16 %v3870, %v3869
        %v3883 = vpack.c.b16 %v3872, %v3871
        %v3884 = vpack.c.b16 %v3874, %v3873
        %v3885 = vpack.c.b16 %v3876, %v3875
        %v3886 = vpack.c.b16 %v3878, %v3877
        %v3911 = vunpack.c.l.b16 %v3485
        %v3912 = vunpack.c.h.b16 %v3485
        %v3913 = vunpack.c.l.b16 %v3486
        %v3914 = vunpack.c.h.b16 %v3486
        %v3915 = vunpack.c.l.b16 %v3487
        %v3916 = vunpack.c.h.b16 %v3487
        %v3917 = vunpack.c.l.b16 %v3488
        %v3918 = vunpack.c.h.b16 %v3488
        %v3919 = vunpack.c.l.b16 %v3489
        %v3920 = vunpack.c.h.b16 %v3489
        %v3921 = vunpack.c.l.b16 %v3490
        %v3922 = vunpack.c.h.b16 %v3490
        %v3923 = vunpack.c.l.b16 %v3491
        %v3924 = vunpack.c.h.b16 %v3491
        %v3925 = vunpack.c.l.b16 %v3492
        %v3926 = vunpack.c.h.b16 %v3492
        %v3927 = vunpack.c.l.b16 %v3493
        %v3928 = vunpack.c.h.b16 %v3493
        %v3929 = vunpack.c.l.b16 %v3494
        %v3930 = vunpack.c.h.b16 %v3494
        %v3931 = vunpack.c.l.b16 %v3495
        %v3932 = vunpack.c.h.b16 %v3495
        %v3933 = vunpack.c.l.b16 %v3496
        %v3934 = vunpack.c.h.b16 %v3496
        %v3935 = vunpack.c.l.b16 %v3497
        %v3936 = vunpack.c.h.b16 %v3497
        %v3937 = vunpack.c.l.b16 %v3498
        %v3938 = vunpack.c.h.b16 %v3498
        %v3939 = vunpack.c.l.b16 %v3499
        %v3940 = vunpack.c.h.b16 %v3499
        %v3941 = vunpack.c.l.b16 %v3500
        %v3942 = vunpack.c.h.b16 %v3500
        %v3943 = vpack.c.b16 %v3913, %v3911
        %v3944 = vpack.c.b16 %v3914, %v3912
        %v3945 = vpack.c.b16 %v3917, %v3915
        %v3946 = vpack.c.b16 %v3918, %v3916
        %v3947 = vpack.c.b16 %v3921, %v3919
        %v3948 = vpack.c.b16 %v3922, %v3920
        %v3949 = vpack.c.b16 %v3925, %v3923
        %v3950 = vpack.c.b16 %v3926, %v3924
        %v3951 = vpack.c.b16 %v3929, %v3927
        %v3952 = vpack.c.b16 %v3930, %v3928
        %v3953 = vpack.c.b16 %v3933, %v3931
        %v3954 = vpack.c.b16 %v3934, %v3932
        %v3955 = vpack.c.b16 %v3937, %v3935
        %v3956 = vpack.c.b16 %v3938, %v3936
        %v3957 = vpack.c.b16 %v3941, %v3939
        %v3958 = vpack.c.b16 %v3942, %v3940
        %3975 = vmatprep.subr.bf16.mxu0 %v3944
        %3976 = vmatpush1.bf16.msra.mxu0 %v3943
        %3977 = vmatprep.subr.bf16.mxu0 %v3946
        %3978 = vmatpush1.bf16.msra.mxu0 %v3945
        %3979 = vmatprep.subr.bf16.mxu0 %v3948
        %3980 = vmatpush1.bf16.msra.mxu0 %v3947
        %3981 = vmatprep.subr.bf16.mxu0 %v3950
        %3982 = vmatpush1.bf16.msra.mxu0 %v3949
        %3983 = vmatprep.subr.bf16.mxu0 %v3952
        %3984 = vmatpush1.bf16.msra.mxu0 %v3951
        %3985 = vmatprep.subr.bf16.mxu0 %v3954
        %3986 = vmatpush1.bf16.msra.mxu0 %v3953
        %3987 = vmatprep.subr.bf16.mxu0 %v3956
        %3988 = vmatpush1.bf16.msra.mxu0 %v3955
        %3989 = vmatprep.subr.bf16.mxu0 %v3958
        %3990 = vmatpush1.bf16.msra.mxu0 %v3957
        %3991 = vmatprep.subr.bf16.mxu0 0
        %3992 = vmatpush1.bf16.msra.mxu0 0
        %3993 = vmatprep.subr.bf16.mxu0 0
        %3994 = vmatpush1.bf16.msra.mxu0 0
        %3995 = vmatprep.subr.bf16.mxu0 0
        %3996 = vmatpush1.bf16.msra.mxu0 0
        %3997 = vmatprep.subr.bf16.mxu0 0
        %3998 = vmatpush1.bf16.msra.mxu0 0
        %3999 = vmatprep.subr.bf16.mxu0 0
        %4000 = vmatpush1.bf16.msra.mxu0 0
        %4001 = vmatprep.subr.bf16.mxu0 0
        %4002 = vmatpush1.bf16.msra.mxu0 0
        %4003 = vmatprep.subr.bf16.mxu0 0
        %4004 = vmatpush1.bf16.msra.mxu0 0
        %4005 = vmatprep.subr.bf16.mxu0 0
        %4006 = vmatpush1.bf16.msra.mxu0 0
        %4007 = vmatprep.mubr.bf16.mxu0 0
        %4008 = vmatmul.mubr.bf16.gmra.mrb[0].mxu0 %v3879
        %v4009 = vpop.f32.mrb[0].mxu0
        %v4010 = vadd.f32 %v3769, %v4009
        %v4011 = vpop.f32.mrb[0].mxu0
        %v4012 = vadd.f32 %v3771, %v4011
        %v4013 = vpop.f32.mrb[0].mxu0
        %v4014 = vadd.f32 %v3773, %v4013
        %v4015 = vpop.f32.mrb[0].mxu0
        %v4016 = vadd.f32 %v3775, %v4015
        %4017 = vmatprep.mubr.bf16.mxu0 0
        %4018 = vmatmul.mubr.bf16.gmra.mrb[0].mxu0 %v3880
        %v4019 = vpop.f32.mrb[0].mxu0
        %v4020 = vadd.f32 %v3779, %v4019
        %v4021 = vpop.f32.mrb[0].mxu0
        %v4022 = vadd.f32 %v3781, %v4021
        %v4023 = vpop.f32.mrb[0].mxu0
        %v4024 = vadd.f32 %v3783, %v4023
        %v4025 = vpop.f32.mrb[0].mxu0
        %v4026 = vadd.f32 %v3785, %v4025
        %4027 = vmatprep.mubr.bf16.mxu0 0
        %4028 = vmatmul.mubr.bf16.gmra.mrb[0].mxu0 %v3881
        %v4029 = vpop.f32.mrb[0].mxu0
        %v4030 = vadd.f32 %v3789, %v4029
        %v4031 = vpop.f32.mrb[0].mxu0
        %v4032 = vadd.f32 %v3791, %v4031
        %v4033 = vpop.f32.mrb[0].mxu0
        %v4034 = vadd.f32 %v3793, %v4033
        %v4035 = vpop.f32.mrb[0].mxu0
        %v4036 = vadd.f32 %v3795, %v4035
        %4037 = vmatprep.mubr.bf16.mxu0 0
        %4038 = vmatmul.mubr.bf16.gmra.mrb[0].mxu0 %v3882
        %v4039 = vpop.f32.mrb[0].mxu0
        %v4040 = vadd.f32 %v3799, %v4039
        %v4041 = vpop.f32.mrb[0].mxu0
        %v4042 = vadd.f32 %v3801, %v4041
        %v4043 = vpop.f32.mrb[0].mxu0
        %v4044 = vadd.f32 %v3803, %v4043
        %v4045 = vpop.f32.mrb[0].mxu0
        %v4046 = vadd.f32 %v3805, %v4045
        %4047 = vmatprep.mubr.bf16.mxu0 0
        %4048 = vmatmul.mubr.bf16.gmra.mrb[0].mxu0 %v3883
        %v4049 = vpop.f32.mrb[0].mxu0
        %v4050 = vadd.f32 %v3809, %v4049
        %v4051 = vpop.f32.mrb[0].mxu0
        %v4052 = vadd.f32 %v3811, %v4051
        %v4053 = vpop.f32.mrb[0].mxu0
        %v4054 = vadd.f32 %v3813, %v4053
        %v4055 = vpop.f32.mrb[0].mxu0
        %v4056 = vadd.f32 %v3815, %v4055
        %4057 = vmatprep.mubr.bf16.mxu0 0
        %4058 = vmatmul.mubr.bf16.gmra.mrb[0].mxu0 %v3884
        %v4059 = vpop.f32.mrb[0].mxu0
        %v4060 = vadd.f32 %v3819, %v4059
        %v4061 = vpop.f32.mrb[0].mxu0
        %v4062 = vadd.f32 %v3821, %v4061
        %v4063 = vpop.f32.mrb[0].mxu0
        %v4064 = vadd.f32 %v3823, %v4063
        %v4065 = vpop.f32.mrb[0].mxu0
        %v4066 = vadd.f32 %v3825, %v4065
        %4067 = vmatprep.mubr.bf16.mxu0 0
        %4068 = vmatmul.mubr.bf16.gmra.mrb[0].mxu0 %v3885
        %v4069 = vpop.f32.mrb[0].mxu0
        %v4070 = vadd.f32 %v3829, %v4069
        %v4071 = vpop.f32.mrb[0].mxu0
        %v4072 = vadd.f32 %v3831, %v4071
        %v4073 = vpop.f32.mrb[0].mxu0
        %v4074 = vadd.f32 %v3833, %v4073
        %v4075 = vpop.f32.mrb[0].mxu0
        %v4076 = vadd.f32 %v3835, %v4075
        %4077 = vmatprep.mubr.bf16.mxu0 0
        %4078 = vmatmul.mubr.bf16.gmra.mrb[0].mxu0 %v3886
        %v4079 = vpop.f32.mrb[0].mxu0
        %v4080 = vadd.f32 %v3839, %v4079
        %v4081 = vpop.f32.mrb[0].mxu0
        %v4082 = vadd.f32 %v3841, %v4081
        %v4083 = vpop.f32.mrb[0].mxu0
        %v4084 = vadd.f32 %v3843, %v4083
        %v4085 = vpop.f32.mrb[0].mxu0
        %v4086 = vadd.f32 %v3845, %v4085
        %4087 = vdwg.mxu0
        %v4088 = vld [vmem:[#allocation2] sm:$0xe]
        %s4089 = scalar_lea.vmem %s5, 256
        %v4090 = vld [vmem:[%s4089] sm:$0xff]
        %v4091 = vld [vmem:[%s4089 + $0x8] sm:$0xff]
        %v4092 = vld [vmem:[%s4089 + $0x10] sm:$0xff]
        %v4093 = vld [vmem:[%s4089 + $0x18] sm:$0xff]
        %v4094 = vld [vmem:[%s4089 + $0x20] sm:$0xff]
        %v4095 = vld [vmem:[%s4089 + $0x28] sm:$0xff]
        %v4096 = vld [vmem:[%s4089 + $0x30] sm:$0xff]
        %v4097 = vld [vmem:[%s4089 + $0x38] sm:$0xff]
        %v4098 = vld [vmem:[%s4089 + $0x40] sm:$0xff]
        %v4099 = vld [vmem:[%s4089 + $0x48] sm:$0xff]
        %v4100 = vld [vmem:[%s4089 + $0x50] sm:$0xff]
        %v4101 = vld [vmem:[%s4089 + $0x58] sm:$0xff]
        %v4102 = vld [vmem:[%s4089 + $0x60] sm:$0xff]
        %v4103 = vld [vmem:[%s4089 + $0x68] sm:$0xff]
        %v4104 = vld [vmem:[%s4089 + $0x70] sm:$0xff]
        %v4105 = vld [vmem:[%s4089 + $0x78] sm:$0xff]
        %v4107 = vunpack.c.l.b16 %v4088
        %v4108 = vpack.c.b16 %v3553, %v4107
        %v4109 = vrot.slane %v4108, 1
        %v4110 = vrot.slane %v3570, 1
        %v4111 = vsel %vm1489, %v4109, %v4110
        %v4112 = vrot.slane %v3571, 1
        %v4113 = vsel %vm1489, %v4110, %v4112
        %v4114 = vrot.slane %v3572, 1
        %v4115 = vsel %vm1489, %v4112, %v4114
        %v4116 = vrot.slane %v3573, 1
        %v4117 = vsel %vm1489, %v4114, %v4116
        %v4118 = vrot.slane %v3574, 1
        %v4119 = vsel %vm1489, %v4116, %v4118
        %v4120 = vrot.slane %v3575, 1
        %v4121 = vsel %vm1489, %v4118, %v4120
        %v4122 = vrot.slane %v3576, 1
        %v4123 = vsel %vm1489, %v4120, %v4122
        %v4124 = vrot.slane %v3577, 1
        %v4125 = vsel %vm1489, %v4122, %v4124
        %v4150 = vunpack.c.l.b16 %v4090
        %v4151 = vunpack.c.h.b16 %v4090
        %v4152 = vunpack.c.l.b16 %v4091
        %v4153 = vunpack.c.h.b16 %v4091
        %v4154 = vunpack.c.l.b16 %v4092
        %v4155 = vunpack.c.h.b16 %v4092
        %v4156 = vunpack.c.l.b16 %v4093
        %v4157 = vunpack.c.h.b16 %v4093
        %v4158 = vunpack.c.l.b16 %v4094
        %v4159 = vunpack.c.h.b16 %v4094
        %v4160 = vunpack.c.l.b16 %v4095
        %v4161 = vunpack.c.h.b16 %v4095
        %v4162 = vunpack.c.l.b16 %v4096
        %v4163 = vunpack.c.h.b16 %v4096
        %v4164 = vunpack.c.l.b16 %v4097
        %v4165 = vunpack.c.h.b16 %v4097
        %v4166 = vunpack.c.l.b16 %v4098
        %v4167 = vunpack.c.h.b16 %v4098
        %v4168 = vunpack.c.l.b16 %v4099
        %v4169 = vunpack.c.h.b16 %v4099
        %v4170 = vunpack.c.l.b16 %v4100
        %v4171 = vunpack.c.h.b16 %v4100
        %v4172 = vunpack.c.l.b16 %v4101
        %v4173 = vunpack.c.h.b16 %v4101
        %v4174 = vunpack.c.l.b16 %v4102
        %v4175 = vunpack.c.h.b16 %v4102
        %v4176 = vunpack.c.l.b16 %v4103
        %v4177 = vunpack.c.h.b16 %v4103
        %v4178 = vunpack.c.l.b16 %v4104
        %v4179 = vunpack.c.h.b16 %v4104
        %v4180 = vunpack.c.l.b16 %v4105
        %v4181 = vunpack.c.h.b16 %v4105
        %v4182 = vpack.c.b16 %v4152, %v4150
        %v4183 = vpack.c.b16 %v4153, %v4151
        %v4184 = vpack.c.b16 %v4156, %v4154
        %v4185 = vpack.c.b16 %v4157, %v4155
        %v4186 = vpack.c.b16 %v4160, %v4158
        %v4187 = vpack.c.b16 %v4161, %v4159
        %v4188 = vpack.c.b16 %v4164, %v4162
        %v4189 = vpack.c.b16 %v4165, %v4163
        %v4190 = vpack.c.b16 %v4168, %v4166
        %v4191 = vpack.c.b16 %v4169, %v4167
        %v4192 = vpack.c.b16 %v4172, %v4170
        %v4193 = vpack.c.b16 %v4173, %v4171
        %v4194 = vpack.c.b16 %v4176, %v4174
        %v4195 = vpack.c.b16 %v4177, %v4175
        %v4196 = vpack.c.b16 %v4180, %v4178
        %v4197 = vpack.c.b16 %v4181, %v4179
        %4214 = vmatprep.subr.bf16.mxu0 %v4183
        %4215 = vmatpush1.bf16.msra.mxu0 %v4182
        %4216 = vmatprep.subr.bf16.mxu0 %v4185
        %4217 = vmatpush1.bf16.msra.mxu0 %v4184
        %4218 = vmatprep.subr.bf16.mxu0 %v4187
        %4219 = vmatpush1.bf16.msra.mxu0 %v4186
        %4220 = vmatprep.subr.bf16.mxu0 %v4189
        %4221 = vmatpush1.bf16.msra.mxu0 %v4188
        %4222 = vmatprep.subr.bf16.mxu0 %v4191
        %4223 = vmatpush1.bf16.msra.mxu0 %v4190
        %4224 = vmatprep.subr.bf16.mxu0 %v4193
        %4225 = vmatpush1.bf16.msra.mxu0 %v4192
        %4226 = vmatprep.subr.bf16.mxu0 %v4195
        %4227 = vmatpush1.bf16.msra.mxu0 %v4194
        %4228 = vmatprep.subr.bf16.mxu0 %v4197
        %4229 = vmatpush1.bf16.msra.mxu0 %v4196
        %4230 = vmatprep.subr.bf16.mxu0 0
        %4231 = vmatpush1.bf16.msra.mxu0 0
        %4232 = vmatprep.subr.bf16.mxu0 0
        %4233 = vmatpush1.bf16.msra.mxu0 0
        %4234 = vmatprep.subr.bf16.mxu0 0
        %4235 = vmatpush1.bf16.msra.mxu0 0
        %4236 = vmatprep.subr.bf16.mxu0 0
        %4237 = vmatpush1.bf16.msra.mxu0 0
        %4238 = vmatprep.subr.bf16.mxu0 0
        %4239 = vmatpush1.bf16.msra.mxu0 0
        %4240 = vmatprep.subr.bf16.mxu0 0
        %4241 = vmatpush1.bf16.msra.mxu0 0
        %4242 = vmatprep.subr.bf16.mxu0 0
        %4243 = vmatpush1.bf16.msra.mxu0 0
        %4244 = vmatprep.subr.bf16.mxu0 0
        %4245 = vmatpush1.bf16.msra.mxu0 0
        %4246 = vmatprep.mubr.bf16.mxu0 0
        %4247 = vmatmul.mubr.bf16.gmra.mrb[0].mxu0 %v4111
        %v4248 = vpop.f32.mrb[0].mxu0
        %v4249 = vadd.f32 0.0, %v4248
        %v4250 = vpop.f32.mrb[0].mxu0
        %v4251 = vadd.f32 0.0, %v4250
        %v4252 = vpop.f32.mrb[0].mxu0
        %v4253 = vadd.f32 0.0, %v4252
        %v4254 = vpop.f32.mrb[0].mxu0
        %v4255 = vadd.f32 0.0, %v4254
        %4256 = vmatprep.mubr.bf16.mxu0 0
        %4257 = vmatmul.mubr.bf16.gmra.mrb[0].mxu0 %v4113
        %v4258 = vpop.f32.mrb[0].mxu0
        %v4259 = vadd.f32 0.0, %v4258
        %v4260 = vpop.f32.mrb[0].mxu0
        %v4261 = vadd.f32 0.0, %v4260
        %v4262 = vpop.f32.mrb[0].mxu0
        %v4263 = vadd.f32 0.0, %v4262
        %v4264 = vpop.f32.mrb[0].mxu0
        %v4265 = vadd.f32 0.0, %v4264
        %4266 = vmatprep.mubr.bf16.mxu0 0
        %4267 = vmatmul.mubr.bf16.gmra.mrb[0].mxu0 %v4115
        %v4268 = vpop.f32.mrb[0].mxu0
        %v4269 = vadd.f32 0.0, %v4268
        %v4270 = vpop.f32.mrb[0].mxu0
        %v4271 = vadd.f32 0.0, %v4270
        %v4272 = vpop.f32.mrb[0].mxu0
        %v4273 = vadd.f32 0.0, %v4272
        %v4274 = vpop.f32.mrb[0].mxu0
        %v4275 = vadd.f32 0.0, %v4274
        %4276 = vmatprep.mubr.bf16.mxu0 0
        %4277 = vmatmul.mubr.bf16.gmra.mrb[0].mxu0 %v4117
        %v4278 = vpop.f32.mrb[0].mxu0
        %v4279 = vadd.f32 0.0, %v4278
        %v4280 = vpop.f32.mrb[0].mxu0
        %v4281 = vadd.f32 0.0, %v4280
        %v4282 = vpop.f32.mrb[0].mxu0
        %v4283 = vadd.f32 0.0, %v4282
        %v4284 = vpop.f32.mrb[0].mxu0
        %v4285 = vadd.f32 0.0, %v4284
        %4286 = vmatprep.mubr.bf16.mxu0 0
        %4287 = vmatmul.mubr.bf16.gmra.mrb[0].mxu0 %v4119
        %v4288 = vpop.f32.mrb[0].mxu0
        %v4289 = vadd.f32 0.0, %v4288
        %v4290 = vpop.f32.mrb[0].mxu0
        %v4291 = vadd.f32 0.0, %v4290
        %v4292 = vpop.f32.mrb[0].mxu0
        %v4293 = vadd.f32 0.0, %v4292
        %v4294 = vpop.f32.mrb[0].mxu0
        %v4295 = vadd.f32 0.0, %v4294
        %4296 = vmatprep.mubr.bf16.mxu0 0
        %4297 = vmatmul.mubr.bf16.gmra.mrb[0].mxu0 %v4121
        %v4298 = vpop.f32.mrb[0].mxu0
        %v4299 = vadd.f32 0.0, %v4298
        %v4300 = vpop.f32.mrb[0].mxu0
        %v4301 = vadd.f32 0.0, %v4300
        %v4302 = vpop.f32.mrb[0].mxu0
        %v4303 = vadd.f32 0.0, %v4302
        %v4304 = vpop.f32.mrb[0].mxu0
        %v4305 = vadd.f32 0.0, %v4304
        %4306 = vmatprep.mubr.bf16.mxu0 0
        %4307 = vmatmul.mubr.bf16.gmra.mrb[0].mxu0 %v4123
        %v4308 = vpop.f32.mrb[0].mxu0
        %v4309 = vadd.f32 0.0, %v4308
        %v4310 = vpop.f32.mrb[0].mxu0
        %v4311 = vadd.f32 0.0, %v4310
        %v4312 = vpop.f32.mrb[0].mxu0
        %v4313 = vadd.f32 0.0, %v4312
        %v4314 = vpop.f32.mrb[0].mxu0
        %v4315 = vadd.f32 0.0, %v4314
        %4316 = vmatprep.mubr.bf16.mxu0 0
        %4317 = vmatmul.mubr.bf16.gmra.mrb[0].mxu0 %v4125
        %v4318 = vpop.f32.mrb[0].mxu0
        %v4319 = vadd.f32 0.0, %v4318
        %v4320 = vpop.f32.mrb[0].mxu0
        %v4321 = vadd.f32 0.0, %v4320
        %v4322 = vpop.f32.mrb[0].mxu0
        %v4323 = vadd.f32 0.0, %v4322
        %v4324 = vpop.f32.mrb[0].mxu0
        %v4325 = vadd.f32 0.0, %v4324
        %4326 = vdwg.mxu0
        %v4327 = vadd.f32 %v4010, %v4249
        %v4328 = vadd.f32 %v4012, %v4251
        %v4329 = vadd.f32 %v4014, %v4253
        %v4330 = vadd.f32 %v4016, %v4255
        %v4331 = vadd.f32 %v4020, %v4259
        %v4332 = vadd.f32 %v4022, %v4261
        %v4333 = vadd.f32 %v4024, %v4263
        %v4334 = vadd.f32 %v4026, %v4265
        %v4335 = vadd.f32 %v4030, %v4269
        %v4336 = vadd.f32 %v4032, %v4271
        %v4337 = vadd.f32 %v4034, %v4273
        %v4338 = vadd.f32 %v4036, %v4275
        %v4339 = vadd.f32 %v4040, %v4279
        %v4340 = vadd.f32 %v4042, %v4281
        %v4341 = vadd.f32 %v4044, %v4283
        %v4342 = vadd.f32 %v4046, %v4285
        %v4343 = vadd.f32 %v4050, %v4289
        %v4344 = vadd.f32 %v4052, %v4291
        %v4345 = vadd.f32 %v4054, %v4293
        %v4346 = vadd.f32 %v4056, %v4295
        %v4347 = vadd.f32 %v4060, %v4299
        %v4348 = vadd.f32 %v4062, %v4301
        %v4349 = vadd.f32 %v4064, %v4303
        %v4350 = vadd.f32 %v4066, %v4305
        %v4351 = vadd.f32 %v4070, %v4309
        %v4352 = vadd.f32 %v4072, %v4311
        %v4353 = vadd.f32 %v4074, %v4313
        %v4354 = vadd.f32 %v4076, %v4315
        %v4355 = vadd.f32 %v4080, %v4319
        %v4356 = vadd.f32 %v4082, %v4321
        %v4357 = vadd.f32 %v4084, %v4323
        %v4358 = vadd.f32 %v4086, %v4325
        %v4359 = vld [vmem:[#allocation2 + $0x40] sm:$0x3]
        %s4360 = scalar_lea.vmem %s5, 384
        %v4361 = vld [vmem:[%s4360] sm:$0xff]
        %v4362 = vld [vmem:[%s4360 + $0x8] sm:$0xff]
        %v4363 = vld [vmem:[%s4360 + $0x10] sm:$0xff]
        %v4364 = vld [vmem:[%s4360 + $0x18] sm:$0xff]
        %v4365 = vld [vmem:[%s4360 + $0x20] sm:$0xff]
        %v4366 = vld [vmem:[%s4360 + $0x28] sm:$0xff]
        %v4367 = vld [vmem:[%s4360 + $0x30] sm:$0xff]
        %v4368 = vld [vmem:[%s4360 + $0x38] sm:$0xff]
        %v4369 = vld [vmem:[%s4360 + $0x40] sm:$0xff]
        %v4370 = vld [vmem:[%s4360 + $0x48] sm:$0xff]
        %v4371 = vld [vmem:[%s4360 + $0x50] sm:$0xff]
        %v4372 = vld [vmem:[%s4360 + $0x58] sm:$0xff]
        %v4373 = vld [vmem:[%s4360 + $0x60] sm:$0xff]
        %v4374 = vld [vmem:[%s4360 + $0x68] sm:$0xff]
        %v4375 = vld [vmem:[%s4360 + $0x70] sm:$0xff]
        %v4376 = vld [vmem:[%s4360 + $0x78] sm:$0xff]
        %v4378 = vunpack.c.l.b16 %v4359
        %v4379 = vpack.c.b16 %v4378, %v4378
        %v4381 = vshrl.u32 %v4108, 16
        %v4383 = vrot.slane %v4381, 1
        %v4384 = vshll.u32 %v4108, 16
        %v4386 = vrot.slane %v4384, 2
        %v4387 = vor.u32 %v4383, %v4386
        %v4388 = vrot.slane %v3590, 1
        %v4389 = vrot.slane %v3586, 2
        %v4390 = vor.u32 %v4388, %v4389
        %v4391 = vsel %vm1897, %v4387, %v4390
        %v4392 = vrot.slane %v3598, 1
        %v4393 = vrot.slane %v3594, 2
        %v4394 = vor.u32 %v4392, %v4393
        %v4395 = vsel %vm1897, %v4390, %v4394
        %v4396 = vrot.slane %v3606, 1
        %v4397 = vrot.slane %v3602, 2
        %v4398 = vor.u32 %v4396, %v4397
        %v4399 = vsel %vm1897, %v4394, %v4398
        %v4400 = vrot.slane %v3614, 1
        %v4401 = vrot.slane %v3610, 2
        %v4402 = vor.u32 %v4400, %v4401
        %v4403 = vsel %vm1897, %v4398, %v4402
        %v4404 = vrot.slane %v3622, 1
        %v4405 = vrot.slane %v3618, 2
        %v4406 = vor.u32 %v4404, %v4405
        %v4407 = vsel %vm1897, %v4402, %v4406
        %v4408 = vrot.slane %v3630, 1
        %v4409 = vrot.slane %v3626, 2
        %v4410 = vor.u32 %v4408, %v4409
        %v4411 = vsel %vm1897, %v4406, %v4410
        %v4412 = vrot.slane %v3638, 1
        %v4413 = vrot.slane %v3634, 2
        %v4414 = vor.u32 %v4412, %v4413
        %v4415 = vsel %vm1897, %v4410, %v4414
        %v4417 = vshrl.u32 %v4379, 16
        %v4419 = vrot.slane %v4417, 1
        %v4420 = vshll.u32 %v4379, 16
        %v4422 = vrot.slane %v4420, 2
        %v4423 = vor.u32 %v4419, %v4422
        %v4424 = vsel %vm1897, %v4414, %v4423
        %v4449 = vunpack.c.l.b16 %v4361
        %v4450 = vunpack.c.h.b16 %v4361
        %v4451 = vunpack.c.l.b16 %v4362
        %v4452 = vunpack.c.h.b16 %v4362
        %v4453 = vunpack.c.l.b16 %v4363
        %v4454 = vunpack.c.h.b16 %v4363
        %v4455 = vunpack.c.l.b16 %v4364
        %v4456 = vunpack.c.h.b16 %v4364
        %v4457 = vunpack.c.l.b16 %v4365
        %v4458 = vunpack.c.h.b16 %v4365
        %v4459 = vunpack.c.l.b16 %v4366
        %v4460 = vunpack.c.h.b16 %v4366
        %v4461 = vunpack.c.l.b16 %v4367
        %v4462 = vunpack.c.h.b16 %v4367
        %v4463 = vunpack.c.l.b16 %v4368
        %v4464 = vunpack.c.h.b16 %v4368
        %v4465 = vunpack.c.l.b16 %v4369
        %v4466 = vunpack.c.h.b16 %v4369
        %v4467 = vunpack.c.l.b16 %v4370
        %v4468 = vunpack.c.h.b16 %v4370
        %v4469 = vunpack.c.l.b16 %v4371
        %v4470 = vunpack.c.h.b16 %v4371
        %v4471 = vunpack.c.l.b16 %v4372
        %v4472 = vunpack.c.h.b16 %v4372
        %v4473 = vunpack.c.l.b16 %v4373
        %v4474 = vunpack.c.h.b16 %v4373
        %v4475 = vunpack.c.l.b16 %v4374
        %v4476 = vunpack.c.h.b16 %v4374
        %v4477 = vunpack.c.l.b16 %v4375
        %v4478 = vunpack.c.h.b16 %v4375
        %v4479 = vunpack.c.l.b16 %v4376
        %v4480 = vunpack.c.h.b16 %v4376
        %v4481 = vpack.c.b16 %v4451, %v4449
        %v4482 = vpack.c.b16 %v4452, %v4450
        %v4483 = vpack.c.b16 %v4455, %v4453
        %v4484 = vpack.c.b16 %v4456, %v4454
        %v4485 = vpack.c.b16 %v4459, %v4457
        %v4486 = vpack.c.b16 %v4460, %v4458
        %v4487 = vpack.c.b16 %v4463, %v4461
        %v4488 = vpack.c.b16 %v4464, %v4462
        %v4489 = vpack.c.b16 %v4467, %v4465
        %v4490 = vpack.c.b16 %v4468, %v4466
        %v4491 = vpack.c.b16 %v4471, %v4469
        %v4492 = vpack.c.b16 %v4472, %v4470
        %v4493 = vpack.c.b16 %v4475, %v4473
        %v4494 = vpack.c.b16 %v4476, %v4474
        %v4495 = vpack.c.b16 %v4479, %v4477
        %v4496 = vpack.c.b16 %v4480, %v4478
        %4513 = vmatprep.subr.bf16.mxu0 %v4482
        %4514 = vmatpush1.bf16.msra.mxu0 %v4481
        %4515 = vmatprep.subr.bf16.mxu0 %v4484
        %4516 = vmatpush1.bf16.msra.mxu0 %v4483
        %4517 = vmatprep.subr.bf16.mxu0 %v4486
        %4518 = vmatpush1.bf16.msra.mxu0 %v4485
        %4519 = vmatprep.subr.bf16.mxu0 %v4488
        %4520 = vmatpush1.bf16.msra.mxu0 %v4487
        %4521 = vmatprep.subr.bf16.mxu0 %v4490
        %4522 = vmatpush1.bf16.msra.mxu0 %v4489
        %4523 = vmatprep.subr.bf16.mxu0 %v4492
        %4524 = vmatpush1.bf16.msra.mxu0 %v4491
        %4525 = vmatprep.subr.bf16.mxu0 %v4494
        %4526 = vmatpush1.bf16.msra.mxu0 %v4493
        %4527 = vmatprep.subr.bf16.mxu0 %v4496
        %4528 = vmatpush1.bf16.msra.mxu0 %v4495
        %4529 = vmatprep.subr.bf16.mxu0 0
        %4530 = vmatpush1.bf16.msra.mxu0 0
        %4531 = vmatprep.subr.bf16.mxu0 0
        %4532 = vmatpush1.bf16.msra.mxu0 0
        %4533 = vmatprep.subr.bf16.mxu0 0
        %4534 = vmatpush1.bf16.msra.mxu0 0
        %4535 = vmatprep.subr.bf16.mxu0 0
        %4536 = vmatpush1.bf16.msra.mxu0 0
        %4537 = vmatprep.subr.bf16.mxu0 0
        %4538 = vmatpush1.bf16.msra.mxu0 0
        %4539 = vmatprep.subr.bf16.mxu0 0
        %4540 = vmatpush1.bf16.msra.mxu0 0
        %4541 = vmatprep.subr.bf16.mxu0 0
        %4542 = vmatpush1.bf16.msra.mxu0 0
        %4543 = vmatprep.subr.bf16.mxu0 0
        %4544 = vmatpush1.bf16.msra.mxu0 0
        %4545 = vmatprep.mubr.bf16.mxu0 0
        %4546 = vmatmul.mubr.bf16.gmra.mrb[0].mxu0 %v4391
        %v4547 = vpop.f32.mrb[0].mxu0
        %v4548 = vadd.f32 0.0, %v4547
        %v4549 = vpop.f32.mrb[0].mxu0
        %v4550 = vadd.f32 0.0, %v4549
        %v4551 = vpop.f32.mrb[0].mxu0
        %v4552 = vadd.f32 0.0, %v4551
        %v4553 = vpop.f32.mrb[0].mxu0
        %v4554 = vadd.f32 0.0, %v4553
        %4555 = vmatprep.mubr.bf16.mxu0 0
        %4556 = vmatmul.mubr.bf16.gmra.mrb[0].mxu0 %v4395
        %v4557 = vpop.f32.mrb[0].mxu0
        %v4558 = vadd.f32 0.0, %v4557
        %v4559 = vpop.f32.mrb[0].mxu0
        %v4560 = vadd.f32 0.0, %v4559
        %v4561 = vpop.f32.mrb[0].mxu0
        %v4562 = vadd.f32 0.0, %v4561
        %v4563 = vpop.f32.mrb[0].mxu0
        %v4564 = vadd.f32 0.0, %v4563
        %4565 = vmatprep.mubr.bf16.mxu0 0
        %4566 = vmatmul.mubr.bf16.gmra.mrb[0].mxu0 %v4399
        %v4567 = vpop.f32.mrb[0].mxu0
        %v4568 = vadd.f32 0.0, %v4567
        %v4569 = vpop.f32.mrb[0].mxu0
        %v4570 = vadd.f32 0.0, %v4569
        %v4571 = vpop.f32.mrb[0].mxu0
        %v4572 = vadd.f32 0.0, %v4571
        %v4573 = vpop.f32.mrb[0].mxu0
        %v4574 = vadd.f32 0.0, %v4573
        %4575 = vmatprep.mubr.bf16.mxu0 0
        %4576 = vmatmul.mubr.bf16.gmra.mrb[0].mxu0 %v4403
        %v4577 = vpop.f32.mrb[0].mxu0
        %v4578 = vadd.f32 0.0, %v4577
        %v4579 = vpop.f32.mrb[0].mxu0
        %v4580 = vadd.f32 0.0, %v4579
        %v4581 = vpop.f32.mrb[0].mxu0
        %v4582 = vadd.f32 0.0, %v4581
        %v4583 = vpop.f32.mrb[0].mxu0
        %v4584 = vadd.f32 0.0, %v4583
        %4585 = vmatprep.mubr.bf16.mxu0 0
        %4586 = vmatmul.mubr.bf16.gmra.mrb[0].mxu0 %v4407
        %v4587 = vpop.f32.mrb[0].mxu0
        %v4588 = vadd.f32 0.0, %v4587
        %v4589 = vpop.f32.mrb[0].mxu0
        %v4590 = vadd.f32 0.0, %v4589
        %v4591 = vpop.f32.mrb[0].mxu0
        %v4592 = vadd.f32 0.0, %v4591
        %v4593 = vpop.f32.mrb[0].mxu0
        %v4594 = vadd.f32 0.0, %v4593
        %4595 = vmatprep.mubr.bf16.mxu0 0
        %4596 = vmatmul.mubr.bf16.gmra.mrb[0].mxu0 %v4411
        %v4597 = vpop.f32.mrb[0].mxu0
        %v4598 = vadd.f32 0.0, %v4597
        %v4599 = vpop.f32.mrb[0].mxu0
        %v4600 = vadd.f32 0.0, %v4599
        %v4601 = vpop.f32.mrb[0].mxu0
        %v4602 = vadd.f32 0.0, %v4601
        %v4603 = vpop.f32.mrb[0].mxu0
        %v4604 = vadd.f32 0.0, %v4603
        %4605 = vmatprep.mubr.bf16.mxu0 0
        %4606 = vmatmul.mubr.bf16.gmra.mrb[0].mxu0 %v4415
        %v4607 = vpop.f32.mrb[0].mxu0
        %v4608 = vadd.f32 0.0, %v4607
        %v4609 = vpop.f32.mrb[0].mxu0
        %v4610 = vadd.f32 0.0, %v4609
        %v4611 = vpop.f32.mrb[0].mxu0
        %v4612 = vadd.f32 0.0, %v4611
        %v4613 = vpop.f32.mrb[0].mxu0
        %v4614 = vadd.f32 0.0, %v4613
        %4615 = vmatprep.mubr.bf16.mxu0 0
        %4616 = vmatmul.mubr.bf16.gmra.mrb[0].mxu0 %v4424
        %v4617 = vpop.f32.mrb[0].mxu0
        %v4618 = vadd.f32 0.0, %v4617
        %v4619 = vpop.f32.mrb[0].mxu0
        %v4620 = vadd.f32 0.0, %v4619
        %v4621 = vpop.f32.mrb[0].mxu0
        %v4622 = vadd.f32 0.0, %v4621
        %v4623 = vpop.f32.mrb[0].mxu0
        %v4624 = vadd.f32 0.0, %v4623
        %4625 = vdwg.mxu0
        %v4626 = vadd.f32 %v4327, %v4548
        %v4627 = vadd.f32 %v4328, %v4550
        %v4628 = vadd.f32 %v4329, %v4552
        %v4629 = vadd.f32 %v4330, %v4554
        %v4630 = vadd.f32 %v4331, %v4558
        %v4631 = vadd.f32 %v4332, %v4560
        %v4632 = vadd.f32 %v4333, %v4562
        %v4633 = vadd.f32 %v4334, %v4564
        %v4634 = vadd.f32 %v4335, %v4568
        %v4635 = vadd.f32 %v4336, %v4570
        %v4636 = vadd.f32 %v4337, %v4572
        %v4637 = vadd.f32 %v4338, %v4574
        %v4638 = vadd.f32 %v4339, %v4578
        %v4639 = vadd.f32 %v4340, %v4580
        %v4640 = vadd.f32 %v4341, %v4582
        %v4641 = vadd.f32 %v4342, %v4584
        %v4642 = vadd.f32 %v4343, %v4588
        %v4643 = vadd.f32 %v4344, %v4590
        %v4644 = vadd.f32 %v4345, %v4592
        %v4645 = vadd.f32 %v4346, %v4594
        %v4646 = vadd.f32 %v4347, %v4598
        %v4647 = vadd.f32 %v4348, %v4600
        %v4648 = vadd.f32 %v4349, %v4602
        %v4649 = vadd.f32 %v4350, %v4604
        %v4650 = vadd.f32 %v4351, %v4608
        %v4651 = vadd.f32 %v4352, %v4610
        %v4652 = vadd.f32 %v4353, %v4612
        %v4653 = vadd.f32 %v4354, %v4614
        %v4654 = vadd.f32 %v4355, %v4618
        %v4655 = vadd.f32 %v4356, %v4620
        %v4656 = vadd.f32 %v4357, %v4622
        %v4657 = vadd.f32 %v4358, %v4624
        %v4658 = vld [vmem:[#allocation2] sm:$0xc]
        %s4659 = scalar_lea.vmem %s5, 512
        %v4660 = vld [vmem:[%s4659] sm:$0xff]
        %v4661 = vld [vmem:[%s4659 + $0x8] sm:$0xff]
        %v4662 = vld [vmem:[%s4659 + $0x10] sm:$0xff]
        %v4663 = vld [vmem:[%s4659 + $0x18] sm:$0xff]
        %v4664 = vld [vmem:[%s4659 + $0x20] sm:$0xff]
        %v4665 = vld [vmem:[%s4659 + $0x28] sm:$0xff]
        %v4666 = vld [vmem:[%s4659 + $0x30] sm:$0xff]
        %v4667 = vld [vmem:[%s4659 + $0x38] sm:$0xff]
        %v4668 = vld [vmem:[%s4659 + $0x40] sm:$0xff]
        %v4669 = vld [vmem:[%s4659 + $0x48] sm:$0xff]
        %v4670 = vld [vmem:[%s4659 + $0x50] sm:$0xff]
        %v4671 = vld [vmem:[%s4659 + $0x58] sm:$0xff]
        %v4672 = vld [vmem:[%s4659 + $0x60] sm:$0xff]
        %v4673 = vld [vmem:[%s4659 + $0x68] sm:$0xff]
        %v4674 = vld [vmem:[%s4659 + $0x70] sm:$0xff]
        %v4675 = vld [vmem:[%s4659 + $0x78] sm:$0xff]
        %v4677 = vunpack.c.l.b16 %v4658
        %v4678 = vpack.c.b16 %v3553, %v4677
        %v4679 = vrot.slane %v4678, 2
        %v4680 = vrot.slane %v3570, 2
        %v4681 = vsel %vm2349, %v4679, %v4680
        %v4682 = vrot.slane %v3571, 2
        %v4683 = vsel %vm2349, %v4680, %v4682
        %v4684 = vrot.slane %v3572, 2
        %v4685 = vsel %vm2349, %v4682, %v4684
        %v4686 = vrot.slane %v3573, 2
        %v4687 = vsel %vm2349, %v4684, %v4686
        %v4688 = vrot.slane %v3574, 2
        %v4689 = vsel %vm2349, %v4686, %v4688
        %v4690 = vrot.slane %v3575, 2
        %v4691 = vsel %vm2349, %v4688, %v4690
        %v4692 = vrot.slane %v3576, 2
        %v4693 = vsel %vm2349, %v4690, %v4692
        %v4694 = vrot.slane %v4379, 2
        %v4695 = vsel %vm2349, %v4692, %v4694
        %v4720 = vunpack.c.l.b16 %v4660
        %v4721 = vunpack.c.h.b16 %v4660
        %v4722 = vunpack.c.l.b16 %v4661
        %v4723 = vunpack.c.h.b16 %v4661
        %v4724 = vunpack.c.l.b16 %v4662
        %v4725 = vunpack.c.h.b16 %v4662
        %v4726 = vunpack.c.l.b16 %v4663
        %v4727 = vunpack.c.h.b16 %v4663
        %v4728 = vunpack.c.l.b16 %v4664
        %v4729 = vunpack.c.h.b16 %v4664
        %v4730 = vunpack.c.l.b16 %v4665
        %v4731 = vunpack.c.h.b16 %v4665
        %v4732 = vunpack.c.l.b16 %v4666
        %v4733 = vunpack.c.h.b16 %v4666
        %v4734 = vunpack.c.l.b16 %v4667
        %v4735 = vunpack.c.h.b16 %v4667
        %v4736 = vunpack.c.l.b16 %v4668
        %v4737 = vunpack.c.h.b16 %v4668
        %v4738 = vunpack.c.l.b16 %v4669
        %v4739 = vunpack.c.h.b16 %v4669
        %v4740 = vunpack.c.l.b16 %v4670
        %v4741 = vunpack.c.h.b16 %v4670
        %v4742 = vunpack.c.l.b16 %v4671
        %v4743 = vunpack.c.h.b16 %v4671
        %v4744 = vunpack.c.l.b16 %v4672
        %v4745 = vunpack.c.h.b16 %v4672
        %v4746 = vunpack.c.l.b16 %v4673
        %v4747 = vunpack.c.h.b16 %v4673
        %v4748 = vunpack.c.l.b16 %v4674
        %v4749 = vunpack.c.h.b16 %v4674
        %v4750 = vunpack.c.l.b16 %v4675
        %v4751 = vunpack.c.h.b16 %v4675
        %v4752 = vpack.c.b16 %v4722, %v4720
        %v4753 = vpack.c.b16 %v4723, %v4721
        %v4754 = vpack.c.b16 %v4726, %v4724
        %v4755 = vpack.c.b16 %v4727, %v4725
        %v4756 = vpack.c.b16 %v4730, %v4728
        %v4757 = vpack.c.b16 %v4731, %v4729
        %v4758 = vpack.c.b16 %v4734, %v4732
        %v4759 = vpack.c.b16 %v4735, %v4733
        %v4760 = vpack.c.b16 %v4738, %v4736
        %v4761 = vpack.c.b16 %v4739, %v4737
        %v4762 = vpack.c.b16 %v4742, %v4740
        %v4763 = vpack.c.b16 %v4743, %v4741
        %v4764 = vpack.c.b16 %v4746, %v4744
        %v4765 = vpack.c.b16 %v4747, %v4745
        %v4766 = vpack.c.b16 %v4750, %v4748
        %v4767 = vpack.c.b16 %v4751, %v4749
        %4784 = vmatprep.subr.bf16.mxu0 %v4753
        %4785 = vmatpush1.bf16.msra.mxu0 %v4752
        %4786 = vmatprep.subr.bf16.mxu0 %v4755
        %4787 = vmatpush1.bf16.msra.mxu0 %v4754
        %4788 = vmatprep.subr.bf16.mxu0 %v4757
        %4789 = vmatpush1.bf16.msra.mxu0 %v4756
        %4790 = vmatprep.subr.bf16.mxu0 %v4759
        %4791 = vmatpush1.bf16.msra.mxu0 %v4758
        %4792 = vmatprep.subr.bf16.mxu0 %v4761
        %4793 = vmatpush1.bf16.msra.mxu0 %v4760
        %4794 = vmatprep.subr.bf16.mxu0 %v4763
        %4795 = vmatpush1.bf16.msra.mxu0 %v4762
        %4796 = vmatprep.subr.bf16.mxu0 %v4765
        %4797 = vmatpush1.bf16.msra.mxu0 %v4764
        %4798 = vmatprep.subr.bf16.mxu0 %v4767
        %4799 = vmatpush1.bf16.msra.mxu0 %v4766
        %4800 = vmatprep.subr.bf16.mxu0 0
        %4801 = vmatpush1.bf16.msra.mxu0 0
        %4802 = vmatprep.subr.bf16.mxu0 0
        %4803 = vmatpush1.bf16.msra.mxu0 0
        %4804 = vmatprep.subr.bf16.mxu0 0
        %4805 = vmatpush1.bf16.msra.mxu0 0
        %4806 = vmatprep.subr.bf16.mxu0 0
        %4807 = vmatpush1.bf16.msra.mxu0 0
        %4808 = vmatprep.subr.bf16.mxu0 0
        %4809 = vmatpush1.bf16.msra.mxu0 0
        %4810 = vmatprep.subr.bf16.mxu0 0
        %4811 = vmatpush1.bf16.msra.mxu0 0
        %4812 = vmatprep.subr.bf16.mxu0 0
        %4813 = vmatpush1.bf16.msra.mxu0 0
        %4814 = vmatprep.subr.bf16.mxu0 0
        %4815 = vmatpush1.bf16.msra.mxu0 0
        %4816 = vmatprep.mubr.bf16.mxu0 0
        %4817 = vmatmul.mubr.bf16.gmra.mrb[0].mxu0 %v4681
        %v4818 = vpop.f32.mrb[0].mxu0
        %v4819 = vadd.f32 0.0, %v4818
        %v4820 = vpop.f32.mrb[0].mxu0
        %v4821 = vadd.f32 0.0, %v4820
        %v4822 = vpop.f32.mrb[0].mxu0
        %v4823 = vadd.f32 0.0, %v4822
        %v4824 = vpop.f32.mrb[0].mxu0
        %v4825 = vadd.f32 0.0, %v4824
        %4826 = vmatprep.mubr.bf16.mxu0 0
        %4827 = vmatmul.mubr.bf16.gmra.mrb[0].mxu0 %v4683
        %v4828 = vpop.f32.mrb[0].mxu0
        %v4829 = vadd.f32 0.0, %v4828
        %v4830 = vpop.f32.mrb[0].mxu0
        %v4831 = vadd.f32 0.0, %v4830
        %v4832 = vpop.f32.mrb[0].mxu0
        %v4833 = vadd.f32 0.0, %v4832
        %v4834 = vpop.f32.mrb[0].mxu0
        %v4835 = vadd.f32 0.0, %v4834
        %4836 = vmatprep.mubr.bf16.mxu0 0
        %4837 = vmatmul.mubr.bf16.gmra.mrb[0].mxu0 %v4685
        %v4838 = vpop.f32.mrb[0].mxu0
        %v4839 = vadd.f32 0.0, %v4838
        %v4840 = vpop.f32.mrb[0].mxu0
        %v4841 = vadd.f32 0.0, %v4840
        %v4842 = vpop.f32.mrb[0].mxu0
        %v4843 = vadd.f32 0.0, %v4842
        %v4844 = vpop.f32.mrb[0].mxu0
        %v4845 = vadd.f32 0.0, %v4844
        %4846 = vmatprep.mubr.bf16.mxu0 0
        %4847 = vmatmul.mubr.bf16.gmra.mrb[0].mxu0 %v4687
        %v4848 = vpop.f32.mrb[0].mxu0
        %v4849 = vadd.f32 0.0, %v4848
        %v4850 = vpop.f32.mrb[0].mxu0
        %v4851 = vadd.f32 0.0, %v4850
        %v4852 = vpop.f32.mrb[0].mxu0
        %v4853 = vadd.f32 0.0, %v4852
        %v4854 = vpop.f32.mrb[0].mxu0
        %v4855 = vadd.f32 0.0, %v4854
        %4856 = vmatprep.mubr.bf16.mxu0 0
        %4857 = vmatmul.mubr.bf16.gmra.mrb[0].mxu0 %v4689
        %v4858 = vpop.f32.mrb[0].mxu0
        %v4859 = vadd.f32 0.0, %v4858
        %v4860 = vpop.f32.mrb[0].mxu0
        %v4861 = vadd.f32 0.0, %v4860
        %v4862 = vpop.f32.mrb[0].mxu0
        %v4863 = vadd.f32 0.0, %v4862
        %v4864 = vpop.f32.mrb[0].mxu0
        %v4865 = vadd.f32 0.0, %v4864
        %4866 = vmatprep.mubr.bf16.mxu0 0
        %4867 = vmatmul.mubr.bf16.gmra.mrb[0].mxu0 %v4691
        %v4868 = vpop.f32.mrb[0].mxu0
        %v4869 = vadd.f32 0.0, %v4868
        %v4870 = vpop.f32.mrb[0].mxu0
        %v4871 = vadd.f32 0.0, %v4870
        %v4872 = vpop.f32.mrb[0].mxu0
        %v4873 = vadd.f32 0.0, %v4872
        %v4874 = vpop.f32.mrb[0].mxu0
        %v4875 = vadd.f32 0.0, %v4874
        %4876 = vmatprep.mubr.bf16.mxu0 0
        %4877 = vmatmul.mubr.bf16.gmra.mrb[0].mxu0 %v4693
        %v4878 = vpop.f32.mrb[0].mxu0
        %v4879 = vadd.f32 0.0, %v4878
        %v4880 = vpop.f32.mrb[0].mxu0
        %v4881 = vadd.f32 0.0, %v4880
        %v4882 = vpop.f32.mrb[0].mxu0
        %v4883 = vadd.f32 0.0, %v4882
        %v4884 = vpop.f32.mrb[0].mxu0
        %v4885 = vadd.f32 0.0, %v4884
        %4886 = vmatprep.mubr.bf16.mxu0 0
        %4887 = vmatmul.mubr.bf16.gmra.mrb[0].mxu0 %v4695
        %v4888 = vpop.f32.mrb[0].mxu0
        %v4889 = vadd.f32 0.0, %v4888
        %v4890 = vpop.f32.mrb[0].mxu0
        %v4891 = vadd.f32 0.0, %v4890
        %v4892 = vpop.f32.mrb[0].mxu0
        %v4893 = vadd.f32 0.0, %v4892
        %v4894 = vpop.f32.mrb[0].mxu0
        %v4895 = vadd.f32 0.0, %v4894
        %4896 = vdwg.mxu0
        %v4897 = vadd.f32 %v4626, %v4819
        %v4898 = vadd.f32 %v4627, %v4821
        %v4899 = vadd.f32 %v4628, %v4823
        %v4900 = vadd.f32 %v4629, %v4825
        %v4901 = vadd.f32 %v4630, %v4829
        %v4902 = vadd.f32 %v4631, %v4831
        %v4903 = vadd.f32 %v4632, %v4833
        %v4904 = vadd.f32 %v4633, %v4835
        %v4905 = vadd.f32 %v4634, %v4839
        %v4906 = vadd.f32 %v4635, %v4841
        %v4907 = vadd.f32 %v4636, %v4843
        %v4908 = vadd.f32 %v4637, %v4845
        %v4909 = vadd.f32 %v4638, %v4849
        %v4910 = vadd.f32 %v4639, %v4851
        %v4911 = vadd.f32 %v4640, %v4853
        %v4912 = vadd.f32 %v4641, %v4855
        %v4913 = vadd.f32 %v4642, %v4859
        %v4914 = vadd.f32 %v4643, %v4861
        %v4915 = vadd.f32 %v4644, %v4863
        %v4916 = vadd.f32 %v4645, %v4865
        %v4917 = vadd.f32 %v4646, %v4869
        %v4918 = vadd.f32 %v4647, %v4871
        %v4919 = vadd.f32 %v4648, %v4873
        %v4920 = vadd.f32 %v4649, %v4875
        %v4921 = vadd.f32 %v4650, %v4879
        %v4922 = vadd.f32 %v4651, %v4881
        %v4923 = vadd.f32 %v4652, %v4883
        %v4924 = vadd.f32 %v4653, %v4885
        %v4925 = vadd.f32 %v4654, %v4889
        %v4926 = vadd.f32 %v4655, %v4891
        %v4927 = vadd.f32 %v4656, %v4893
        %v4928 = vadd.f32 %v4657, %v4895
        %v4929 = vld [vmem:[%s6] sm:$0x3]
        %v4931 = vlaneseq
        %v4932 = vshrl.u32 %v4931, 7
        %v4933 = vsub.s32 0, %v4932
        %v4934 = vrot.slane %v4929, %v4933
        %v4935 = vlaneseq
        %v4936 = vshrl.u32 %v4935, 7
        %v4937 = vsub.s32 1, %v4936
        %v4938 = vrot.slane %v4929, %v4937
        %v4941 = vadd.f32 %v4897, %v4934
        %v4942 = vadd.f32 %v4898, %v4938
        %v4943 = vadd.f32 %v4899, %v4934
        %v4944 = vadd.f32 %v4900, %v4938
        %v4945 = vadd.f32 %v4901, %v4934
        %v4946 = vadd.f32 %v4902, %v4938
        %v4947 = vadd.f32 %v4903, %v4934
        %v4948 = vadd.f32 %v4904, %v4938
        %v4949 = vadd.f32 %v4905, %v4934
        %v4950 = vadd.f32 %v4906, %v4938
        %v4951 = vadd.f32 %v4907, %v4934
        %v4952 = vadd.f32 %v4908, %v4938
        %v4953 = vadd.f32 %v4909, %v4934
        %v4954 = vadd.f32 %v4910, %v4938
        %v4955 = vadd.f32 %v4911, %v4934
        %v4956 = vadd.f32 %v4912, %v4938
        %v4957 = vadd.f32 %v4913, %v4934
        %v4958 = vadd.f32 %v4914, %v4938
        %v4959 = vadd.f32 %v4915, %v4934
        %v4960 = vadd.f32 %v4916, %v4938
        %v4961 = vadd.f32 %v4917, %v4934
        %v4962 = vadd.f32 %v4918, %v4938
        %v4963 = vadd.f32 %v4919, %v4934
        %v4964 = vadd.f32 %v4920, %v4938
        %v4965 = vadd.f32 %v4921, %v4934
        %v4966 = vadd.f32 %v4922, %v4938
        %v4967 = vadd.f32 %v4923, %v4934
        %v4968 = vadd.f32 %v4924, %v4938
        %v4969 = vadd.f32 %v4925, %v4934
        %v4970 = vadd.f32 %v4926, %v4938
        %v4971 = vadd.f32 %v4927, %v4934
        %v4972 = vadd.f32 %v4928, %v4938
        %v4973 = vmax.f32 %v4941, 0.0
        %v4974 = vmax.f32 %v4942, 0.0
        %v4975 = vmax.f32 %v4943, 0.0
        %v4976 = vmax.f32 %v4944, 0.0
        %v4977 = vmax.f32 %v4945, 0.0
        %v4978 = vmax.f32 %v4946, 0.0
        %v4979 = vmax.f32 %v4947, 0.0
        %v4980 = vmax.f32 %v4948, 0.0
        %v4981 = vmax.f32 %v4949, 0.0
        %v4982 = vmax.f32 %v4950, 0.0
        %v4983 = vmax.f32 %v4951, 0.0
        %v4984 = vmax.f32 %v4952, 0.0
        %v4985 = vmax.f32 %v4953, 0.0
        %v4986 = vmax.f32 %v4954, 0.0
        %v4987 = vmax.f32 %v4955, 0.0
        %v4988 = vmax.f32 %v4956, 0.0
        %v4989 = vmax.f32 %v4957, 0.0
        %v4990 = vmax.f32 %v4958, 0.0
        %v4991 = vmax.f32 %v4959, 0.0
        %v4992 = vmax.f32 %v4960, 0.0
        %v4993 = vmax.f32 %v4961, 0.0
        %v4994 = vmax.f32 %v4962, 0.0
        %v4995 = vmax.f32 %v4963, 0.0
        %v4996 = vmax.f32 %v4964, 0.0
        %v4997 = vmax.f32 %v4965, 0.0
        %v4998 = vmax.f32 %v4966, 0.0
        %v4999 = vmax.f32 %v4967, 0.0
        %v5000 = vmax.f32 %v4968, 0.0
        %v5001 = vmax.f32 %v4969, 0.0
        %v5002 = vmax.f32 %v4970, 0.0
        %v5003 = vmax.f32 %v4971, 0.0
        %v5004 = vmax.f32 %v4972, 0.0
        %v5005 = vpack.c.bf16 %v4975, %v4973
        %v5006 = vpack.c.bf16 %v4976, %v4974
        %v5007 = vpack.c.bf16 %v4979, %v4977
        %v5008 = vpack.c.bf16 %v4980, %v4978
        %v5009 = vpack.c.bf16 %v4983, %v4981
        %v5010 = vpack.c.bf16 %v4984, %v4982
        %v5011 = vpack.c.bf16 %v4987, %v4985
        %v5012 = vpack.c.bf16 %v4988, %v4986
        %v5013 = vpack.c.bf16 %v4991, %v4989
        %v5014 = vpack.c.bf16 %v4992, %v4990
        %v5015 = vpack.c.bf16 %v4995, %v4993
        %v5016 = vpack.c.bf16 %v4996, %v4994
        %v5017 = vpack.c.bf16 %v4999, %v4997
        %v5018 = vpack.c.bf16 %v5000, %v4998
        %v5019 = vpack.c.bf16 %v5003, %v5001
        %v5020 = vpack.c.bf16 %v5004, %v5002
        %v5021 = vld [vmem:[%s7] sm:$0xf]
        %v5022 = vld [vmem:[%s7 + $0x4] sm:$0xf]
        %v5023 = vld [vmem:[%s7 + $0x8] sm:$0xf]
        %v5024 = vld [vmem:[%s7 + $0xc] sm:$0xf]
        %v5025 = vld [vmem:[%s7 + $0x10] sm:$0xf]
        %v5031 = vunpack.c.l.b16 %v5021
        %v5032 = vunpack.c.l.b16 %v5022
        %v5033 = vunpack.c.l.b16 %v5023
        %v5034 = vunpack.c.l.b16 %v5024
        %v5035 = vunpack.c.l.b16 %v5025
        %v5036 = vpack.c.b16 %v5032, %v5031
        %v5037 = vpack.c.b16 %v5034, %v5033
        %v5038 = vpack.c.b16 %v5035, %v5035
        %5042 = vmatprep.subr.bf16.mxu0 %v5006
        %5043 = vmatpush1.bf16.msra.mxu0 %v5005
        %5044 = vmatprep.subr.bf16.mxu0 %v5008
        %5045 = vmatpush1.bf16.msra.mxu0 %v5007
        %5046 = vmatprep.subr.bf16.mxu0 %v5010
        %5047 = vmatpush1.bf16.msra.mxu0 %v5009
        %5048 = vmatprep.subr.bf16.mxu0 %v5012
        %5049 = vmatpush1.bf16.msra.mxu0 %v5011
        %5050 = vmatprep.subr.bf16.mxu0 %v5014
        %5051 = vmatpush1.bf16.msra.mxu0 %v5013
        %5052 = vmatprep.subr.bf16.mxu0 %v5016
        %5053 = vmatpush1.bf16.msra.mxu0 %v5015
        %5054 = vmatprep.subr.bf16.mxu0 %v5018
        %5055 = vmatpush1.bf16.msra.mxu0 %v5017
        %5056 = vmatprep.subr.bf16.mxu0 %v5020
        %5057 = vmatpush1.bf16.msra.mxu0 %v5019
        %5058 = vmatprep.subr.bf16.mxu0 0
        %5059 = vmatpush1.bf16.msra.mxu0 0
        %5060 = vmatprep.subr.bf16.mxu0 0
        %5061 = vmatpush1.bf16.msra.mxu0 0
        %5062 = vmatprep.subr.bf16.mxu0 0
        %5063 = vmatpush1.bf16.msra.mxu0 0
        %5064 = vmatprep.subr.bf16.mxu0 0
        %5065 = vmatpush1.bf16.msra.mxu0 0
        %5066 = vmatprep.subr.bf16.mxu0 0
        %5067 = vmatpush1.bf16.msra.mxu0 0
        %5068 = vmatprep.subr.bf16.mxu0 0
        %5069 = vmatpush1.bf16.msra.mxu0 0
        %5070 = vmatprep.subr.bf16.mxu0 0
        %5071 = vmatpush1.bf16.msra.mxu0 0
        %5072 = vmatprep.subr.bf16.mxu0 0
        %5073 = vmatpush1.bf16.msra.mxu0 0
        %5074 = vmatprep.mubr.bf16.mxu0 0
        %5075 = vmatmul.mubr.bf16.gmra.mrb[0].mxu0 %v5036
        %v5076 = vpop.f32.mrb[0].mxu0
        %v5077 = vadd.f32 0.0, %v5076
        %v5078 = vpop.f32.mrb[0].mxu0
        %v5079 = vadd.f32 0.0, %v5078
        %v5080 = vpop.f32.mrb[0].mxu0
        %v5081 = vadd.f32 0.0, %v5080
        %v5082 = vpop.f32.mrb[0].mxu0
        %v5083 = vadd.f32 0.0, %v5082
        %5084 = vmatprep.mubr.bf16.mxu0 0
        %5085 = vmatmul.mubr.bf16.gmra.mrb[0].mxu0 %v5037
        %v5086 = vpop.f32.mrb[0].mxu0
        %v5087 = vadd.f32 0.0, %v5086
        %v5088 = vpop.f32.mrb[0].mxu0
        %v5089 = vadd.f32 0.0, %v5088
        %v5090 = vpop.f32.mrb[0].mxu0
        %v5091 = vadd.f32 0.0, %v5090
        %v5092 = vpop.f32.mrb[0].mxu0
        %v5093 = vadd.f32 0.0, %v5092
        %5094 = vmatprep.mubr.bf16.mxu0 0
        %5095 = vmatmul.mubr.bf16.gmra.mrb[0].mxu0 %v5038
        %v5096 = vpop.f32.mrb[0].mxu0
        %v5097 = vadd.f32 0.0, %v5096
        %v5098 = vpop.f32.mrb[0].mxu0
        %v5099 = vadd.f32 0.0, %v5098
        %v5100 = vpop.f32.mrb[0].mxu0
        %v5101 = vpop.f32.mrb[0].mxu0
        %5102 = vdwg.mxu0
        %v5103 = vpack.c.bf16 %v5081, %v5077
        %v5104 = vpack.c.bf16 %v5083, %v5079
        %v5105 = vpack.c.bf16 %v5091, %v5087
        %v5106 = vpack.c.bf16 %v5093, %v5089
        %v5107 = vpack.c.bf16 %v5097, %v5097
        %v5108 = vpack.c.bf16 %v5099, %v5099
        %v5109 = vld [vmem:[%s8] sm:$0xf]
        %v5110 = vld [vmem:[%s8 + $0x4] sm:$0xf]
        %v5111 = vld [vmem:[%s8 + $0x8] sm:$0xf]
        %v5112 = vld [vmem:[%s8 + $0xc] sm:$0xf]
        %v5113 = vld [vmem:[%s8 + $0x10] sm:$0xf]
        %v5114 = vld [vmem:[%s8 + $0x14] sm:$0xf]
        %v5115 = vld [vmem:[%s8 + $0x18] sm:$0xf]
        %v5116 = vld [vmem:[%s8 + $0x1c] sm:$0xf]
        %v5117 = vld [vmem:[%s8 + $0x20] sm:$0xf]
        %v5118 = vld [vmem:[%s8 + $0x24] sm:$0xf]
        %v5119 = vld [vmem:[%s8 + $0x28] sm:$0xf]
        %v5120 = vld [vmem:[%s8 + $0x2c] sm:$0xf]
        %v5121 = vld [vmem:[%s8 + $0x30] sm:$0xf]
        %v5122 = vld [vmem:[%s8 + $0x34] sm:$0xf]
        %v5123 = vld [vmem:[%s8 + $0x38] sm:$0xf]
        %v5124 = vld [vmem:[%s8 + $0x3c] sm:$0xf]
        %v5125 = vld [vmem:[%s8 + $0x40] sm:$0xf]
        %v5126 = vld [vmem:[%s8 + $0x44] sm:$0xf]
        %v5127 = vld [vmem:[%s8 + $0x48] sm:$0xf]
        %v5128 = vld [vmem:[%s8 + $0x4c] sm:$0xf]
        %v5129 = vld [vmem:[%s8 + $0x50] sm:$0xf]
        %v5130 = vld [vmem:[%s8 + $0x54] sm:$0xf]
        %v5131 = vld [vmem:[%s8 + $0x58] sm:$0xf]
        %v5132 = vld [vmem:[%s8 + $0x5c] sm:$0xf]
        %v5133 = vld [vmem:[%s8 + $0x60] sm:$0xf]
        %v5134 = vld [vmem:[%s8 + $0x64] sm:$0xf]
        %v5135 = vld [vmem:[%s8 + $0x68] sm:$0xf]
        %v5136 = vld [vmem:[%s8 + $0x6c] sm:$0xf]
        %v5137 = vld [vmem:[%s8 + $0x70] sm:$0xf]
        %v5138 = vld [vmem:[%s8 + $0x74] sm:$0xf]
        %v5139 = vld [vmem:[%s8 + $0x78] sm:$0xf]
        %v5140 = vld [vmem:[%s8 + $0x7c] sm:$0xf]
        %v5173 = vunpack.c.l.b16 %v5109
        %v5174 = vunpack.c.l.b16 %v5110
        %v5175 = vunpack.c.l.b16 %v5111
        %v5176 = vunpack.c.l.b16 %v5112
        %v5177 = vunpack.c.l.b16 %v5113
        %v5178 = vunpack.c.l.b16 %v5114
        %v5179 = vunpack.c.l.b16 %v5115
        %v5180 = vunpack.c.l.b16 %v5116
        %v5181 = vunpack.c.l.b16 %v5117
        %v5182 = vunpack.c.l.b16 %v5118
        %v5183 = vunpack.c.l.b16 %v5119
        %v5184 = vunpack.c.l.b16 %v5120
        %v5185 = vunpack.c.l.b16 %v5121
        %v5186 = vunpack.c.l.b16 %v5122
        %v5187 = vunpack.c.l.b16 %v5123
        %v5188 = vunpack.c.l.b16 %v5124
        %v5189 = vunpack.c.l.b16 %v5125
        %v5190 = vunpack.c.l.b16 %v5126
        %v5191 = vunpack.c.l.b16 %v5127
        %v5192 = vunpack.c.l.b16 %v5128
        %v5193 = vunpack.c.l.b16 %v5129
        %v5194 = vunpack.c.l.b16 %v5130
        %v5195 = vunpack.c.l.b16 %v5131
        %v5196 = vunpack.c.l.b16 %v5132
        %v5197 = vunpack.c.l.b16 %v5133
        %v5198 = vunpack.c.l.b16 %v5134
        %v5199 = vunpack.c.l.b16 %v5135
        %v5200 = vunpack.c.l.b16 %v5136
        %v5201 = vunpack.c.l.b16 %v5137
        %v5202 = vunpack.c.l.b16 %v5138
        %v5203 = vunpack.c.l.b16 %v5139
        %v5204 = vunpack.c.l.b16 %v5140
        %v5205 = vpack.c.b16 %v5174, %v5173
        %v5206 = vpack.c.b16 %v5176, %v5175
        %v5207 = vpack.c.b16 %v5178, %v5177
        %v5208 = vpack.c.b16 %v5180, %v5179
        %v5209 = vpack.c.b16 %v5182, %v5181
        %v5210 = vpack.c.b16 %v5184, %v5183
        %v5211 = vpack.c.b16 %v5186, %v5185
        %v5212 = vpack.c.b16 %v5188, %v5187
        %v5213 = vpack.c.b16 %v5190, %v5189
        %v5214 = vpack.c.b16 %v5192, %v5191
        %v5215 = vpack.c.b16 %v5194, %v5193
        %v5216 = vpack.c.b16 %v5196, %v5195
        %v5217 = vpack.c.b16 %v5198, %v5197
        %v5218 = vpack.c.b16 %v5200, %v5199
        %v5219 = vpack.c.b16 %v5202, %v5201
        %v5220 = vpack.c.b16 %v5204, %v5203
        %5237 = vmatprep.subr.bf16.mxu0 0
        %5238 = vmatpush1.bf16.msra.mxu0 %v5205
        %5239 = vmatprep.subr.bf16.mxu0 0
        %5240 = vmatpush1.bf16.msra.mxu0 %v5206
        %5241 = vmatprep.subr.bf16.mxu0 0
        %5242 = vmatpush1.bf16.msra.mxu0 %v5207
        %5243 = vmatprep.subr.bf16.mxu0 0
        %5244 = vmatpush1.bf16.msra.mxu0 %v5208
        %5245 = vmatprep.subr.bf16.mxu0 0
        %5246 = vmatpush1.bf16.msra.mxu0 %v5209
        %5247 = vmatprep.subr.bf16.mxu0 0
        %5248 = vmatpush1.bf16.msra.mxu0 %v5210
        %5249 = vmatprep.subr.bf16.mxu0 0
        %5250 = vmatpush1.bf16.msra.mxu0 %v5211
        %5251 = vmatprep.subr.bf16.mxu0 0
        %5252 = vmatpush1.bf16.msra.mxu0 %v5212
        %5253 = vmatprep.subr.bf16.mxu0 0
        %5254 = vmatpush1.bf16.msra.mxu0 %v5213
        %5255 = vmatprep.subr.bf16.mxu0 0
        %5256 = vmatpush1.bf16.msra.mxu0 %v5214
        %5257 = vmatprep.subr.bf16.mxu0 0
        %5258 = vmatpush1.bf16.msra.mxu0 %v5215
        %5259 = vmatprep.subr.bf16.mxu0 0
        %5260 = vmatpush1.bf16.msra.mxu0 %v5216
        %5261 = vmatprep.subr.bf16.mxu0 0
        %5262 = vmatpush1.bf16.msra.mxu0 %v5217
        %5263 = vmatprep.subr.bf16.mxu0 0
        %5264 = vmatpush1.bf16.msra.mxu0 %v5218
        %5265 = vmatprep.subr.bf16.mxu0 0
        %5266 = vmatpush1.bf16.msra.mxu0 %v5219
        %5267 = vmatprep.subr.bf16.mxu0 0
        %5268 = vmatpush1.bf16.msra.mxu0 %v5220
        %5269 = vmatprep.mubr.bf16.mxu0 %v5104
        %5270 = vmatmul.mubr.bf16.gmra.mrb[0].mxu0 %v5103
        %v5271 = vpop.f32.mrb[0].mxu0
        %v5272 = vadd.f32 0.0, %v5271
        %v5273 = vpop.f32.mrb[0].mxu0
        %v5274 = vpop.f32.mrb[0].mxu0
        %v5275 = vadd.f32 0.0, %v5274
        %v5276 = vpop.f32.mrb[0].mxu0
        %5277 = vmatprep.mubr.bf16.mxu0 %v5106
        %5278 = vmatmul.mubr.bf16.gmra.mrb[0].mxu0 %v5105
        %v5279 = vpop.f32.mrb[0].mxu0
        %v5280 = vadd.f32 0.0, %v5279
        %v5281 = vpop.f32.mrb[0].mxu0
        %v5282 = vpop.f32.mrb[0].mxu0
        %v5283 = vadd.f32 0.0, %v5282
        %v5284 = vpop.f32.mrb[0].mxu0
        %5285 = vmatprep.mubr.bf16.mxu0 %v5108
        %5286 = vmatmul.mubr.bf16.gmra.mrb[0].mxu0 %v5107
        %v5287 = vpop.f32.mrb[0].mxu0
        %v5288 = vadd.f32 0.0, %v5287
        %v5289 = vpop.f32.mrb[0].mxu0
        %v5290 = vpop.f32.mrb[0].mxu0
        %v5291 = vpop.f32.mrb[0].mxu0
        %5292 = vdwg.mxu0
        %v5293 = vpack.c.bf16 %v5275, %v5272
        %v5294 = vpack.c.bf16 %v5283, %v5280
        %v5295 = vpack.c.bf16 %v5288, %v5288
        %v5296 = vld [vmem:[%s9] sm:$0xf]
        %v5297 = vld [vmem:[%s9 + $0x4] sm:$0xf]
        %v5298 = vld [vmem:[%s9 + $0x8] sm:$0xf]
        %v5299 = vld [vmem:[%s9 + $0xc] sm:$0xf]
        %v5300 = vld [vmem:[%s9 + $0x10] sm:$0xf]
        %v5301 = vld [vmem:[%s9 + $0x14] sm:$0xf]
        %v5302 = vld [vmem:[%s9 + $0x18] sm:$0xf]
        %v5303 = vld [vmem:[%s9 + $0x1c] sm:$0xf]
        %v5304 = vld [vmem:[%s9 + $0x20] sm:$0xf]
        %v5305 = vld [vmem:[%s9 + $0x24] sm:$0xf]
        %v5306 = vld [vmem:[%s9 + $0x28] sm:$0xf]
        %v5307 = vld [vmem:[%s9 + $0x2c] sm:$0xf]
        %v5308 = vld [vmem:[%s9 + $0x30] sm:$0xf]
        %v5309 = vld [vmem:[%s9 + $0x34] sm:$0xf]
        %v5310 = vld [vmem:[%s9 + $0x38] sm:$0xf]
        %v5311 = vld [vmem:[%s9 + $0x3c] sm:$0xf]
        %s5312 = scalar_lea.vmem %s9, 64
        %v5313 = vld [vmem:[%s5312] sm:$0xf]
        %v5314 = vld [vmem:[%s5312 + $0x4] sm:$0xf]
        %v5315 = vld [vmem:[%s5312 + $0x8] sm:$0xf]
        %v5316 = vld [vmem:[%s5312 + $0xc] sm:$0xf]
        %v5317 = vld [vmem:[%s5312 + $0x10] sm:$0xf]
        %v5318 = vld [vmem:[%s5312 + $0x14] sm:$0xf]
        %v5319 = vld [vmem:[%s5312 + $0x18] sm:$0xf]
        %v5320 = vld [vmem:[%s5312 + $0x1c] sm:$0xf]
        %v5321 = vld [vmem:[%s5312 + $0x20] sm:$0xf]
        %v5322 = vld [vmem:[%s5312 + $0x24] sm:$0xf]
        %v5323 = vld [vmem:[%s5312 + $0x28] sm:$0xf]
        %v5324 = vld [vmem:[%s5312 + $0x2c] sm:$0xf]
        %v5325 = vld [vmem:[%s5312 + $0x30] sm:$0xf]
        %v5326 = vld [vmem:[%s5312 + $0x34] sm:$0xf]
        %v5327 = vld [vmem:[%s5312 + $0x38] sm:$0xf]
        %v5328 = vld [vmem:[%s5312 + $0x3c] sm:$0xf]
        %v5330 = vrot.slane %v5293, 4
        %v5348 = vunpack.c.l.b16 %v5313
        %v5349 = vunpack.c.l.b16 %v5314
        %v5350 = vunpack.c.l.b16 %v5315
        %v5351 = vunpack.c.l.b16 %v5316
        %v5352 = vunpack.c.l.b16 %v5317
        %v5353 = vunpack.c.l.b16 %v5318
        %v5354 = vunpack.c.l.b16 %v5319
        %v5355 = vunpack.c.l.b16 %v5320
        %v5356 = vunpack.c.l.b16 %v5321
        %v5357 = vunpack.c.l.b16 %v5322
        %v5358 = vunpack.c.l.b16 %v5323
        %v5359 = vunpack.c.l.b16 %v5324
        %v5360 = vunpack.c.l.b16 %v5325
        %v5361 = vunpack.c.l.b16 %v5326
        %v5362 = vunpack.c.l.b16 %v5327
        %v5363 = vunpack.c.l.b16 %v5328
        %v5364 = vpack.c.b16 %v5349, %v5348
        %v5365 = vpack.c.b16 %v5351, %v5350
        %v5366 = vpack.c.b16 %v5353, %v5352
        %v5367 = vpack.c.b16 %v5355, %v5354
        %v5368 = vpack.c.b16 %v5357, %v5356
        %v5369 = vpack.c.b16 %v5359, %v5358
        %v5370 = vpack.c.b16 %v5361, %v5360
        %v5371 = vpack.c.b16 %v5363, %v5362
        %5380 = vmatprep.subr.bf16.mxu0 0
        %5381 = vmatpush1.bf16.msra.mxu0 %v5364
        %5382 = vmatprep.subr.bf16.mxu0 0
        %5383 = vmatpush1.bf16.msra.mxu0 %v5365
        %5384 = vmatprep.subr.bf16.mxu0 0
        %5385 = vmatpush1.bf16.msra.mxu0 %v5366
        %5386 = vmatprep.subr.bf16.mxu0 0
        %5387 = vmatpush1.bf16.msra.mxu0 %v5367
        %5388 = vmatprep.subr.bf16.mxu0 0
        %5389 = vmatpush1.bf16.msra.mxu0 %v5368
        %5390 = vmatprep.subr.bf16.mxu0 0
        %5391 = vmatpush1.bf16.msra.mxu0 %v5369
        %5392 = vmatprep.subr.bf16.mxu0 0
        %5393 = vmatpush1.bf16.msra.mxu0 %v5370
        %5394 = vmatprep.subr.bf16.mxu0 0
        %5395 = vmatpush1.bf16.msra.mxu0 %v5371
        %5396 = vmatprep.subr.bf16.mxu0 0
        %5397 = vmatpush1.bf16.msra.mxu0 0
        %5398 = vmatprep.subr.bf16.mxu0 0
        %5399 = vmatpush1.bf16.msra.mxu0 0
        %5400 = vmatprep.subr.bf16.mxu0 0
        %5401 = vmatpush1.bf16.msra.mxu0 0
        %5402 = vmatprep.subr.bf16.mxu0 0
        %5403 = vmatpush1.bf16.msra.mxu0 0
        %5404 = vmatprep.subr.bf16.mxu0 0
        %5405 = vmatpush1.bf16.msra.mxu0 0
        %5406 = vmatprep.subr.bf16.mxu0 0
        %5407 = vmatpush1.bf16.msra.mxu0 0
        %5408 = vmatprep.subr.bf16.mxu0 0
        %5409 = vmatpush1.bf16.msra.mxu0 0
        %5410 = vmatprep.subr.bf16.mxu0 0
        %5411 = vmatpush1.bf16.msra.mxu0 0
        %5412 = vmatprep.mubr.bf16.mxu0 0
        %5413 = vmatmul.mubr.bf16.gmra.mrb[0].mxu0 %v5330
        %v5414 = vpop.f32.mrb[0].mxu0
        %v5415 = vadd.f32 0.0, %v5414
        %v5416 = vpop.f32.mrb[0].mxu0
        %v5417 = vpop.f32.mrb[0].mxu0
        %v5418 = vpop.f32.mrb[0].mxu0
        %5419 = vdwg.mxu0
        %v5436 = vunpack.c.l.b16 %v5296
        %v5437 = vunpack.c.l.b16 %v5297
        %v5438 = vunpack.c.l.b16 %v5298
        %v5439 = vunpack.c.l.b16 %v5299
        %v5440 = vunpack.c.l.b16 %v5300
        %v5441 = vunpack.c.l.b16 %v5301
        %v5442 = vunpack.c.l.b16 %v5302
        %v5443 = vunpack.c.l.b16 %v5303
        %v5444 = vunpack.c.l.b16 %v5304
        %v5445 = vunpack.c.l.b16 %v5305
        %v5446 = vunpack.c.l.b16 %v5306
        %v5447 = vunpack.c.l.b16 %v5307
        %v5448 = vunpack.c.l.b16 %v5308
        %v5449 = vunpack.c.l.b16 %v5309
        %v5450 = vunpack.c.l.b16 %v5310
        %v5451 = vunpack.c.l.b16 %v5311
        %v5452 = vpack.c.b16 %v5437, %v5436
        %v5453 = vpack.c.b16 %v5439, %v5438
        %v5454 = vpack.c.b16 %v5441, %v5440
        %v5455 = vpack.c.b16 %v5443, %v5442
        %v5456 = vpack.c.b16 %v5445, %v5444
        %v5457 = vpack.c.b16 %v5447, %v5446
        %v5458 = vpack.c.b16 %v5449, %v5448
        %v5459 = vpack.c.b16 %v5451, %v5450
        %5468 = vmatprep.subr.bf16.mxu0 0
        %5469 = vmatpush1.bf16.msra.mxu0 %v5452
        %5470 = vmatprep.subr.bf16.mxu0 0
        %5471 = vmatpush1.bf16.msra.mxu0 %v5453
        %5472 = vmatprep.subr.bf16.mxu0 0
        %5473 = vmatpush1.bf16.msra.mxu0 %v5454
        %5474 = vmatprep.subr.bf16.mxu0 0
        %5475 = vmatpush1.bf16.msra.mxu0 %v5455
        %5476 = vmatprep.subr.bf16.mxu0 0
        %5477 = vmatpush1.bf16.msra.mxu0 %v5456
        %5478 = vmatprep.subr.bf16.mxu0 0
        %5479 = vmatpush1.bf16.msra.mxu0 %v5457
        %5480 = vmatprep.subr.bf16.mxu0 0
        %5481 = vmatpush1.bf16.msra.mxu0 %v5458
        %5482 = vmatprep.subr.bf16.mxu0 0
        %5483 = vmatpush1.bf16.msra.mxu0 %v5459
        %5484 = vmatprep.subr.bf16.mxu0 0
        %5485 = vmatpush1.bf16.msra.mxu0 0
        %5486 = vmatprep.subr.bf16.mxu0 0
        %5487 = vmatpush1.bf16.msra.mxu0 0
        %5488 = vmatprep.subr.bf16.mxu0 0
        %5489 = vmatpush1.bf16.msra.mxu0 0
        %5490 = vmatprep.subr.bf16.mxu0 0
        %5491 = vmatpush1.bf16.msra.mxu0 0
        %5492 = vmatprep.subr.bf16.mxu0 0
        %5493 = vmatpush1.bf16.msra.mxu0 0
        %5494 = vmatprep.subr.bf16.mxu0 0
        %5495 = vmatpush1.bf16.msra.mxu0 0
        %5496 = vmatprep.subr.bf16.mxu0 0
        %5497 = vmatpush1.bf16.msra.mxu0 0
        %5498 = vmatprep.subr.bf16.mxu0 0
        %5499 = vmatpush1.bf16.msra.mxu0 0
        %5500 = vmatprep.mubr.bf16.mxu0 0
        %5501 = vmatmul.mubr.bf16.gmra.mrb[0].mxu0 %v5293
        %v5502 = vpop.f32.mrb[0].mxu0
        %v5503 = vadd.f32 %v5415, %v5502
        %v5504 = vpop.f32.mrb[0].mxu0
        %v5505 = vpop.f32.mrb[0].mxu0
        %v5506 = vpop.f32.mrb[0].mxu0
        %5507 = vdwg.mxu0
        %s5508 = scalar_lea.vmem %s9, 128
        %v5509 = vld [vmem:[%s5508] sm:$0xf]
        %v5510 = vld [vmem:[%s5508 + $0x4] sm:$0xf]
        %v5511 = vld [vmem:[%s5508 + $0x8] sm:$0xf]
        %v5512 = vld [vmem:[%s5508 + $0xc] sm:$0xf]
        %v5513 = vld [vmem:[%s5508 + $0x10] sm:$0xf]
        %v5514 = vld [vmem:[%s5508 + $0x14] sm:$0xf]
        %v5515 = vld [vmem:[%s5508 + $0x18] sm:$0xf]
        %v5516 = vld [vmem:[%s5508 + $0x1c] sm:$0xf]
        %v5517 = vld [vmem:[%s5508 + $0x20] sm:$0xf]
        %v5518 = vld [vmem:[%s5508 + $0x24] sm:$0xf]
        %v5519 = vld [vmem:[%s5508 + $0x28] sm:$0xf]
        %v5520 = vld [vmem:[%s5508 + $0x2c] sm:$0xf]
        %v5521 = vld [vmem:[%s5508 + $0x30] sm:$0xf]
        %v5522 = vld [vmem:[%s5508 + $0x34] sm:$0xf]
        %v5523 = vld [vmem:[%s5508 + $0x38] sm:$0xf]
        %v5524 = vld [vmem:[%s5508 + $0x3c] sm:$0xf]
        %v5541 = vunpack.c.l.b16 %v5509
        %v5542 = vunpack.c.l.b16 %v5510
        %v5543 = vunpack.c.l.b16 %v5511
        %v5544 = vunpack.c.l.b16 %v5512
        %v5545 = vunpack.c.l.b16 %v5513
        %v5546 = vunpack.c.l.b16 %v5514
        %v5547 = vunpack.c.l.b16 %v5515
        %v5548 = vunpack.c.l.b16 %v5516
        %v5549 = vunpack.c.l.b16 %v5517
        %v5550 = vunpack.c.l.b16 %v5518
        %v5551 = vunpack.c.l.b16 %v5519
        %v5552 = vunpack.c.l.b16 %v5520
        %v5553 = vunpack.c.l.b16 %v5521
        %v5554 = vunpack.c.l.b16 %v5522
        %v5555 = vunpack.c.l.b16 %v5523
        %v5556 = vunpack.c.l.b16 %v5524
        %v5557 = vpack.c.b16 %v5542, %v5541
        %v5558 = vpack.c.b16 %v5544, %v5543
        %v5559 = vpack.c.b16 %v5546, %v5545
        %v5560 = vpack.c.b16 %v5548, %v5547
        %v5561 = vpack.c.b16 %v5550, %v5549
        %v5562 = vpack.c.b16 %v5552, %v5551
        %v5563 = vpack.c.b16 %v5554, %v5553
        %v5564 = vpack.c.b16 %v5556, %v5555
        %5573 = vmatprep.subr.bf16.mxu0 0
        %5574 = vmatpush1.bf16.msra.mxu0 %v5557
        %5575 = vmatprep.subr.bf16.mxu0 0
        %5576 = vmatpush1.bf16.msra.mxu0 %v5558
        %5577 = vmatprep.subr.bf16.mxu0 0
        %5578 = vmatpush1.bf16.msra.mxu0 %v5559
        %5579 = vmatprep.subr.bf16.mxu0 0
        %5580 = vmatpush1.bf16.msra.mxu0 %v5560
        %5581 = vmatprep.subr.bf16.mxu0 0
        %5582 = vmatpush1.bf16.msra.mxu0 %v5561
        %5583 = vmatprep.subr.bf16.mxu0 0
        %5584 = vmatpush1.bf16.msra.mxu0 %v5562
        %5585 = vmatprep.subr.bf16.mxu0 0
        %5586 = vmatpush1.bf16.msra.mxu0 %v5563
        %5587 = vmatprep.subr.bf16.mxu0 0
        %5588 = vmatpush1.bf16.msra.mxu0 %v5564
        %5589 = vmatprep.subr.bf16.mxu0 0
        %5590 = vmatpush1.bf16.msra.mxu0 0
        %5591 = vmatprep.subr.bf16.mxu0 0
        %5592 = vmatpush1.bf16.msra.mxu0 0
        %5593 = vmatprep.subr.bf16.mxu0 0
        %5594 = vmatpush1.bf16.msra.mxu0 0
        %5595 = vmatprep.subr.bf16.mxu0 0
        %5596 = vmatpush1.bf16.msra.mxu0 0
        %5597 = vmatprep.subr.bf16.mxu0 0
        %5598 = vmatpush1.bf16.msra.mxu0 0
        %5599 = vmatprep.subr.bf16.mxu0 0
        %5600 = vmatpush1.bf16.msra.mxu0 0
        %5601 = vmatprep.subr.bf16.mxu0 0
        %5602 = vmatpush1.bf16.msra.mxu0 0
        %5603 = vmatprep.subr.bf16.mxu0 0
        %5604 = vmatpush1.bf16.msra.mxu0 0
        %5605 = vmatprep.mubr.bf16.mxu0 0
        %5606 = vmatmul.mubr.bf16.gmra.mrb[0].mxu0 %v5294
        %v5607 = vpop.f32.mrb[0].mxu0
        %v5608 = vadd.f32 0.0, %v5607
        %v5609 = vpop.f32.mrb[0].mxu0
        %v5610 = vpop.f32.mrb[0].mxu0
        %v5611 = vpop.f32.mrb[0].mxu0
        %5612 = vdwg.mxu0
        %v5613 = vadd.f32 %v5503, %v5608
        %s5614 = scalar_lea.vmem %s9, 192
        %v5615 = vld [vmem:[%s5614] sm:$0xf]
        %v5616 = vld [vmem:[%s5614 + $0x4] sm:$0xf]
        %v5617 = vld [vmem:[%s5614 + $0x8] sm:$0xf]
        %v5618 = vld [vmem:[%s5614 + $0xc] sm:$0xf]
        %v5619 = vld [vmem:[%s5614 + $0x10] sm:$0xf]
        %v5620 = vld [vmem:[%s5614 + $0x14] sm:$0xf]
        %v5621 = vld [vmem:[%s5614 + $0x18] sm:$0xf]
        %v5622 = vld [vmem:[%s5614 + $0x1c] sm:$0xf]
        %v5623 = vld [vmem:[%s5614 + $0x20] sm:$0xf]
        %v5624 = vld [vmem:[%s5614 + $0x24] sm:$0xf]
        %v5625 = vld [vmem:[%s5614 + $0x28] sm:$0xf]
        %v5626 = vld [vmem:[%s5614 + $0x2c] sm:$0xf]
        %v5627 = vld [vmem:[%s5614 + $0x30] sm:$0xf]
        %v5628 = vld [vmem:[%s5614 + $0x34] sm:$0xf]
        %v5629 = vld [vmem:[%s5614 + $0x38] sm:$0xf]
        %v5630 = vld [vmem:[%s5614 + $0x3c] sm:$0xf]
        %v5632 = vrot.slane %v5294, 4
        %v5650 = vunpack.c.l.b16 %v5615
        %v5651 = vunpack.c.l.b16 %v5616
        %v5652 = vunpack.c.l.b16 %v5617
        %v5653 = vunpack.c.l.b16 %v5618
        %v5654 = vunpack.c.l.b16 %v5619
        %v5655 = vunpack.c.l.b16 %v5620
        %v5656 = vunpack.c.l.b16 %v5621
        %v5657 = vunpack.c.l.b16 %v5622
        %v5658 = vunpack.c.l.b16 %v5623
        %v5659 = vunpack.c.l.b16 %v5624
        %v5660 = vunpack.c.l.b16 %v5625
        %v5661 = vunpack.c.l.b16 %v5626
        %v5662 = vunpack.c.l.b16 %v5627
        %v5663 = vunpack.c.l.b16 %v5628
        %v5664 = vunpack.c.l.b16 %v5629
        %v5665 = vunpack.c.l.b16 %v5630
        %v5666 = vpack.c.b16 %v5651, %v5650
        %v5667 = vpack.c.b16 %v5653, %v5652
        %v5668 = vpack.c.b16 %v5655, %v5654
        %v5669 = vpack.c.b16 %v5657, %v5656
        %v5670 = vpack.c.b16 %v5659, %v5658
        %v5671 = vpack.c.b16 %v5661, %v5660
        %v5672 = vpack.c.b16 %v5663, %v5662
        %v5673 = vpack.c.b16 %v5665, %v5664
        %5682 = vmatprep.subr.bf16.mxu0 0
        %5683 = vmatpush1.bf16.msra.mxu0 %v5666
        %5684 = vmatprep.subr.bf16.mxu0 0
        %5685 = vmatpush1.bf16.msra.mxu0 %v5667
        %5686 = vmatprep.subr.bf16.mxu0 0
        %5687 = vmatpush1.bf16.msra.mxu0 %v5668
        %5688 = vmatprep.subr.bf16.mxu0 0
        %5689 = vmatpush1.bf16.msra.mxu0 %v5669
        %5690 = vmatprep.subr.bf16.mxu0 0
        %5691 = vmatpush1.bf16.msra.mxu0 %v5670
        %5692 = vmatprep.subr.bf16.mxu0 0
        %5693 = vmatpush1.bf16.msra.mxu0 %v5671
        %5694 = vmatprep.subr.bf16.mxu0 0
        %5695 = vmatpush1.bf16.msra.mxu0 %v5672
        %5696 = vmatprep.subr.bf16.mxu0 0
        %5697 = vmatpush1.bf16.msra.mxu0 %v5673
        %5698 = vmatprep.subr.bf16.mxu0 0
        %5699 = vmatpush1.bf16.msra.mxu0 0
        %5700 = vmatprep.subr.bf16.mxu0 0
        %5701 = vmatpush1.bf16.msra.mxu0 0
        %5702 = vmatprep.subr.bf16.mxu0 0
        %5703 = vmatpush1.bf16.msra.mxu0 0
        %5704 = vmatprep.subr.bf16.mxu0 0
        %5705 = vmatpush1.bf16.msra.mxu0 0
        %5706 = vmatprep.subr.bf16.mxu0 0
        %5707 = vmatpush1.bf16.msra.mxu0 0
        %5708 = vmatprep.subr.bf16.mxu0 0
        %5709 = vmatpush1.bf16.msra.mxu0 0
        %5710 = vmatprep.subr.bf16.mxu0 0
        %5711 = vmatpush1.bf16.msra.mxu0 0
        %5712 = vmatprep.subr.bf16.mxu0 0
        %5713 = vmatpush1.bf16.msra.mxu0 0
        %5714 = vmatprep.mubr.bf16.mxu0 0
        %5715 = vmatmul.mubr.bf16.gmra.mrb[0].mxu0 %v5632
        %v5716 = vpop.f32.mrb[0].mxu0
        %v5717 = vadd.f32 0.0, %v5716
        %v5718 = vpop.f32.mrb[0].mxu0
        %v5719 = vpop.f32.mrb[0].mxu0
        %v5720 = vpop.f32.mrb[0].mxu0
        %5721 = vdwg.mxu0
        %v5722 = vadd.f32 %v5613, %v5717
        %s5723 = scalar_lea.vmem %s9, 256
        %v5724 = vld [vmem:[%s5723] sm:$0xf]
        %v5725 = vld [vmem:[%s5723 + $0x4] sm:$0xf]
        %v5726 = vld [vmem:[%s5723 + $0x8] sm:$0xf]
        %v5727 = vld [vmem:[%s5723 + $0xc] sm:$0xf]
        %v5728 = vld [vmem:[%s5723 + $0x10] sm:$0xf]
        %v5729 = vld [vmem:[%s5723 + $0x14] sm:$0xf]
        %v5730 = vld [vmem:[%s5723 + $0x18] sm:$0xf]
        %v5731 = vld [vmem:[%s5723 + $0x1c] sm:$0xf]
        %v5732 = vld [vmem:[%s5723 + $0x20] sm:$0xf]
        %v5733 = vld [vmem:[%s5723 + $0x24] sm:$0xf]
        %v5734 = vld [vmem:[%s5723 + $0x28] sm:$0xf]
        %v5735 = vld [vmem:[%s5723 + $0x2c] sm:$0xf]
        %v5736 = vld [vmem:[%s5723 + $0x30] sm:$0xf]
        %v5737 = vld [vmem:[%s5723 + $0x34] sm:$0xf]
        %v5738 = vld [vmem:[%s5723 + $0x38] sm:$0xf]
        %v5739 = vld [vmem:[%s5723 + $0x3c] sm:$0xf]
        %v5756 = vunpack.c.l.b16 %v5724
        %v5757 = vunpack.c.l.b16 %v5725
        %v5758 = vunpack.c.l.b16 %v5726
        %v5759 = vunpack.c.l.b16 %v5727
        %v5760 = vunpack.c.l.b16 %v5728
        %v5761 = vunpack.c.l.b16 %v5729
        %v5762 = vunpack.c.l.b16 %v5730
        %v5763 = vunpack.c.l.b16 %v5731
        %v5764 = vunpack.c.l.b16 %v5732
        %v5765 = vunpack.c.l.b16 %v5733
        %v5766 = vunpack.c.l.b16 %v5734
        %v5767 = vunpack.c.l.b16 %v5735
        %v5768 = vunpack.c.l.b16 %v5736
        %v5769 = vunpack.c.l.b16 %v5737
        %v5770 = vunpack.c.l.b16 %v5738
        %v5771 = vunpack.c.l.b16 %v5739
        %v5772 = vpack.c.b16 %v5757, %v5756
        %v5773 = vpack.c.b16 %v5759, %v5758
        %v5774 = vpack.c.b16 %v5761, %v5760
        %v5775 = vpack.c.b16 %v5763, %v5762
        %v5776 = vpack.c.b16 %v5765, %v5764
        %v5777 = vpack.c.b16 %v5767, %v5766
        %v5778 = vpack.c.b16 %v5769, %v5768
        %v5779 = vpack.c.b16 %v5771, %v5770
        %5788 = vmatprep.subr.bf16.mxu0 0
        %5789 = vmatpush1.bf16.msra.mxu0 %v5772
        %5790 = vmatprep.subr.bf16.mxu0 0
        %5791 = vmatpush1.bf16.msra.mxu0 %v5773
        %5792 = vmatprep.subr.bf16.mxu0 0
        %5793 = vmatpush1.bf16.msra.mxu0 %v5774
        %5794 = vmatprep.subr.bf16.mxu0 0
        %5795 = vmatpush1.bf16.msra.mxu0 %v5775
        %5796 = vmatprep.subr.bf16.mxu0 0
        %5797 = vmatpush1.bf16.msra.mxu0 %v5776
        %5798 = vmatprep.subr.bf16.mxu0 0
        %5799 = vmatpush1.bf16.msra.mxu0 %v5777
        %5800 = vmatprep.subr.bf16.mxu0 0
        %5801 = vmatpush1.bf16.msra.mxu0 %v5778
        %5802 = vmatprep.subr.bf16.mxu0 0
        %5803 = vmatpush1.bf16.msra.mxu0 %v5779
        %5804 = vmatprep.subr.bf16.mxu0 0
        %5805 = vmatpush1.bf16.msra.mxu0 0
        %5806 = vmatprep.subr.bf16.mxu0 0
        %5807 = vmatpush1.bf16.msra.mxu0 0
        %5808 = vmatprep.subr.bf16.mxu0 0
        %5809 = vmatpush1.bf16.msra.mxu0 0
        %5810 = vmatprep.subr.bf16.mxu0 0
        %5811 = vmatpush1.bf16.msra.mxu0 0
        %5812 = vmatprep.subr.bf16.mxu0 0
        %5813 = vmatpush1.bf16.msra.mxu0 0
        %5814 = vmatprep.subr.bf16.mxu0 0
        %5815 = vmatpush1.bf16.msra.mxu0 0
        %5816 = vmatprep.subr.bf16.mxu0 0
        %5817 = vmatpush1.bf16.msra.mxu0 0
        %5818 = vmatprep.subr.bf16.mxu0 0
        %5819 = vmatpush1.bf16.msra.mxu0 0
        %5820 = vmatprep.mubr.bf16.mxu0 0
        %5821 = vmatmul.mubr.bf16.gmra.mrb[0].mxu0 %v5295
        %v5822 = vpop.f32.mrb[0].mxu0
        %v5823 = vadd.f32 0.0, %v5822
        %v5824 = vpop.f32.mrb[0].mxu0
        %v5825 = vpop.f32.mrb[0].mxu0
        %v5826 = vpop.f32.mrb[0].mxu0
        %5827 = vdwg.mxu0
        %v5828 = vadd.f32 %v5722, %v5823
        %v5829 = vld [vmem:[%s10] sm:$0x1]
        %v5831 = vlaneseq
        %v5832 = vshrl.u32 %v5831, 7
        %v5833 = vsub.s32 0, %v5832
        %v5834 = vrot.slane %v5829, %v5833
        %v5836 = vadd.f32 %v5828, %v5834
        %v5837 = vmax.f32 %v5836, 0.0
        %v5838 = vpack.c.bf16 %v5837, %v5837
        %v5839 = vld [vmem:[%s11] sm:$0xf]
        %v5840 = vld [vmem:[%s11 + $0x4] sm:$0xf]
        %v5841 = vld [vmem:[%s11 + $0x8] sm:$0xf]
        %v5842 = vld [vmem:[%s11 + $0xc] sm:$0xf]
        %v5843 = vld [vmem:[%s11 + $0x10] sm:$0xf]
        %v5844 = vld [vmem:[%s11 + $0x14] sm:$0xf]
        %v5845 = vld [vmem:[%s11 + $0x18] sm:$0xf]
        %v5846 = vld [vmem:[%s11 + $0x1c] sm:$0xf]
        %v5847 = vld [vmem:[%s11 + $0x20] sm:$0xf]
        %v5848 = vld [vmem:[%s11 + $0x24] sm:$0xf]
        %v5849 = vld [vmem:[%s11 + $0x28] sm:$0xf]
        %v5850 = vld [vmem:[%s11 + $0x2c] sm:$0xf]
        %v5851 = vld [vmem:[%s11 + $0x30] sm:$0xf]
        %v5852 = vld [vmem:[%s11 + $0x34] sm:$0xf]
        %v5853 = vld [vmem:[%s11 + $0x38] sm:$0xf]
        %v5854 = vld [vmem:[%s11 + $0x3c] sm:$0xf]
        %v5855 = vld [vmem:[%s12] sm:$0x1]
        %v5857 = vlaneseq
        %v5858 = vshrl.u32 %v5857, 7
        %v5859 = vsub.s32 0, %v5858
        %v5860 = vrot.slane %v5855, %v5859
        %v5878 = vunpack.c.l.b16 %v5839
        %v5879 = vunpack.c.l.b16 %v5840
        %v5880 = vunpack.c.l.b16 %v5841
        %v5881 = vunpack.c.l.b16 %v5842
        %v5882 = vunpack.c.l.b16 %v5843
        %v5883 = vunpack.c.l.b16 %v5844
        %v5884 = vunpack.c.l.b16 %v5845
        %v5885 = vunpack.c.l.b16 %v5846
        %v5886 = vunpack.c.l.b16 %v5847
        %v5887 = vunpack.c.l.b16 %v5848
        %v5888 = vunpack.c.l.b16 %v5849
        %v5889 = vunpack.c.l.b16 %v5850
        %v5890 = vunpack.c.l.b16 %v5851
        %v5891 = vunpack.c.l.b16 %v5852
        %v5892 = vunpack.c.l.b16 %v5853
        %v5893 = vunpack.c.l.b16 %v5854
        %v5894 = vpack.c.b16 %v5879, %v5878
        %v5895 = vpack.c.b16 %v5881, %v5880
        %v5896 = vpack.c.b16 %v5883, %v5882
        %v5897 = vpack.c.b16 %v5885, %v5884
        %v5898 = vpack.c.b16 %v5887, %v5886
        %v5899 = vpack.c.b16 %v5889, %v5888
        %v5900 = vpack.c.b16 %v5891, %v5890
        %v5901 = vpack.c.b16 %v5893, %v5892
        %5910 = vmatprep.subr.bf16.mxu0 0
        %5911 = vmatpush1.bf16.msra.mxu0 %v5894
        %5912 = vmatprep.subr.bf16.mxu0 0
        %5913 = vmatpush1.bf16.msra.mxu0 %v5895
        %5914 = vmatprep.subr.bf16.mxu0 0
        %5915 = vmatpush1.bf16.msra.mxu0 %v5896
        %5916 = vmatprep.subr.bf16.mxu0 0
        %5917 = vmatpush1.bf16.msra.mxu0 %v5897
        %5918 = vmatprep.subr.bf16.mxu0 0
        %5919 = vmatpush1.bf16.msra.mxu0 %v5898
        %5920 = vmatprep.subr.bf16.mxu0 0
        %5921 = vmatpush1.bf16.msra.mxu0 %v5899
        %5922 = vmatprep.subr.bf16.mxu0 0
        %5923 = vmatpush1.bf16.msra.mxu0 %v5900
        %5924 = vmatprep.subr.bf16.mxu0 0
        %5925 = vmatpush1.bf16.msra.mxu0 %v5901
        %5926 = vmatprep.subr.bf16.mxu0 0
        %5927 = vmatpush1.bf16.msra.mxu0 0
        %5928 = vmatprep.subr.bf16.mxu0 0
        %5929 = vmatpush1.bf16.msra.mxu0 0
        %5930 = vmatprep.subr.bf16.mxu0 0
        %5931 = vmatpush1.bf16.msra.mxu0 0
        %5932 = vmatprep.subr.bf16.mxu0 0
        %5933 = vmatpush1.bf16.msra.mxu0 0
        %5934 = vmatprep.subr.bf16.mxu0 0
        %5935 = vmatpush1.bf16.msra.mxu0 0
        %5936 = vmatprep.subr.bf16.mxu0 0
        %5937 = vmatpush1.bf16.msra.mxu0 0
        %5938 = vmatprep.subr.bf16.mxu0 0
        %5939 = vmatpush1.bf16.msra.mxu0 0
        %5940 = vmatprep.subr.bf16.mxu0 0
        %5941 = vmatpush1.bf16.msra.mxu0 0
        %5942 = vmatprep.mubr.bf16.mxu0 0
        %5943 = vmatmul.mubr.bf16.gmra.mrb[0].mxu0 %v5838
        %v5944 = vpop.f32.mrb[0].mxu0
        %v5945 = vadd.f32 %v5860, %v5944
        %v5946 = vpop.f32.mrb[0].mxu0
        %v5947 = vpop.f32.mrb[0].mxu0
        %v5948 = vpop.f32.mrb[0].mxu0
        %5949 = vdwg.mxu0
        %v5950 = vmax.f32 %v5945, 0.0
        %v5951 = vpack.c.bf16 %v5950, %v5950
        %v5952 = vld [vmem:[%s13] sm:$0xf]
        %v5953 = vld [vmem:[%s13 + $0x4] sm:$0xf]
        %v5954 = vld [vmem:[%s13 + $0x8] sm:$0xf]
        %v5955 = vld [vmem:[%s13 + $0xc] sm:$0xf]
        %v5956 = vld [vmem:[%s13 + $0x10] sm:$0xf]
        %v5957 = vld [vmem:[%s13 + $0x14] sm:$0xf]
        %v5958 = vld [vmem:[%s13 + $0x18] sm:$0xf]
        %v5959 = vld [vmem:[%s13 + $0x1c] sm:$0xf]
        %v5960 = vld [vmem:[%s13 + $0x20] sm:$0xf]
        %v5961 = vld [vmem:[%s13 + $0x24] sm:$0xf]
        %v5962 = vld [vmem:[%s13 + $0x28] sm:$0xf]
        %v5963 = vld [vmem:[%s13 + $0x2c] sm:$0xf]
        %v5964 = vld [vmem:[%s13 + $0x30] sm:$0xf]
        %v5965 = vld [vmem:[%s13 + $0x34] sm:$0xf]
        %v5966 = vld [vmem:[%s13 + $0x38] sm:$0xf]
        %v5967 = vld [vmem:[%s13 + $0x3c] sm:$0xf]
        %v5968 = vld [vmem:[%s14] sm:$0x1]
        %v5970 = vlaneseq
        %v5971 = vshrl.u32 %v5970, 7
        %v5972 = vsub.s32 0, %v5971
        %v5973 = vrot.slane %v5968, %v5972
        %v5991 = vunpack.c.l.b16 %v5952
        %v5992 = vunpack.c.l.b16 %v5953
        %v5993 = vunpack.c.l.b16 %v5954
        %v5994 = vunpack.c.l.b16 %v5955
        %v5995 = vunpack.c.l.b16 %v5956
        %v5996 = vunpack.c.l.b16 %v5957
        %v5997 = vunpack.c.l.b16 %v5958
        %v5998 = vunpack.c.l.b16 %v5959
        %v5999 = vunpack.c.l.b16 %v5960
        %v6000 = vunpack.c.l.b16 %v5961
        %v6001 = vunpack.c.l.b16 %v5962
        %v6002 = vunpack.c.l.b16 %v5963
        %v6003 = vunpack.c.l.b16 %v5964
        %v6004 = vunpack.c.l.b16 %v5965
        %v6005 = vunpack.c.l.b16 %v5966
        %v6006 = vunpack.c.l.b16 %v5967
        %v6007 = vpack.c.b16 %v5992, %v5991
        %v6008 = vpack.c.b16 %v5994, %v5993
        %v6009 = vpack.c.b16 %v5996, %v5995
        %v6010 = vpack.c.b16 %v5998, %v5997
        %v6011 = vpack.c.b16 %v6000, %v5999
        %v6012 = vpack.c.b16 %v6002, %v6001
        %v6013 = vpack.c.b16 %v6004, %v6003
        %v6014 = vpack.c.b16 %v6006, %v6005
        %6023 = vmatprep.subr.bf16.mxu0 0
        %6024 = vmatpush1.bf16.msra.mxu0 %v6007
        %6025 = vmatprep.subr.bf16.mxu0 0
        %6026 = vmatpush1.bf16.msra.mxu0 %v6008
        %6027 = vmatprep.subr.bf16.mxu0 0
        %6028 = vmatpush1.bf16.msra.mxu0 %v6009
        %6029 = vmatprep.subr.bf16.mxu0 0
        %6030 = vmatpush1.bf16.msra.mxu0 %v6010
        %6031 = vmatprep.subr.bf16.mxu0 0
        %6032 = vmatpush1.bf16.msra.mxu0 %v6011
        %6033 = vmatprep.subr.bf16.mxu0 0
        %6034 = vmatpush1.bf16.msra.mxu0 %v6012
        %6035 = vmatprep.subr.bf16.mxu0 0
        %6036 = vmatpush1.bf16.msra.mxu0 %v6013
        %6037 = vmatprep.subr.bf16.mxu0 0
        %6038 = vmatpush1.bf16.msra.mxu0 %v6014
        %6039 = vmatprep.subr.bf16.mxu0 0
        %6040 = vmatpush1.bf16.msra.mxu0 0
        %6041 = vmatprep.subr.bf16.mxu0 0
        %6042 = vmatpush1.bf16.msra.mxu0 0
        %6043 = vmatprep.subr.bf16.mxu0 0
        %6044 = vmatpush1.bf16.msra.mxu0 0
        %6045 = vmatprep.subr.bf16.mxu0 0
        %6046 = vmatpush1.bf16.msra.mxu0 0
        %6047 = vmatprep.subr.bf16.mxu0 0
        %6048 = vmatpush1.bf16.msra.mxu0 0
        %6049 = vmatprep.subr.bf16.mxu0 0
        %6050 = vmatpush1.bf16.msra.mxu0 0
        %6051 = vmatprep.subr.bf16.mxu0 0
        %6052 = vmatpush1.bf16.msra.mxu0 0
        %6053 = vmatprep.subr.bf16.mxu0 0
        %6054 = vmatpush1.bf16.msra.mxu0 0
        %6055 = vmatprep.mubr.bf16.mxu0 0
        %6056 = vmatmul.mubr.bf16.gmra.mrb[0].mxu0 %v5951
        %v6057 = vpop.f32.mrb[0].mxu0
        %v6058 = vadd.f32 %v5973, %v6057
        %v6059 = vpop.f32.mrb[0].mxu0
        %v6060 = vpop.f32.mrb[0].mxu0
        %v6061 = vpop.f32.mrb[0].mxu0
        %6062 = vdwg.mxu0
        %6063 = vst [vmem:[%s488] sm:$0xff] %v6058
        %s6064 = sand.u32 %s357, 1
        %s6065 = scalar_lea.sflag [#allocation4], %s6064
        %s6066 = sand.u32 %s357, 1
        %s6067 = smul.addr %s6066, 8
        %s6068 = scalar_lea.vmem [#allocation3], %s6067
        // Predicated region
        $region81: #{lenet_forward.1} parent=79 // pred_check
          %p6069 = pneg %p367
        $region82: #{lenet_forward.1} parent=79 // pred_check_branch
          %6071 = sbr.rel (%p6069) target = $region84
        $region83: #{lenet_forward.1} parent=79 // pred_region
          %s6073 = ssub.s32 128, 128
          %6074 = vsyncadd %s6065, %s6073
          %s6075 = smul.addr %s29, 128
          %s6076 = scalar_lea.hbm %s15, %s6075
          %s6078 = sshll.u32 %s6068, 4
          %s6079 = int_to_ptr.vmem [resolvable:$true] %s6078
          %6081 = dma.vmem_to_hbm [thread:$0]  %s6079, 128, %s6076, %s6065
        $region84: #{lenet_forward.1} parent=79 // pred_fallthru
          _
      $region80: #{lenet_forward.1} parent=5 // pred_fallthru
        _
      %p6082 = scmp.le.s32.totalorder 2, %s24
      // Predicated region
      $region85: #{lenet_forward.1} parent=5 // pred_check
        %p6083 = pneg %p6082
      $region86: #{lenet_forward.1} parent=5 // pred_check_branch
        %6085 = sbr.rel (%p6083) target = $region88
      $region87: #{lenet_forward.1} parent=5 // pred_region
        %s6086 = ssub.s32 %s24, 2
        // Predicated region
        $region89: #{lenet_forward.1} parent=87 // pred_check
          %p6087 = pneg %p373
        $region90: #{lenet_forward.1} parent=87 // pred_check_branch
          %6089 = sbr.rel (%p6087) target = $region92
        $region91: #{lenet_forward.1} parent=87 // pred_region
          %s6090 = sand.u32 %s358, 1
          %s6091 = scalar_lea.sflag [#allocation4], %s6090
          %s6092 = sand.u32 %s358, 1
          %s6093 = smul.addr %s6092, 8
          %s6094 = scalar_lea.vmem [#allocation3], %s6093
          %6095 = dma.done %s6091, 128
        $region92: #{lenet_forward.1} parent=87 // pred_fallthru
          _
      $region88: #{lenet_forward.1} parent=5 // pred_fallthru
        _
    $region6: #{lenet_forward.1} parent=1 // loop_footer
      %s28 = sadd.s32 1, %s24
    $region7: #{lenet_forward.1} parent=1 // loop_footer_branch
      %23 = sbr.rel target = $region3
    $region8: #{lenet_forward.1} parent=1 // loop_exit
      _
    %6096 = vsyncpa [#allocation4], 1
    %s6097 = scalar_lea.sflag [#allocation4], 1
    %6098 = vsyncpa %s6097, 1

</llo_original>
